<compile_context>
chip_gen: v6e
topology: v6e:2x2x1
jax: 0.10.0
libtpu: 0.0.40
codegen_flags: <defaults>
</compile_context>

<pallas_src>
import functools

import jax
import jax.numpy as jnp
from jax.experimental import pallas as pl
from jax.experimental.pallas import tpu as pltpu


def _lstm_fc_kernel(
    x_ref,        # (T*B_pad, I)  f32   time-major, batch padded to 8 rows/step
    wih0_ref,     # (I, 4H)       bf16
    b0_ref,       # (1, 4H)       f32   (= b_ih0 + b_hh0)
    wfused_ref,   # (2H, 8H)      bf16  = [[W_hh0, W_ih1], [0, W_hh1]]
    b1_ref,       # (1, 4H)       f32   (= b_ih1 + b_hh1)
    wfc_ref,      # (H, O)        bf16
    bfc_ref,      # (1, O)        f32
    out_ref,      # (B_pad, O)    f32
    *, hidden_size, batch_pad, seq_len,
):
    H = hidden_size
    Bp = batch_pad
    T = seq_len

    # ---- Prologue: hoisted layer-0 input projection for all T steps. ----
    x_all = x_ref[...].astype(jnp.bfloat16)                          # (T*Bp, I)
    xproj = jnp.dot(x_all, wih0_ref[...],
                    preferred_element_type=jnp.float32) + b0_ref[...]  # (T*Bp, 4H) f32

    w_fused = wfused_ref[...]                                        # (2H, 8H) bf16
    # Hoist the (1,4H)->(Bp,4H) broadcast out of the unrolled loop.
    b1 = jnp.broadcast_to(b1_ref[...], (Bp, 4 * H))                  # (Bp, 4H) f32

    def gates_to_hc(gates, c_prev):
        # i,f are adjacent lane tiles -> single contiguous sigmoid (2 EUP pushes
        # per layer per step instead of 3).
        sig_if = jax.nn.sigmoid(gates[:, :2 * H])
        i = sig_if[:, :H]
        f = sig_if[:, H:2 * H]
        g = jnp.tanh(gates[:, 2 * H:3 * H])
        o = jax.nn.sigmoid(gates[:, 3 * H:4 * H])
        c_new = f * c_prev + i * g
        h_new = o * jnp.tanh(c_new)
        return h_new, c_new

    zeros = jnp.zeros((Bp, H), jnp.float32)
    h1, c0, c1 = zeros, zeros, zeros
    # rec0 carries h0_{t-1} @ W_hh0 (zero at t=0 since h0 starts at zero).
    rec0 = jnp.zeros((Bp, 4 * H), jnp.float32)

    # ---- Recurrence: fully unrolled static loop, states carried in vregs. ----
    # TODO(synk): for long sequences switch to lax.fori_loop(..., unroll=small)
    # with (h,c,rec0) carried and chunk/bf16 the hoisted xproj; at T=8 the static
    # unroll is the right choice.
    for t in range(T):
        # Layer 0: tile-aligned slice (Bp=8 sublanes) + carried recurrent term.
        g0 = xproj[t * Bp:(t + 1) * Bp, :] + rec0
        h0, c0 = gates_to_hc(g0, c0)

        # Single fused dot per step against the constant (2H, 8H) weight.
        lhs = jnp.concatenate(
            [h0.astype(jnp.bfloat16), h1.astype(jnp.bfloat16)], axis=1)  # (Bp, 2H)
        fused = jnp.dot(lhs, w_fused,
                        preferred_element_type=jnp.float32)             # (Bp, 8H)
        rec0 = fused[:, :4 * H]              # layer-0 recurrent term for t+1
        g1 = fused[:, 4 * H:] + b1           # layer-1 gates for step t
        h1, c1 = gates_to_hc(g1, c1)

    # ---- Epilogue: fc on the last timestep's top-layer hidden state. ----
    out_ref[...] = (
        jnp.dot(h1.astype(jnp.bfloat16), wfc_ref[...],
                preferred_element_type=jnp.float32)
        + bfc_ref[...]
    )


def simple_rnn_forward(x, params, *, hidden_size=128):
    """x: (B, T, I) float32, returns (B, output_size) float32."""
    B, T, I = x.shape
    O = params["w_fc"].shape[1]
    H = hidden_size

    # Pad batch to the 8-sublane tile so every per-step slice / state vreg is
    # tile-aligned. Padded rows are zeros (finite, discarded at the end).
    B_pad = max(8, ((B + 7) // 8) * 8)

    # time-major, pad batch rows, then flatten (T, B_pad) rows
    x_tb = jnp.transpose(x, (1, 0, 2))                               # (T, B, I)
    x_tb = jnp.pad(x_tb, ((0, 0), (0, B_pad - B), (0, 0)))           # (T, B_pad, I)
    x_tb = x_tb.reshape(T * B_pad, I)

    # bf16 weights for the MXU; biases stay f32 (added after f32 accumulation)
    wih0 = params["w_ih0"].astype(jnp.bfloat16)                      # (I, 4H)
    w_top = jnp.concatenate([params["w_hh0"], params["w_ih1"]], axis=1)          # (H, 8H)
    w_bot = jnp.concatenate(
        [jnp.zeros((H, 4 * H), jnp.float32), params["w_hh1"]], axis=1)           # (H, 8H)
    w_fused = jnp.concatenate([w_top, w_bot], axis=0).astype(jnp.bfloat16)       # (2H, 8H)
    wfc = params["w_fc"].astype(jnp.bfloat16)                        # (H, O)

    vmem = pl.BlockSpec(memory_space=pltpu.MemorySpace.VMEM)
    kernel = functools.partial(
        _lstm_fc_kernel, hidden_size=H, batch_pad=B_pad, seq_len=T)

    # TODO(synk): with many independent sequences, add a leading grid axis over
    # sequence groups with dimension_semantics=("parallel",) so v7x's second
    # TensorCore is used; moot at B=2.
    out_pad = pl.pallas_call(
        kernel,
        out_shape=jax.ShapeDtypeStruct((B_pad, O), jnp.float32),
        in_specs=[vmem] * 7,
        out_specs=vmem,
    )(
        x_tb,
        wih0, params["b0"],
        w_fused, params["b1"],
        wfc, params["b_fc"],
    )
    return out_pad[:B]


def init_params(key, input_size=12, hidden_size=128, output_size=12):
    """Deterministic init mimicking PyTorch's U(-1/sqrt(H), 1/sqrt(H))."""
    H = hidden_size
    bound = 1.0 / jnp.sqrt(jnp.float32(H))
    ks = jax.random.split(key, 10)
    u = lambda k, shape: jax.random.uniform(
        k, shape, jnp.float32, -bound, bound)
    return {
        # stored pre-transposed: (in_features, 4H)
        "w_ih0": u(ks[0], (input_size, 4 * H)),
        "w_hh0": u(ks[1], (H, 4 * H)),
        "b0":    u(ks[2], (1, 4 * H)) + u(ks[3], (1, 4 * H)),  # b_ih + b_hh
        "w_ih1": u(ks[4], (H, 4 * H)),
        "w_hh1": u(ks[5], (H, 4 * H)),
        "b1":    u(ks[6], (1, 4 * H)) + u(ks[7], (1, 4 * H)),
        "w_fc":  u(ks[8], (H, output_size)),
        "b_fc":  u(ks[9], (1, output_size)),
    }


def reference_forward(x, params, *, hidden_size=128):
    """Pure-JAX f32 reference of the same forward pass (for verification)."""
    H = hidden_size
    B = x.shape[0]

    def cell(x_t, h, c, wih, whh, b):
        g = x_t @ wih + h @ whh + b
        i = jax.nn.sigmoid(g[:, 0 * H:1 * H])
        f = jax.nn.sigmoid(g[:, 1 * H:2 * H])
        gg = jnp.tanh(g[:, 2 * H:3 * H])
        o = jax.nn.sigmoid(g[:, 3 * H:4 * H])
        c = f * c + i * gg
        return o * jnp.tanh(c), c

    h0 = c0 = h1 = c1 = jnp.zeros((B, H), jnp.float32)
    for t in range(x.shape[1]):
        h0, c0 = cell(x[:, t, :], h0, c0,
                      params["w_ih0"], params["w_hh0"], params["b0"])
        h1, c1 = cell(h0, h1, c1,
                      params["w_ih1"], params["w_hh1"], params["b1"])
    return h1 @ params["w_fc"] + params["b_fc"]


if __name__ == "__main__":
    B, T, I, H, O = 2, 8, 12, 128, 12
    key = jax.random.PRNGKey(0)
    k_x, k_p = jax.random.split(key)

    x = jax.random.normal(k_x, (B, T, I), jnp.float32)
    params = init_params(k_p, input_size=I, hidden_size=H, output_size=O)

    out = simple_rnn_forward(x, params, hidden_size=H)
    out = jax.block_until_ready(out)

    ref = reference_forward(x, params, hidden_size=H)
    assert out.shape == (B, O)
    # bf16 MXU inputs with f32 accumulation -> loosened tolerance vs f32 reference
    assert jnp.allclose(out, ref, atol=3e-2, rtol=3e-2), "mismatch vs reference"

    print("KERNEL_OK")
</pallas_src>

<mosaic_0001>
module attributes {stable_mosaic.version = 11 : i64} {
  func.func @_lstm_fc_kernel(%arg0: memref<64x12xf32, #tpu.memory_space<vmem>>, %arg1: memref<12x512xbf16, #tpu.memory_space<vmem>>, %arg2: memref<1x512xf32, #tpu.memory_space<vmem>>, %arg3: memref<256x1024xbf16, #tpu.memory_space<vmem>>, %arg4: memref<1x512xf32, #tpu.memory_space<vmem>>, %arg5: memref<128x12xbf16, #tpu.memory_space<vmem>>, %arg6: memref<1x12xf32, #tpu.memory_space<vmem>>, %arg7: memref<8x12xf32, #tpu.memory_space<vmem>>) attributes {dimension_semantics = [], scalar_prefetch = 0 : i64, scratch_operands = 0 : i64, tpu.core_type = #tpu.core_type<tc>} {
    %c0 = arith.constant 0 : index
    %c0_0 = arith.constant 0 : index
    %0 = vector.load %arg0[%c0, %c0_0] : memref<64x12xf32, #tpu.memory_space<vmem>>, vector<64x12xf32>
    %1 = arith.truncf %0 : vector<64x12xf32> to vector<64x12xbf16>
    %c0_1 = arith.constant 0 : index
    %c0_2 = arith.constant 0 : index
    %2 = vector.load %arg1[%c0_1, %c0_2] : memref<12x512xbf16, #tpu.memory_space<vmem>>, vector<12x512xbf16>
    %cst = arith.constant dense<0.000000e+00> : vector<64x512xf32>
    %3 = tpu.matmul %1, %2, %cst {dimension_numbers = #tpu.dot_dimension_numbers<[1], [0], [0], [1], [0, 0, 1, 1], [], []>} : vector<64x12xbf16>, vector<12x512xbf16>, vector<64x512xf32> -> vector<64x512xf32>
    %c0_3 = arith.constant 0 : index
    %c0_4 = arith.constant 0 : index
    %4 = vector.load %arg2[%c0_3, %c0_4] : memref<1x512xf32, #tpu.memory_space<vmem>>, vector<1x512xf32>
    %5 = vector.broadcast %4 : vector<1x512xf32> to vector<64x512xf32>
    %6 = arith.addf %3, %5 : vector<64x512xf32>
    %c0_5 = arith.constant 0 : index
    %c0_6 = arith.constant 0 : index
    %7 = vector.load %arg3[%c0_5, %c0_6] : memref<256x1024xbf16, #tpu.memory_space<vmem>>, vector<256x1024xbf16>
    %c0_7 = arith.constant 0 : index
    %c0_8 = arith.constant 0 : index
    %8 = vector.load %arg4[%c0_7, %c0_8] : memref<1x512xf32, #tpu.memory_space<vmem>>, vector<1x512xf32>
    %9 = vector.shape_cast %8 : vector<1x512xf32> to vector<1x512xf32>
    %10 = vector.broadcast %9 : vector<1x512xf32> to vector<8x512xf32>
    %cst_9 = arith.constant 0.000000e+00 : f32
    %11 = vector.broadcast %cst_9 : f32 to vector<8x128xf32>
    %cst_10 = arith.constant 0.000000e+00 : f32
    %12 = vector.broadcast %cst_10 : f32 to vector<8x512xf32>
    %13 = vector.extract_strided_slice %6 {offsets = [0, 0], sizes = [8, 512], strides = [1, 1]} : vector<64x512xf32> to vector<8x512xf32>
    %14 = arith.addf %13, %12 : vector<8x512xf32>
    %15 = vector.extract_strided_slice %14 {offsets = [0, 0], sizes = [8, 256], strides = [1, 1]} : vector<8x512xf32> to vector<8x256xf32>
    %16 = arith.negf %15 : vector<8x256xf32>
    %17 = math.exp %16 : vector<8x256xf32>
    %cst_11 = arith.constant 1.000000e+00 : f32
    %18 = vector.broadcast %cst_11 : f32 to vector<8x256xf32>
    %19 = arith.addf %18, %17 : vector<8x256xf32>
    %20 = arith.divf %18, %19 : vector<8x256xf32>
    %21 = vector.extract_strided_slice %20 {offsets = [0, 0], sizes = [8, 128], strides = [1, 1]} : vector<8x256xf32> to vector<8x128xf32>
    %22 = vector.extract_strided_slice %20 {offsets = [0, 128], sizes = [8, 128], strides = [1, 1]} : vector<8x256xf32> to vector<8x128xf32>
    %23 = vector.extract_strided_slice %14 {offsets = [0, 256], sizes = [8, 128], strides = [1, 1]} : vector<8x512xf32> to vector<8x128xf32>
    %24 = math.tanh %23 : vector<8x128xf32>
    %25 = vector.extract_strided_slice %14 {offsets = [0, 384], sizes = [8, 128], strides = [1, 1]} : vector<8x512xf32> to vector<8x128xf32>
    %26 = arith.negf %25 : vector<8x128xf32>
    %27 = math.exp %26 : vector<8x128xf32>
    %cst_12 = arith.constant 1.000000e+00 : f32
    %28 = vector.broadcast %cst_12 : f32 to vector<8x128xf32>
    %29 = arith.addf %28, %27 : vector<8x128xf32>
    %30 = arith.divf %28, %29 : vector<8x128xf32>
    %31 = arith.mulf %22, %11 : vector<8x128xf32>
    %32 = arith.mulf %21, %24 : vector<8x128xf32>
    %33 = arith.addf %31, %32 : vector<8x128xf32>
    %34 = math.tanh %33 : vector<8x128xf32>
    %35 = arith.mulf %30, %34 : vector<8x128xf32>
    %36 = arith.truncf %35 : vector<8x128xf32> to vector<8x128xbf16>
    %37 = arith.truncf %11 : vector<8x128xf32> to vector<8x128xbf16>
    %38 = tpu.concatenate %36, %37 in 1 : vector<8x128xbf16>, vector<8x128xbf16> -> vector<8x256xbf16>
    %cst_13 = arith.constant dense<0.000000e+00> : vector<8x1024xf32>
    %39 = tpu.matmul %38, %7, %cst_13 {dimension_numbers = #tpu.dot_dimension_numbers<[1], [0], [0], [1], [0, 0, 1, 1], [], []>} : vector<8x256xbf16>, vector<256x1024xbf16>, vector<8x1024xf32> -> vector<8x1024xf32>
    %40 = vector.extract_strided_slice %39 {offsets = [0, 0], sizes = [8, 512], strides = [1, 1]} : vector<8x1024xf32> to vector<8x512xf32>
    %41 = vector.extract_strided_slice %39 {offsets = [0, 512], sizes = [8, 512], strides = [1, 1]} : vector<8x1024xf32> to vector<8x512xf32>
    %42 = arith.addf %41, %10 : vector<8x512xf32>
    %43 = vector.extract_strided_slice %42 {offsets = [0, 0], sizes = [8, 256], strides = [1, 1]} : vector<8x512xf32> to vector<8x256xf32>
    %44 = arith.negf %43 : vector<8x256xf32>
    %45 = math.exp %44 : vector<8x256xf32>
    %cst_14 = arith.constant 1.000000e+00 : f32
    %46 = vector.broadcast %cst_14 : f32 to vector<8x256xf32>
    %47 = arith.addf %46, %45 : vector<8x256xf32>
    %48 = arith.divf %46, %47 : vector<8x256xf32>
    %49 = vector.extract_strided_slice %48 {offsets = [0, 0], sizes = [8, 128], strides = [1, 1]} : vector<8x256xf32> to vector<8x128xf32>
    %50 = vector.extract_strided_slice %48 {offsets = [0, 128], sizes = [8, 128], strides = [1, 1]} : vector<8x256xf32> to vector<8x128xf32>
    %51 = vector.extract_strided_slice %42 {offsets = [0, 256], sizes = [8, 128], strides = [1, 1]} : vector<8x512xf32> to vector<8x128xf32>
    %52 = math.tanh %51 : vector<8x128xf32>
    %53 = vector.extract_strided_slice %42 {offsets = [0, 384], sizes = [8, 128], strides = [1, 1]} : vector<8x512xf32> to vector<8x128xf32>
    %54 = arith.negf %53 : vector<8x128xf32>
    %55 = math.exp %54 : vector<8x128xf32>
    %cst_15 = arith.constant 1.000000e+00 : f32
    %56 = vector.broadcast %cst_15 : f32 to vector<8x128xf32>
    %57 = arith.addf %56, %55 : vector<8x128xf32>
    %58 = arith.divf %56, %57 : vector<8x128xf32>
    %59 = arith.mulf %50, %11 : vector<8x128xf32>
    %60 = arith.mulf %49, %52 : vector<8x128xf32>
    %61 = arith.addf %59, %60 : vector<8x128xf32>
    %62 = math.tanh %61 : vector<8x128xf32>
    %63 = arith.mulf %58, %62 : vector<8x128xf32>
    %64 = vector.extract_strided_slice %6 {offsets = [8, 0], sizes = [8, 512], strides = [1, 1]} : vector<64x512xf32> to vector<8x512xf32>
    %65 = arith.addf %64, %40 : vector<8x512xf32>
    %66 = vector.extract_strided_slice %65 {offsets = [0, 0], sizes = [8, 256], strides = [1, 1]} : vector<8x512xf32> to vector<8x256xf32>
    %67 = arith.negf %66 : vector<8x256xf32>
    %68 = math.exp %67 : vector<8x256xf32>
    %cst_16 = arith.constant 1.000000e+00 : f32
    %69 = vector.broadcast %cst_16 : f32 to vector<8x256xf32>
    %70 = arith.addf %69, %68 : vector<8x256xf32>
    %71 = arith.divf %69, %70 : vector<8x256xf32>
    %72 = vector.extract_strided_slice %71 {offsets = [0, 0], sizes = [8, 128], strides = [1, 1]} : vector<8x256xf32> to vector<8x128xf32>
    %73 = vector.extract_strided_slice %71 {offsets = [0, 128], sizes = [8, 128], strides = [1, 1]} : vector<8x256xf32> to vector<8x128xf32>
    %74 = vector.extract_strided_slice %65 {offsets = [0, 256], sizes = [8, 128], strides = [1, 1]} : vector<8x512xf32> to vector<8x128xf32>
    %75 = math.tanh %74 : vector<8x128xf32>
    %76 = vector.extract_strided_slice %65 {offsets = [0, 384], sizes = [8, 128], strides = [1, 1]} : vector<8x512xf32> to vector<8x128xf32>
    %77 = arith.negf %76 : vector<8x128xf32>
    %78 = math.exp %77 : vector<8x128xf32>
    %cst_17 = arith.constant 1.000000e+00 : f32
    %79 = vector.broadcast %cst_17 : f32 to vector<8x128xf32>
    %80 = arith.addf %79, %78 : vector<8x128xf32>
    %81 = arith.divf %79, %80 : vector<8x128xf32>
    %82 = arith.mulf %73, %33 : vector<8x128xf32>
    %83 = arith.mulf %72, %75 : vector<8x128xf32>
    %84 = arith.addf %82, %83 : vector<8x128xf32>
    %85 = math.tanh %84 : vector<8x128xf32>
    %86 = arith.mulf %81, %85 : vector<8x128xf32>
    %87 = arith.truncf %86 : vector<8x128xf32> to vector<8x128xbf16>
    %88 = arith.truncf %63 : vector<8x128xf32> to vector<8x128xbf16>
    %89 = tpu.concatenate %87, %88 in 1 : vector<8x128xbf16>, vector<8x128xbf16> -> vector<8x256xbf16>
    %cst_18 = arith.constant dense<0.000000e+00> : vector<8x1024xf32>
    %90 = tpu.matmul %89, %7, %cst_18 {dimension_numbers = #tpu.dot_dimension_numbers<[1], [0], [0], [1], [0, 0, 1, 1], [], []>} : vector<8x256xbf16>, vector<256x1024xbf16>, vector<8x1024xf32> -> vector<8x1024xf32>
    %91 = vector.extract_strided_slice %90 {offsets = [0, 0], sizes = [8, 512], strides = [1, 1]} : vector<8x1024xf32> to vector<8x512xf32>
    %92 = vector.extract_strided_slice %90 {offsets = [0, 512], sizes = [8, 512], strides = [1, 1]} : vector<8x1024xf32> to vector<8x512xf32>
    %93 = arith.addf %92, %10 : vector<8x512xf32>
    %94 = vector.extract_strided_slice %93 {offsets = [0, 0], sizes = [8, 256], strides = [1, 1]} : vector<8x512xf32> to vector<8x256xf32>
    %95 = arith.negf %94 : vector<8x256xf32>
    %96 = math.exp %95 : vector<8x256xf32>
    %cst_19 = arith.constant 1.000000e+00 : f32
    %97 = vector.broadcast %cst_19 : f32 to vector<8x256xf32>
    %98 = arith.addf %97, %96 : vector<8x256xf32>
    %99 = arith.divf %97, %98 : vector<8x256xf32>
    %100 = vector.extract_strided_slice %99 {offsets = [0, 0], sizes = [8, 128], strides = [1, 1]} : vector<8x256xf32> to vector<8x128xf32>
    %101 = vector.extract_strided_slice %99 {offsets = [0, 128], sizes = [8, 128], strides = [1, 1]} : vector<8x256xf32> to vector<8x128xf32>
    %102 = vector.extract_strided_slice %93 {offsets = [0, 256], sizes = [8, 128], strides = [1, 1]} : vector<8x512xf32> to vector<8x128xf32>
    %103 = math.tanh %102 : vector<8x128xf32>
    %104 = vector.extract_strided_slice %93 {offsets = [0, 384], sizes = [8, 128], strides = [1, 1]} : vector<8x512xf32> to vector<8x128xf32>
    %105 = arith.negf %104 : vector<8x128xf32>
    %106 = math.exp %105 : vector<8x128xf32>
    %cst_20 = arith.constant 1.000000e+00 : f32
    %107 = vector.broadcast %cst_20 : f32 to vector<8x128xf32>
    %108 = arith.addf %107, %106 : vector<8x128xf32>
    %109 = arith.divf %107, %108 : vector<8x128xf32>
    %110 = arith.mulf %101, %61 : vector<8x128xf32>
    %111 = arith.mulf %100, %103 : vector<8x128xf32>
    %112 = arith.addf %110, %111 : vector<8x128xf32>
    %113 = math.tanh %112 : vector<8x128xf32>
    %114 = arith.mulf %109, %113 : vector<8x128xf32>
    %115 = vector.extract_strided_slice %6 {offsets = [16, 0], sizes = [8, 512], strides = [1, 1]} : vector<64x512xf32> to vector<8x512xf32>
    %116 = arith.addf %115, %91 : vector<8x512xf32>
    %117 = vector.extract_strided_slice %116 {offsets = [0, 0], sizes = [8, 256], strides = [1, 1]} : vector<8x512xf32> to vector<8x256xf32>
    %118 = arith.negf %117 : vector<8x256xf32>
    %119 = math.exp %118 : vector<8x256xf32>
    %cst_21 = arith.constant 1.000000e+00 : f32
    %120 = vector.broadcast %cst_21 : f32 to vector<8x256xf32>
    %121 = arith.addf %120, %119 : vector<8x256xf32>
    %122 = arith.divf %120, %121 : vector<8x256xf32>
    %123 = vector.extract_strided_slice %122 {offsets = [0, 0], sizes = [8, 128], strides = [1, 1]} : vector<8x256xf32> to vector<8x128xf32>
    %124 = vector.extract_strided_slice %122 {offsets = [0, 128], sizes = [8, 128], strides = [1, 1]} : vector<8x256xf32> to vector<8x128xf32>
    %125 = vector.extract_strided_slice %116 {offsets = [0, 256], sizes = [8, 128], strides = [1, 1]} : vector<8x512xf32> to vector<8x128xf32>
    %126 = math.tanh %125 : vector<8x128xf32>
    %127 = vector.extract_strided_slice %116 {offsets = [0, 384], sizes = [8, 128], strides = [1, 1]} : vector<8x512xf32> to vector<8x128xf32>
    %128 = arith.negf %127 : vector<8x128xf32>
    %129 = math.exp %128 : vector<8x128xf32>
    %cst_22 = arith.constant 1.000000e+00 : f32
    %130 = vector.broadcast %cst_22 : f32 to vector<8x128xf32>
    %131 = arith.addf %130, %129 : vector<8x128xf32>
    %132 = arith.divf %130, %131 : vector<8x128xf32>
    %133 = arith.mulf %124, %84 : vector<8x128xf32>
    %134 = arith.mulf %123, %126 : vector<8x128xf32>
    %135 = arith.addf %133, %134 : vector<8x128xf32>
    %136 = math.tanh %135 : vector<8x128xf32>
    %137 = arith.mulf %132, %136 : vector<8x128xf32>
    %138 = arith.truncf %137 : vector<8x128xf32> to vector<8x128xbf16>
    %139 = arith.truncf %114 : vector<8x128xf32> to vector<8x128xbf16>
    %140 = tpu.concatenate %138, %139 in 1 : vector<8x128xbf16>, vector<8x128xbf16> -> vector<8x256xbf16>
    %cst_23 = arith.constant dense<0.000000e+00> : vector<8x1024xf32>
    %141 = tpu.matmul %140, %7, %cst_23 {dimension_numbers = #tpu.dot_dimension_numbers<[1], [0], [0], [1], [0, 0, 1, 1], [], []>} : vector<8x256xbf16>, vector<256x1024xbf16>, vector<8x1024xf32> -> vector<8x1024xf32>
    %142 = vector.extract_strided_slice %141 {offsets = [0, 0], sizes = [8, 512], strides = [1, 1]} : vector<8x1024xf32> to vector<8x512xf32>
    %143 = vector.extract_strided_slice %141 {offsets = [0, 512], sizes = [8, 512], strides = [1, 1]} : vector<8x1024xf32> to vector<8x512xf32>
    %144 = arith.addf %143, %10 : vector<8x512xf32>
    %145 = vector.extract_strided_slice %144 {offsets = [0, 0], sizes = [8, 256], strides = [1, 1]} : vector<8x512xf32> to vector<8x256xf32>
    %146 = arith.negf %145 : vector<8x256xf32>
    %147 = math.exp %146 : vector<8x256xf32>
    %cst_24 = arith.constant 1.000000e+00 : f32
    %148 = vector.broadcast %cst_24 : f32 to vector<8x256xf32>
    %149 = arith.addf %148, %147 : vector<8x256xf32>
    %150 = arith.divf %148, %149 : vector<8x256xf32>
    %151 = vector.extract_strided_slice %150 {offsets = [0, 0], sizes = [8, 128], strides = [1, 1]} : vector<8x256xf32> to vector<8x128xf32>
    %152 = vector.extract_strided_slice %150 {offsets = [0, 128], sizes = [8, 128], strides = [1, 1]} : vector<8x256xf32> to vector<8x128xf32>
    %153 = vector.extract_strided_slice %144 {offsets = [0, 256], sizes = [8, 128], strides = [1, 1]} : vector<8x512xf32> to vector<8x128xf32>
    %154 = math.tanh %153 : vector<8x128xf32>
    %155 = vector.extract_strided_slice %144 {offsets = [0, 384], sizes = [8, 128], strides = [1, 1]} : vector<8x512xf32> to vector<8x128xf32>
    %156 = arith.negf %155 : vector<8x128xf32>
    %157 = math.exp %156 : vector<8x128xf32>
    %cst_25 = arith.constant 1.000000e+00 : f32
    %158 = vector.broadcast %cst_25 : f32 to vector<8x128xf32>
    %159 = arith.addf %158, %157 : vector<8x128xf32>
    %160 = arith.divf %158, %159 : vector<8x128xf32>
    %161 = arith.mulf %152, %112 : vector<8x128xf32>
    %162 = arith.mulf %151, %154 : vector<8x128xf32>
    %163 = arith.addf %161, %162 : vector<8x128xf32>
    %164 = math.tanh %163 : vector<8x128xf32>
    %165 = arith.mulf %160, %164 : vector<8x128xf32>
    %166 = vector.extract_strided_slice %6 {offsets = [24, 0], sizes = [8, 512], strides = [1, 1]} : vector<64x512xf32> to vector<8x512xf32>
    %167 = arith.addf %166, %142 : vector<8x512xf32>
    %168 = vector.extract_strided_slice %167 {offsets = [0, 0], sizes = [8, 256], strides = [1, 1]} : vector<8x512xf32> to vector<8x256xf32>
    %169 = arith.negf %168 : vector<8x256xf32>
    %170 = math.exp %169 : vector<8x256xf32>
    %cst_26 = arith.constant 1.000000e+00 : f32
    %171 = vector.broadcast %cst_26 : f32 to vector<8x256xf32>
    %172 = arith.addf %171, %170 : vector<8x256xf32>
    %173 = arith.divf %171, %172 : vector<8x256xf32>
    %174 = vector.extract_strided_slice %173 {offsets = [0, 0], sizes = [8, 128], strides = [1, 1]} : vector<8x256xf32> to vector<8x128xf32>
    %175 = vector.extract_strided_slice %173 {offsets = [0, 128], sizes = [8, 128], strides = [1, 1]} : vector<8x256xf32> to vector<8x128xf32>
    %176 = vector.extract_strided_slice %167 {offsets = [0, 256], sizes = [8, 128], strides = [1, 1]} : vector<8x512xf32> to vector<8x128xf32>
    %177 = math.tanh %176 : vector<8x128xf32>
    %178 = vector.extract_strided_slice %167 {offsets = [0, 384], sizes = [8, 128], strides = [1, 1]} : vector<8x512xf32> to vector<8x128xf32>
    %179 = arith.negf %178 : vector<8x128xf32>
    %180 = math.exp %179 : vector<8x128xf32>
    %cst_27 = arith.constant 1.000000e+00 : f32
    %181 = vector.broadcast %cst_27 : f32 to vector<8x128xf32>
    %182 = arith.addf %181, %180 : vector<8x128xf32>
    %183 = arith.divf %181, %182 : vector<8x128xf32>
    %184 = arith.mulf %175, %135 : vector<8x128xf32>
    %185 = arith.mulf %174, %177 : vector<8x128xf32>
    %186 = arith.addf %184, %185 : vector<8x128xf32>
    %187 = math.tanh %186 : vector<8x128xf32>
    %188 = arith.mulf %183, %187 : vector<8x128xf32>
    %189 = arith.truncf %188 : vector<8x128xf32> to vector<8x128xbf16>
    %190 = arith.truncf %165 : vector<8x128xf32> to vector<8x128xbf16>
    %191 = tpu.concatenate %189, %190 in 1 : vector<8x128xbf16>, vector<8x128xbf16> -> vector<8x256xbf16>
    %cst_28 = arith.constant dense<0.000000e+00> : vector<8x1024xf32>
    %192 = tpu.matmul %191, %7, %cst_28 {dimension_numbers = #tpu.dot_dimension_numbers<[1], [0], [0], [1], [0, 0, 1, 1], [], []>} : vector<8x256xbf16>, vector<256x1024xbf16>, vector<8x1024xf32> -> vector<8x1024xf32>
    %193 = vector.extract_strided_slice %192 {offsets = [0, 0], sizes = [8, 512], strides = [1, 1]} : vector<8x1024xf32> to vector<8x512xf32>
    %194 = vector.extract_strided_slice %192 {offsets = [0, 512], sizes = [8, 512], strides = [1, 1]} : vector<8x1024xf32> to vector<8x512xf32>
    %195 = arith.addf %194, %10 : vector<8x512xf32>
    %196 = vector.extract_strided_slice %195 {offsets = [0, 0], sizes = [8, 256], strides = [1, 1]} : vector<8x512xf32> to vector<8x256xf32>
    %197 = arith.negf %196 : vector<8x256xf32>
    %198 = math.exp %197 : vector<8x256xf32>
    %cst_29 = arith.constant 1.000000e+00 : f32
    %199 = vector.broadcast %cst_29 : f32 to vector<8x256xf32>
    %200 = arith.addf %199, %198 : vector<8x256xf32>
    %201 = arith.divf %199, %200 : vector<8x256xf32>
    %202 = vector.extract_strided_slice %201 {offsets = [0, 0], sizes = [8, 128], strides = [1, 1]} : vector<8x256xf32> to vector<8x128xf32>
    %203 = vector.extract_strided_slice %201 {offsets = [0, 128], sizes = [8, 128], strides = [1, 1]} : vector<8x256xf32> to vector<8x128xf32>
    %204 = vector.extract_strided_slice %195 {offsets = [0, 256], sizes = [8, 128], strides = [1, 1]} : vector<8x512xf32> to vector<8x128xf32>
    %205 = math.tanh %204 : vector<8x128xf32>
    %206 = vector.extract_strided_slice %195 {offsets = [0, 384], sizes = [8, 128], strides = [1, 1]} : vector<8x512xf32> to vector<8x128xf32>
    %207 = arith.negf %206 : vector<8x128xf32>
    %208 = math.exp %207 : vector<8x128xf32>
    %cst_30 = arith.constant 1.000000e+00 : f32
    %209 = vector.broadcast %cst_30 : f32 to vector<8x128xf32>
    %210 = arith.addf %209, %208 : vector<8x128xf32>
    %211 = arith.divf %209, %210 : vector<8x128xf32>
    %212 = arith.mulf %203, %163 : vector<8x128xf32>
    %213 = arith.mulf %202, %205 : vector<8x128xf32>
    %214 = arith.addf %212, %213 : vector<8x128xf32>
    %215 = math.tanh %214 : vector<8x128xf32>
    %216 = arith.mulf %211, %215 : vector<8x128xf32>
    %217 = vector.extract_strided_slice %6 {offsets = [32, 0], sizes = [8, 512], strides = [1, 1]} : vector<64x512xf32> to vector<8x512xf32>
    %218 = arith.addf %217, %193 : vector<8x512xf32>
    %219 = vector.extract_strided_slice %218 {offsets = [0, 0], sizes = [8, 256], strides = [1, 1]} : vector<8x512xf32> to vector<8x256xf32>
    %220 = arith.negf %219 : vector<8x256xf32>
    %221 = math.exp %220 : vector<8x256xf32>
    %cst_31 = arith.constant 1.000000e+00 : f32
    %222 = vector.broadcast %cst_31 : f32 to vector<8x256xf32>
    %223 = arith.addf %222, %221 : vector<8x256xf32>
    %224 = arith.divf %222, %223 : vector<8x256xf32>
    %225 = vector.extract_strided_slice %224 {offsets = [0, 0], sizes = [8, 128], strides = [1, 1]} : vector<8x256xf32> to vector<8x128xf32>
    %226 = vector.extract_strided_slice %224 {offsets = [0, 128], sizes = [8, 128], strides = [1, 1]} : vector<8x256xf32> to vector<8x128xf32>
    %227 = vector.extract_strided_slice %218 {offsets = [0, 256], sizes = [8, 128], strides = [1, 1]} : vector<8x512xf32> to vector<8x128xf32>
    %228 = math.tanh %227 : vector<8x128xf32>
    %229 = vector.extract_strided_slice %218 {offsets = [0, 384], sizes = [8, 128], strides = [1, 1]} : vector<8x512xf32> to vector<8x128xf32>
    %230 = arith.negf %229 : vector<8x128xf32>
    %231 = math.exp %230 : vector<8x128xf32>
    %cst_32 = arith.constant 1.000000e+00 : f32
    %232 = vector.broadcast %cst_32 : f32 to vector<8x128xf32>
    %233 = arith.addf %232, %231 : vector<8x128xf32>
    %234 = arith.divf %232, %233 : vector<8x128xf32>
    %235 = arith.mulf %226, %186 : vector<8x128xf32>
    %236 = arith.mulf %225, %228 : vector<8x128xf32>
    %237 = arith.addf %235, %236 : vector<8x128xf32>
    %238 = math.tanh %237 : vector<8x128xf32>
    %239 = arith.mulf %234, %238 : vector<8x128xf32>
    %240 = arith.truncf %239 : vector<8x128xf32> to vector<8x128xbf16>
    %241 = arith.truncf %216 : vector<8x128xf32> to vector<8x128xbf16>
    %242 = tpu.concatenate %240, %241 in 1 : vector<8x128xbf16>, vector<8x128xbf16> -> vector<8x256xbf16>
    %cst_33 = arith.constant dense<0.000000e+00> : vector<8x1024xf32>
    %243 = tpu.matmul %242, %7, %cst_33 {dimension_numbers = #tpu.dot_dimension_numbers<[1], [0], [0], [1], [0, 0, 1, 1], [], []>} : vector<8x256xbf16>, vector<256x1024xbf16>, vector<8x1024xf32> -> vector<8x1024xf32>
    %244 = vector.extract_strided_slice %243 {offsets = [0, 0], sizes = [8, 512], strides = [1, 1]} : vector<8x1024xf32> to vector<8x512xf32>
    %245 = vector.extract_strided_slice %243 {offsets = [0, 512], sizes = [8, 512], strides = [1, 1]} : vector<8x1024xf32> to vector<8x512xf32>
    %246 = arith.addf %245, %10 : vector<8x512xf32>
    %247 = vector.extract_strided_slice %246 {offsets = [0, 0], sizes = [8, 256], strides = [1, 1]} : vector<8x512xf32> to vector<8x256xf32>
    %248 = arith.negf %247 : vector<8x256xf32>
    %249 = math.exp %248 : vector<8x256xf32>
    %cst_34 = arith.constant 1.000000e+00 : f32
    %250 = vector.broadcast %cst_34 : f32 to vector<8x256xf32>
    %251 = arith.addf %250, %249 : vector<8x256xf32>
    %252 = arith.divf %250, %251 : vector<8x256xf32>
    %253 = vector.extract_strided_slice %252 {offsets = [0, 0], sizes = [8, 128], strides = [1, 1]} : vector<8x256xf32> to vector<8x128xf32>
    %254 = vector.extract_strided_slice %252 {offsets = [0, 128], sizes = [8, 128], strides = [1, 1]} : vector<8x256xf32> to vector<8x128xf32>
    %255 = vector.extract_strided_slice %246 {offsets = [0, 256], sizes = [8, 128], strides = [1, 1]} : vector<8x512xf32> to vector<8x128xf32>
    %256 = math.tanh %255 : vector<8x128xf32>
    %257 = vector.extract_strided_slice %246 {offsets = [0, 384], sizes = [8, 128], strides = [1, 1]} : vector<8x512xf32> to vector<8x128xf32>
    %258 = arith.negf %257 : vector<8x128xf32>
    %259 = math.exp %258 : vector<8x128xf32>
    %cst_35 = arith.constant 1.000000e+00 : f32
    %260 = vector.broadcast %cst_35 : f32 to vector<8x128xf32>
    %261 = arith.addf %260, %259 : vector<8x128xf32>
    %262 = arith.divf %260, %261 : vector<8x128xf32>
    %263 = arith.mulf %254, %214 : vector<8x128xf32>
    %264 = arith.mulf %253, %256 : vector<8x128xf32>
    %265 = arith.addf %263, %264 : vector<8x128xf32>
    %266 = math.tanh %265 : vector<8x128xf32>
    %267 = arith.mulf %262, %266 : vector<8x128xf32>
    %268 = vector.extract_strided_slice %6 {offsets = [40, 0], sizes = [8, 512], strides = [1, 1]} : vector<64x512xf32> to vector<8x512xf32>
    %269 = arith.addf %268, %244 : vector<8x512xf32>
    %270 = vector.extract_strided_slice %269 {offsets = [0, 0], sizes = [8, 256], strides = [1, 1]} : vector<8x512xf32> to vector<8x256xf32>
    %271 = arith.negf %270 : vector<8x256xf32>
    %272 = math.exp %271 : vector<8x256xf32>
    %cst_36 = arith.constant 1.000000e+00 : f32
    %273 = vector.broadcast %cst_36 : f32 to vector<8x256xf32>
    %274 = arith.addf %273, %272 : vector<8x256xf32>
    %275 = arith.divf %273, %274 : vector<8x256xf32>
    %276 = vector.extract_strided_slice %275 {offsets = [0, 0], sizes = [8, 128], strides = [1, 1]} : vector<8x256xf32> to vector<8x128xf32>
    %277 = vector.extract_strided_slice %275 {offsets = [0, 128], sizes = [8, 128], strides = [1, 1]} : vector<8x256xf32> to vector<8x128xf32>
    %278 = vector.extract_strided_slice %269 {offsets = [0, 256], sizes = [8, 128], strides = [1, 1]} : vector<8x512xf32> to vector<8x128xf32>
    %279 = math.tanh %278 : vector<8x128xf32>
    %280 = vector.extract_strided_slice %269 {offsets = [0, 384], sizes = [8, 128], strides = [1, 1]} : vector<8x512xf32> to vector<8x128xf32>
    %281 = arith.negf %280 : vector<8x128xf32>
    %282 = math.exp %281 : vector<8x128xf32>
    %cst_37 = arith.constant 1.000000e+00 : f32
    %283 = vector.broadcast %cst_37 : f32 to vector<8x128xf32>
    %284 = arith.addf %283, %282 : vector<8x128xf32>
    %285 = arith.divf %283, %284 : vector<8x128xf32>
    %286 = arith.mulf %277, %237 : vector<8x128xf32>
    %287 = arith.mulf %276, %279 : vector<8x128xf32>
    %288 = arith.addf %286, %287 : vector<8x128xf32>
    %289 = math.tanh %288 : vector<8x128xf32>
    %290 = arith.mulf %285, %289 : vector<8x128xf32>
    %291 = arith.truncf %290 : vector<8x128xf32> to vector<8x128xbf16>
    %292 = arith.truncf %267 : vector<8x128xf32> to vector<8x128xbf16>
    %293 = tpu.concatenate %291, %292 in 1 : vector<8x128xbf16>, vector<8x128xbf16> -> vector<8x256xbf16>
    %cst_38 = arith.constant dense<0.000000e+00> : vector<8x1024xf32>
    %294 = tpu.matmul %293, %7, %cst_38 {dimension_numbers = #tpu.dot_dimension_numbers<[1], [0], [0], [1], [0, 0, 1, 1], [], []>} : vector<8x256xbf16>, vector<256x1024xbf16>, vector<8x1024xf32> -> vector<8x1024xf32>
    %295 = vector.extract_strided_slice %294 {offsets = [0, 0], sizes = [8, 512], strides = [1, 1]} : vector<8x1024xf32> to vector<8x512xf32>
    %296 = vector.extract_strided_slice %294 {offsets = [0, 512], sizes = [8, 512], strides = [1, 1]} : vector<8x1024xf32> to vector<8x512xf32>
    %297 = arith.addf %296, %10 : vector<8x512xf32>
    %298 = vector.extract_strided_slice %297 {offsets = [0, 0], sizes = [8, 256], strides = [1, 1]} : vector<8x512xf32> to vector<8x256xf32>
    %299 = arith.negf %298 : vector<8x256xf32>
    %300 = math.exp %299 : vector<8x256xf32>
    %cst_39 = arith.constant 1.000000e+00 : f32
    %301 = vector.broadcast %cst_39 : f32 to vector<8x256xf32>
    %302 = arith.addf %301, %300 : vector<8x256xf32>
    %303 = arith.divf %301, %302 : vector<8x256xf32>
    %304 = vector.extract_strided_slice %303 {offsets = [0, 0], sizes = [8, 128], strides = [1, 1]} : vector<8x256xf32> to vector<8x128xf32>
    %305 = vector.extract_strided_slice %303 {offsets = [0, 128], sizes = [8, 128], strides = [1, 1]} : vector<8x256xf32> to vector<8x128xf32>
    %306 = vector.extract_strided_slice %297 {offsets = [0, 256], sizes = [8, 128], strides = [1, 1]} : vector<8x512xf32> to vector<8x128xf32>
    %307 = math.tanh %306 : vector<8x128xf32>
    %308 = vector.extract_strided_slice %297 {offsets = [0, 384], sizes = [8, 128], strides = [1, 1]} : vector<8x512xf32> to vector<8x128xf32>
    %309 = arith.negf %308 : vector<8x128xf32>
    %310 = math.exp %309 : vector<8x128xf32>
    %cst_40 = arith.constant 1.000000e+00 : f32
    %311 = vector.broadcast %cst_40 : f32 to vector<8x128xf32>
    %312 = arith.addf %311, %310 : vector<8x128xf32>
    %313 = arith.divf %311, %312 : vector<8x128xf32>
    %314 = arith.mulf %305, %265 : vector<8x128xf32>
    %315 = arith.mulf %304, %307 : vector<8x128xf32>
    %316 = arith.addf %314, %315 : vector<8x128xf32>
    %317 = math.tanh %316 : vector<8x128xf32>
    %318 = arith.mulf %313, %317 : vector<8x128xf32>
    %319 = vector.extract_strided_slice %6 {offsets = [48, 0], sizes = [8, 512], strides = [1, 1]} : vector<64x512xf32> to vector<8x512xf32>
    %320 = arith.addf %319, %295 : vector<8x512xf32>
    %321 = vector.extract_strided_slice %320 {offsets = [0, 0], sizes = [8, 256], strides = [1, 1]} : vector<8x512xf32> to vector<8x256xf32>
    %322 = arith.negf %321 : vector<8x256xf32>
    %323 = math.exp %322 : vector<8x256xf32>
    %cst_41 = arith.constant 1.000000e+00 : f32
    %324 = vector.broadcast %cst_41 : f32 to vector<8x256xf32>
    %325 = arith.addf %324, %323 : vector<8x256xf32>
    %326 = arith.divf %324, %325 : vector<8x256xf32>
    %327 = vector.extract_strided_slice %326 {offsets = [0, 0], sizes = [8, 128], strides = [1, 1]} : vector<8x256xf32> to vector<8x128xf32>
    %328 = vector.extract_strided_slice %326 {offsets = [0, 128], sizes = [8, 128], strides = [1, 1]} : vector<8x256xf32> to vector<8x128xf32>
    %329 = vector.extract_strided_slice %320 {offsets = [0, 256], sizes = [8, 128], strides = [1, 1]} : vector<8x512xf32> to vector<8x128xf32>
    %330 = math.tanh %329 : vector<8x128xf32>
    %331 = vector.extract_strided_slice %320 {offsets = [0, 384], sizes = [8, 128], strides = [1, 1]} : vector<8x512xf32> to vector<8x128xf32>
    %332 = arith.negf %331 : vector<8x128xf32>
    %333 = math.exp %332 : vector<8x128xf32>
    %cst_42 = arith.constant 1.000000e+00 : f32
    %334 = vector.broadcast %cst_42 : f32 to vector<8x128xf32>
    %335 = arith.addf %334, %333 : vector<8x128xf32>
    %336 = arith.divf %334, %335 : vector<8x128xf32>
    %337 = arith.mulf %328, %288 : vector<8x128xf32>
    %338 = arith.mulf %327, %330 : vector<8x128xf32>
    %339 = arith.addf %337, %338 : vector<8x128xf32>
    %340 = math.tanh %339 : vector<8x128xf32>
    %341 = arith.mulf %336, %340 : vector<8x128xf32>
    %342 = arith.truncf %341 : vector<8x128xf32> to vector<8x128xbf16>
    %343 = arith.truncf %318 : vector<8x128xf32> to vector<8x128xbf16>
    %344 = tpu.concatenate %342, %343 in 1 : vector<8x128xbf16>, vector<8x128xbf16> -> vector<8x256xbf16>
    %cst_43 = arith.constant dense<0.000000e+00> : vector<8x1024xf32>
    %345 = tpu.matmul %344, %7, %cst_43 {dimension_numbers = #tpu.dot_dimension_numbers<[1], [0], [0], [1], [0, 0, 1, 1], [], []>} : vector<8x256xbf16>, vector<256x1024xbf16>, vector<8x1024xf32> -> vector<8x1024xf32>
    %346 = vector.extract_strided_slice %345 {offsets = [0, 0], sizes = [8, 512], strides = [1, 1]} : vector<8x1024xf32> to vector<8x512xf32>
    %347 = vector.extract_strided_slice %345 {offsets = [0, 512], sizes = [8, 512], strides = [1, 1]} : vector<8x1024xf32> to vector<8x512xf32>
    %348 = arith.addf %347, %10 : vector<8x512xf32>
    %349 = vector.extract_strided_slice %348 {offsets = [0, 0], sizes = [8, 256], strides = [1, 1]} : vector<8x512xf32> to vector<8x256xf32>
    %350 = arith.negf %349 : vector<8x256xf32>
    %351 = math.exp %350 : vector<8x256xf32>
    %cst_44 = arith.constant 1.000000e+00 : f32
    %352 = vector.broadcast %cst_44 : f32 to vector<8x256xf32>
    %353 = arith.addf %352, %351 : vector<8x256xf32>
    %354 = arith.divf %352, %353 : vector<8x256xf32>
    %355 = vector.extract_strided_slice %354 {offsets = [0, 0], sizes = [8, 128], strides = [1, 1]} : vector<8x256xf32> to vector<8x128xf32>
    %356 = vector.extract_strided_slice %354 {offsets = [0, 128], sizes = [8, 128], strides = [1, 1]} : vector<8x256xf32> to vector<8x128xf32>
    %357 = vector.extract_strided_slice %348 {offsets = [0, 256], sizes = [8, 128], strides = [1, 1]} : vector<8x512xf32> to vector<8x128xf32>
    %358 = math.tanh %357 : vector<8x128xf32>
    %359 = vector.extract_strided_slice %348 {offsets = [0, 384], sizes = [8, 128], strides = [1, 1]} : vector<8x512xf32> to vector<8x128xf32>
    %360 = arith.negf %359 : vector<8x128xf32>
    %361 = math.exp %360 : vector<8x128xf32>
    %cst_45 = arith.constant 1.000000e+00 : f32
    %362 = vector.broadcast %cst_45 : f32 to vector<8x128xf32>
    %363 = arith.addf %362, %361 : vector<8x128xf32>
    %364 = arith.divf %362, %363 : vector<8x128xf32>
    %365 = arith.mulf %356, %316 : vector<8x128xf32>
    %366 = arith.mulf %355, %358 : vector<8x128xf32>
    %367 = arith.addf %365, %366 : vector<8x128xf32>
    %368 = math.tanh %367 : vector<8x128xf32>
    %369 = arith.mulf %364, %368 : vector<8x128xf32>
    %370 = vector.extract_strided_slice %6 {offsets = [56, 0], sizes = [8, 512], strides = [1, 1]} : vector<64x512xf32> to vector<8x512xf32>
    %371 = arith.addf %370, %346 : vector<8x512xf32>
    %372 = vector.extract_strided_slice %371 {offsets = [0, 0], sizes = [8, 256], strides = [1, 1]} : vector<8x512xf32> to vector<8x256xf32>
    %373 = arith.negf %372 : vector<8x256xf32>
    %374 = math.exp %373 : vector<8x256xf32>
    %cst_46 = arith.constant 1.000000e+00 : f32
    %375 = vector.broadcast %cst_46 : f32 to vector<8x256xf32>
    %376 = arith.addf %375, %374 : vector<8x256xf32>
    %377 = arith.divf %375, %376 : vector<8x256xf32>
    %378 = vector.extract_strided_slice %377 {offsets = [0, 0], sizes = [8, 128], strides = [1, 1]} : vector<8x256xf32> to vector<8x128xf32>
    %379 = vector.extract_strided_slice %377 {offsets = [0, 128], sizes = [8, 128], strides = [1, 1]} : vector<8x256xf32> to vector<8x128xf32>
    %380 = vector.extract_strided_slice %371 {offsets = [0, 256], sizes = [8, 128], strides = [1, 1]} : vector<8x512xf32> to vector<8x128xf32>
    %381 = math.tanh %380 : vector<8x128xf32>
    %382 = vector.extract_strided_slice %371 {offsets = [0, 384], sizes = [8, 128], strides = [1, 1]} : vector<8x512xf32> to vector<8x128xf32>
    %383 = arith.negf %382 : vector<8x128xf32>
    %384 = math.exp %383 : vector<8x128xf32>
    %cst_47 = arith.constant 1.000000e+00 : f32
    %385 = vector.broadcast %cst_47 : f32 to vector<8x128xf32>
    %386 = arith.addf %385, %384 : vector<8x128xf32>
    %387 = arith.divf %385, %386 : vector<8x128xf32>
    %388 = arith.mulf %379, %339 : vector<8x128xf32>
    %389 = arith.mulf %378, %381 : vector<8x128xf32>
    %390 = arith.addf %388, %389 : vector<8x128xf32>
    %391 = math.tanh %390 : vector<8x128xf32>
    %392 = arith.mulf %387, %391 : vector<8x128xf32>
    %393 = arith.truncf %392 : vector<8x128xf32> to vector<8x128xbf16>
    %394 = arith.truncf %369 : vector<8x128xf32> to vector<8x128xbf16>
    %395 = tpu.concatenate %393, %394 in 1 : vector<8x128xbf16>, vector<8x128xbf16> -> vector<8x256xbf16>
    %cst_48 = arith.constant dense<0.000000e+00> : vector<8x1024xf32>
    %396 = tpu.matmul %395, %7, %cst_48 {dimension_numbers = #tpu.dot_dimension_numbers<[1], [0], [0], [1], [0, 0, 1, 1], [], []>} : vector<8x256xbf16>, vector<256x1024xbf16>, vector<8x1024xf32> -> vector<8x1024xf32>
    %397 = vector.extract_strided_slice %396 {offsets = [0, 512], sizes = [8, 512], strides = [1, 1]} : vector<8x1024xf32> to vector<8x512xf32>
    %398 = arith.addf %397, %10 : vector<8x512xf32>
    %399 = vector.extract_strided_slice %398 {offsets = [0, 0], sizes = [8, 256], strides = [1, 1]} : vector<8x512xf32> to vector<8x256xf32>
    %400 = arith.negf %399 : vector<8x256xf32>
    %401 = math.exp %400 : vector<8x256xf32>
    %cst_49 = arith.constant 1.000000e+00 : f32
    %402 = vector.broadcast %cst_49 : f32 to vector<8x256xf32>
    %403 = arith.addf %402, %401 : vector<8x256xf32>
    %404 = arith.divf %402, %403 : vector<8x256xf32>
    %405 = vector.extract_strided_slice %404 {offsets = [0, 0], sizes = [8, 128], strides = [1, 1]} : vector<8x256xf32> to vector<8x128xf32>
    %406 = vector.extract_strided_slice %404 {offsets = [0, 128], sizes = [8, 128], strides = [1, 1]} : vector<8x256xf32> to vector<8x128xf32>
    %407 = vector.extract_strided_slice %398 {offsets = [0, 256], sizes = [8, 128], strides = [1, 1]} : vector<8x512xf32> to vector<8x128xf32>
    %408 = math.tanh %407 : vector<8x128xf32>
    %409 = vector.extract_strided_slice %398 {offsets = [0, 384], sizes = [8, 128], strides = [1, 1]} : vector<8x512xf32> to vector<8x128xf32>
    %410 = arith.negf %409 : vector<8x128xf32>
    %411 = math.exp %410 : vector<8x128xf32>
    %cst_50 = arith.constant 1.000000e+00 : f32
    %412 = vector.broadcast %cst_50 : f32 to vector<8x128xf32>
    %413 = arith.addf %412, %411 : vector<8x128xf32>
    %414 = arith.divf %412, %413 : vector<8x128xf32>
    %415 = arith.mulf %406, %367 : vector<8x128xf32>
    %416 = arith.mulf %405, %408 : vector<8x128xf32>
    %417 = arith.addf %415, %416 : vector<8x128xf32>
    %418 = math.tanh %417 : vector<8x128xf32>
    %419 = arith.mulf %414, %418 : vector<8x128xf32>
    %420 = arith.truncf %419 : vector<8x128xf32> to vector<8x128xbf16>
    %c0_51 = arith.constant 0 : index
    %c0_52 = arith.constant 0 : index
    %421 = vector.load %arg5[%c0_51, %c0_52] : memref<128x12xbf16, #tpu.memory_space<vmem>>, vector<128x12xbf16>
    %cst_53 = arith.constant dense<0.000000e+00> : vector<8x12xf32>
    %422 = tpu.matmul %420, %421, %cst_53 {dimension_numbers = #tpu.dot_dimension_numbers<[1], [0], [0], [1], [0, 0, 1, 1], [], []>} : vector<8x128xbf16>, vector<128x12xbf16>, vector<8x12xf32> -> vector<8x12xf32>
    %c0_54 = arith.constant 0 : index
    %c0_55 = arith.constant 0 : index
    %423 = vector.load %arg6[%c0_54, %c0_55] : memref<1x12xf32, #tpu.memory_space<vmem>>, vector<1x12xf32>
    %424 = vector.broadcast %423 : vector<1x12xf32> to vector<8x12xf32>
    %425 = arith.addf %422, %424 : vector<8x12xf32>
    %c0_56 = arith.constant 0 : index
    %c0_57 = arith.constant 0 : index
    %426 = vector.load %arg7[%c0_56, %c0_57] : memref<8x12xf32, #tpu.memory_space<vmem>>, vector<8x12xf32>
    tpu.vector_store %arg7[%c0_56, %c0_57], %425 {strides = array<i32>} : memref<8x12xf32, #tpu.memory_space<vmem>>, vector<8x12xf32>,
    return
  }
}

</mosaic_0001>

<llo_original>
// kernel: tpu_custom_call.1
$region0: #{tpu_custom_call.1}
  #allocation0 [shape = 'u32[]', space=smem, size = 0x4, offset = 0x4, fixed_abs, tag = 'smem constant byte address 0x4 - core index']
  #allocation1 [shape = 'u32[144,128]{1,0:T(1,128)}', space=vmem, size = 0x12000, scoped, tag = 'internal scratch']
  %s0 = inlined_call_operand.vmem [shape: f32[64,12], index: 0, kind: input, shape index: {}]
  %s1 = inlined_call_operand.vmem [shape: bf16[12,512], index: 1, kind: input, shape index: {}]
  %s2 = inlined_call_operand.vmem [shape: f32[1,512], index: 2, kind: input, shape index: {}]
  %s3 = inlined_call_operand.hbm [shape: bf16[256,1024], index: 3, kind: input, shape index: {}]
  %s4 = inlined_call_operand.vmem [shape: f32[1,512], index: 4, kind: input, shape index: {}]
  %s5 = inlined_call_operand.vmem [shape: bf16[128,12], index: 5, kind: input, shape index: {}]
  %s6 = inlined_call_operand.vmem [shape: f32[1,12], index: 6, kind: input, shape index: {}]
  %s7 = inlined_call_operand.hbm [shape: f32[8,12], index: 7, kind: output, shape index: {}]
  %s8 = sld [smem:[#allocation0]]
  $region42: #{tpu_custom_call.1} parent=0
    _
  %s10 = ssub.s32 1, %s8
  %s11 = scalar_select 0, %s10, %s8
  $region1: #{tpu_custom_call.1} parent=0
    #allocation2 [shape = 'u8[524288]{0}', space=vmem, size = 0x80000, scoped, tag = 'input window, operand 3, single buffered']
    #allocation3 [shape = 's32[1]{0}', space=sflag, size = 0x4, scoped, tag = 'scoped memory for tpu_custom_call.1']
    #allocation4 [shape = 's32[1]{0}', space=sflag, size = 0x4, scoped, tag = 'scoped memory for tpu_custom_call.1']
    #allocation5 [shape = 'u8[4096]{0}', space=vmem, size = 0x1000, scoped, tag = 'output window, operand 0, single buffered']
    %12 = vsyncpa [#allocation3], 0
    %13 = vsyncpa [#allocation4], 0
    // Predicated region
    $region2: #{tpu_custom_call.1} parent=1 // pred_check
      _
    $region3: #{tpu_custom_call.1} parent=1 // pred_check_branch
      %15 = sbr.rel (0) target = $region5
    $region4: #{tpu_custom_call.1} parent=1 // pred_region
      _
    $region5: #{tpu_custom_call.1} parent=1 // pred_fallthru
      _
    // Predicated region
    $region6: #{tpu_custom_call.1} parent=1 // pred_check
      _
    $region7: #{tpu_custom_call.1} parent=1 // pred_check_branch
      %17 = sbr.rel (0) target = $region9
    $region8: #{tpu_custom_call.1} parent=1 // pred_region
      _
    $region9: #{tpu_custom_call.1} parent=1 // pred_fallthru
      _
    // Predicated region
    $region10: #{tpu_custom_call.1} parent=1 // pred_check
      _
    $region11: #{tpu_custom_call.1} parent=1 // pred_check_branch
      %19 = sbr.rel (0) target = $region13
    $region12: #{tpu_custom_call.1} parent=1 // pred_region
      _
    $region13: #{tpu_custom_call.1} parent=1 // pred_fallthru
      _
    // Predicated region
    $region14: #{tpu_custom_call.1} parent=1 // pred_check
      _
    $region15: #{tpu_custom_call.1} parent=1 // pred_check_branch
      %21 = sbr.rel (0) target = $region17
    $region16: #{tpu_custom_call.1} parent=1 // pred_region
      %s23 = ssub.s32 16384, 16384
      %24 = vsyncadd [#allocation3], %s23
      %s25 = sshll.u32 [#allocation2], 4
      %s26 = int_to_ptr.vmem [resolvable:$true] %s25
      %31 = dma.hbm_to_vmem [thread:$0]  %s3, 16384, %s26, [#allocation3], 512, 512, 32
    $region17: #{tpu_custom_call.1} parent=1 // pred_fallthru
      _
    // Predicated region
    $region18: #{tpu_custom_call.1} parent=1 // pred_check
      _
    $region19: #{tpu_custom_call.1} parent=1 // pred_check_branch
      %33 = sbr.rel (0) target = $region21
    $region20: #{tpu_custom_call.1} parent=1 // pred_region
      _
    $region21: #{tpu_custom_call.1} parent=1 // pred_fallthru
      _
    // Predicated region
    $region22: #{tpu_custom_call.1} parent=1 // pred_check
      _
    $region23: #{tpu_custom_call.1} parent=1 // pred_check_branch
      %35 = sbr.rel (0) target = $region25
    $region24: #{tpu_custom_call.1} parent=1 // pred_region
      _
    $region25: #{tpu_custom_call.1} parent=1 // pred_fallthru
      _
    // Predicated region
    $region26: #{tpu_custom_call.1} parent=1 // pred_check
      _
    $region27: #{tpu_custom_call.1} parent=1 // pred_check_branch
      %37 = sbr.rel (0) target = $region29
    $region28: #{tpu_custom_call.1} parent=1 // pred_region
      _
    $region29: #{tpu_custom_call.1} parent=1 // pred_fallthru
      _
    // Predicated region
    $region30: #{tpu_custom_call.1} parent=1 // pred_check
      _
    $region31: #{tpu_custom_call.1} parent=1 // pred_check_branch
      %39 = sbr.rel (0) target = $region33
    $region32: #{tpu_custom_call.1} parent=1 // pred_region
      %40 = dma.done [#allocation3], 16384
    $region33: #{tpu_custom_call.1} parent=1 // pred_fallthru
      _
    %v42 = vld [vmem:[%s0] sm:$0xff]
    %v43 = vld [vmem:[%s0 + $0x8] sm:$0xff]
    %v44 = vld [vmem:[%s0 + $0x10] sm:$0xff]
    %v45 = vld [vmem:[%s0 + $0x18] sm:$0xff]
    %v46 = vld [vmem:[%s0 + $0x20] sm:$0xff]
    %v47 = vld [vmem:[%s0 + $0x28] sm:$0xff]
    %v48 = vld [vmem:[%s0 + $0x30] sm:$0xff]
    %v49 = vld [vmem:[%s0 + $0x38] sm:$0xff]
    %v50 = vpack.c.bf16 %v43, %v42
    %v51 = vpack.c.bf16 %v45, %v44
    %v52 = vpack.c.bf16 %v47, %v46
    %v53 = vpack.c.bf16 %v49, %v48
    %v54 = vld [vmem:[%s1] sm:$0xff]
    %v55 = vld [vmem:[%s1 + $0x8] sm:$0xff]
    %v56 = vld [vmem:[%s1 + $0x10] sm:$0x33]
    %v57 = vld [vmem:[%s1 + $0x18] sm:$0x33]
    %v58 = vld [vmem:[%s2] sm:$0xf]
    %v60 = vlaneseq
    %v61 = vshrl.u32 %v60, 7
    %v62 = vsub.s32 0, %v61
    %v63 = vrot.slane %v58, %v62
    %v64 = vlaneseq
    %v65 = vshrl.u32 %v64, 7
    %v66 = vsub.s32 1, %v65
    %v67 = vrot.slane %v58, %v66
    %v68 = vlaneseq
    %v69 = vshrl.u32 %v68, 7
    %v70 = vsub.s32 2, %v69
    %v71 = vrot.slane %v58, %v70
    %v72 = vlaneseq
    %v73 = vshrl.u32 %v72, 7
    %v74 = vsub.s32 3, %v73
    %v75 = vrot.slane %v58, %v74
    %v84 = vunpack.c.l.b16 %v54
    %v85 = vunpack.c.h.b16 %v54
    %v86 = vunpack.c.l.b16 %v55
    %v87 = vunpack.c.h.b16 %v55
    %v88 = vunpack.c.l.b16 %v56
    %v89 = vunpack.c.h.b16 %v56
    %v90 = vunpack.c.l.b16 %v57
    %v91 = vunpack.c.h.b16 %v57
    %v92 = vpack.c.b16 %v88, %v84
    %v93 = vpack.c.b16 %v89, %v85
    %v94 = vpack.c.b16 %v90, %v86
    %v95 = vpack.c.b16 %v91, %v87
    %vm96 = vcmask 97280
    %v98 = vsel %vm96, %v50, 0
    %v101 = vsel %vm96, %v51, 0
    %v104 = vsel %vm96, %v52, 0
    %v107 = vsel %vm96, %v53, 0
    %vm109 = vcmask 1045504
    %v111 = vsel %vm109, %v92, 0
    %v114 = vsel %vm109, %v93, 0
    %v117 = vsel %vm109, %v94, 0
    %v120 = vsel %vm109, %v95, 0
    %122 = vmatprep.subr.bf16.mxu0 0
    %123 = vmatpush1.bf16.msra.mxu0 0
    %124 = vmatprep.subr.bf16.mxu0 0
    %125 = vmatpush1.bf16.msra.mxu0 0
    %126 = vmatprep.subr.bf16.mxu0 0
    %127 = vmatpush1.bf16.msra.mxu0 0
    %128 = vmatprep.subr.bf16.mxu0 0
    %129 = vmatpush1.bf16.msra.mxu0 0
    %130 = vmatprep.subr.bf16.mxu0 0
    %131 = vmatpush1.bf16.msra.mxu0 0
    %132 = vmatprep.subr.bf16.mxu0 0
    %133 = vmatpush1.bf16.msra.mxu0 0
    %134 = vmatprep.subr.bf16.mxu0 0
    %135 = vmatpush1.bf16.msra.mxu0 0
    %136 = vmatprep.subr.bf16.mxu0 %v114
    %137 = vmatpush1.bf16.msra.mxu0 %v111
    %138 = vmatprep.subr.bf16.mxu0 0
    %139 = vmatpush2.bf16.msra.mxu0 0
    %140 = vmatprep.subr.bf16.mxu0 0
    %141 = vmatpush2.bf16.msra.mxu0 0
    %142 = vmatprep.subr.bf16.mxu0 0
    %143 = vmatpush2.bf16.msra.mxu0 0
    %144 = vmatprep.subr.bf16.mxu0 0
    %145 = vmatpush2.bf16.msra.mxu0 0
    %146 = vmatprep.subr.bf16.mxu0 0
    %147 = vmatpush2.bf16.msra.mxu0 0
    %148 = vmatprep.subr.bf16.mxu0 0
    %149 = vmatpush2.bf16.msra.mxu0 0
    %150 = vmatprep.subr.bf16.mxu0 0
    %151 = vmatpush2.bf16.msra.mxu0 0
    %152 = vmatprep.subr.bf16.mxu0 0
    %153 = vmatpush2.bf16.msra.mxu0 0
    %154 = vmatprep.mubr.bf16.mxu0 0
    %155 = vmatmul.mubr.bf16.gmra.mxu0 %v98
    %v156 = vpop.f32.mrf.mxu0
    %v157 = vadd.f32 %v63, %v156
    %v158 = vpop.f32.mrf.mxu0
    %v159 = vadd.f32 %v67, %v158
    %v160 = vpop.f32.mrf.mxu0
    %v161 = vadd.f32 %v63, %v160
    %v162 = vpop.f32.mrf.mxu0
    %v163 = vadd.f32 %v67, %v162
    %164 = vmatprep.mubr.bf16.mxu0 0
    %165 = vmatmul.mubr.bf16.gmra.mxu0 %v101
    %v166 = vpop.f32.mrf.mxu0
    %v167 = vadd.f32 %v63, %v166
    %v168 = vpop.f32.mrf.mxu0
    %v169 = vadd.f32 %v67, %v168
    %v170 = vpop.f32.mrf.mxu0
    %v171 = vadd.f32 %v63, %v170
    %v172 = vpop.f32.mrf.mxu0
    %v173 = vadd.f32 %v67, %v172
    %174 = vmatprep.mubr.bf16.mxu0 0
    %175 = vmatmul.mubr.bf16.gmra.mxu0 %v104
    %v176 = vpop.f32.mrf.mxu0
    %v177 = vadd.f32 %v63, %v176
    %v178 = vpop.f32.mrf.mxu0
    %v179 = vadd.f32 %v67, %v178
    %v180 = vpop.f32.mrf.mxu0
    %v181 = vadd.f32 %v63, %v180
    %v182 = vpop.f32.mrf.mxu0
    %v183 = vadd.f32 %v67, %v182
    %184 = vmatprep.mubr.bf16.mxu0 0
    %185 = vmatmul.mubr.bf16.gmra.mxu0 %v107
    %v186 = vpop.f32.mrf.mxu0
    %v187 = vadd.f32 %v63, %v186
    %v188 = vpop.f32.mrf.mxu0
    %v189 = vadd.f32 %v67, %v188
    %v190 = vpop.f32.mrf.mxu0
    %v191 = vadd.f32 %v63, %v190
    %v192 = vpop.f32.mrf.mxu0
    %v193 = vadd.f32 %v67, %v192
    %194 = vdwg.mxu0
    %195 = vmatprep.subr.bf16.mxu0 0
    %196 = vmatpush1.bf16.msra.mxu0 0
    %197 = vmatprep.subr.bf16.mxu0 0
    %198 = vmatpush1.bf16.msra.mxu0 0
    %199 = vmatprep.subr.bf16.mxu0 0
    %200 = vmatpush1.bf16.msra.mxu0 0
    %201 = vmatprep.subr.bf16.mxu0 0
    %202 = vmatpush1.bf16.msra.mxu0 0
    %203 = vmatprep.subr.bf16.mxu0 0
    %204 = vmatpush1.bf16.msra.mxu0 0
    %205 = vmatprep.subr.bf16.mxu0 0
    %206 = vmatpush1.bf16.msra.mxu0 0
    %207 = vmatprep.subr.bf16.mxu0 0
    %208 = vmatpush1.bf16.msra.mxu0 0
    %209 = vmatprep.subr.bf16.mxu0 %v120
    %210 = vmatpush1.bf16.msra.mxu0 %v117
    %211 = vmatprep.subr.bf16.mxu0 0
    %212 = vmatpush2.bf16.msra.mxu0 0
    %213 = vmatprep.subr.bf16.mxu0 0
    %214 = vmatpush2.bf16.msra.mxu0 0
    %215 = vmatprep.subr.bf16.mxu0 0
    %216 = vmatpush2.bf16.msra.mxu0 0
    %217 = vmatprep.subr.bf16.mxu0 0
    %218 = vmatpush2.bf16.msra.mxu0 0
    %219 = vmatprep.subr.bf16.mxu0 0
    %220 = vmatpush2.bf16.msra.mxu0 0
    %221 = vmatprep.subr.bf16.mxu0 0
    %222 = vmatpush2.bf16.msra.mxu0 0
    %223 = vmatprep.subr.bf16.mxu0 0
    %224 = vmatpush2.bf16.msra.mxu0 0
    %225 = vmatprep.subr.bf16.mxu0 0
    %226 = vmatpush2.bf16.msra.mxu0 0
    %227 = vmatprep.mubr.bf16.mxu0 0
    %228 = vmatmul.mubr.bf16.gmra.mxu0 %v98
    %v229 = vpop.f32.mrf.mxu0
    %v230 = vadd.f32 %v71, %v229
    %v231 = vpop.f32.mrf.mxu0
    %v232 = vadd.f32 %v75, %v231
    %v233 = vpop.f32.mrf.mxu0
    %v234 = vadd.f32 %v71, %v233
    %v235 = vpop.f32.mrf.mxu0
    %v236 = vadd.f32 %v75, %v235
    %237 = vmatprep.mubr.bf16.mxu0 0
    %238 = vmatmul.mubr.bf16.gmra.mxu0 %v101
    %v239 = vpop.f32.mrf.mxu0
    %v240 = vadd.f32 %v71, %v239
    %v241 = vpop.f32.mrf.mxu0
    %v242 = vadd.f32 %v75, %v241
    %v243 = vpop.f32.mrf.mxu0
    %v244 = vadd.f32 %v71, %v243
    %v245 = vpop.f32.mrf.mxu0
    %v246 = vadd.f32 %v75, %v245
    %247 = vmatprep.mubr.bf16.mxu0 0
    %248 = vmatmul.mubr.bf16.gmra.mxu0 %v104
    %v249 = vpop.f32.mrf.mxu0
    %v250 = vadd.f32 %v71, %v249
    %v251 = vpop.f32.mrf.mxu0
    %v252 = vadd.f32 %v75, %v251
    %v253 = vpop.f32.mrf.mxu0
    %v254 = vadd.f32 %v71, %v253
    %v255 = vpop.f32.mrf.mxu0
    %v256 = vadd.f32 %v75, %v255
    %257 = vmatprep.mubr.bf16.mxu0 0
    %258 = vmatmul.mubr.bf16.gmra.mxu0 %v107
    %v259 = vpop.f32.mrf.mxu0
    %v260 = vadd.f32 %v71, %v259
    %v261 = vpop.f32.mrf.mxu0
    %v262 = vadd.f32 %v75, %v261
    %v263 = vpop.f32.mrf.mxu0
    %v264 = vadd.f32 %v71, %v263
    %v265 = vpop.f32.mrf.mxu0
    %v266 = vadd.f32 %v75, %v265
    %267 = vdwg.mxu0
    %v268 = vld [vmem:[#allocation2] sm:$0xff]
    %v269 = vld [vmem:[#allocation2 + $0x8] sm:$0xff]
    %v270 = vld [vmem:[#allocation2 + $0x10] sm:$0xff]
    %v271 = vld [vmem:[#allocation2 + $0x18] sm:$0xff]
    %v272 = vld [vmem:[#allocation2 + $0x20] sm:$0xff]
    %v273 = vld [vmem:[#allocation2 + $0x28] sm:$0xff]
    %v274 = vld [vmem:[#allocation2 + $0x30] sm:$0xff]
    %v275 = vld [vmem:[#allocation2 + $0x38] sm:$0xff]
    %v276 = vld [vmem:[#allocation2 + $0x40] sm:$0xff]
    %v277 = vld [vmem:[#allocation2 + $0x48] sm:$0xff]
    %v278 = vld [vmem:[#allocation2 + $0x50] sm:$0xff]
    %v279 = vld [vmem:[#allocation2 + $0x58] sm:$0xff]
    %v280 = vld [vmem:[#allocation2 + $0x60] sm:$0xff]
    %v281 = vld [vmem:[#allocation2 + $0x68] sm:$0xff]
    %v282 = vld [vmem:[#allocation2 + $0x70] sm:$0xff]
    %v283 = vld [vmem:[#allocation2 + $0x78] sm:$0xff]
    %v284 = vld [vmem:[#allocation2 + $0x80] sm:$0xff]
    %v285 = vld [vmem:[#allocation2 + $0x88] sm:$0xff]
    %v286 = vld [vmem:[#allocation2 + $0x90] sm:$0xff]
    %v287 = vld [vmem:[#allocation2 + $0x98] sm:$0xff]
    %v288 = vld [vmem:[#allocation2 + $0xa0] sm:$0xff]
    %v289 = vld [vmem:[#allocation2 + $0xa8] sm:$0xff]
    %v290 = vld [vmem:[#allocation2 + $0xb0] sm:$0xff]
    %v291 = vld [vmem:[#allocation2 + $0xb8] sm:$0xff]
    %v292 = vld [vmem:[#allocation2 + $0xc0] sm:$0xff]
    %v293 = vld [vmem:[#allocation2 + $0xc8] sm:$0xff]
    %v294 = vld [vmem:[#allocation2 + $0xd0] sm:$0xff]
    %v295 = vld [vmem:[#allocation2 + $0xd8] sm:$0xff]
    %v296 = vld [vmem:[#allocation2 + $0xe0] sm:$0xff]
    %v297 = vld [vmem:[#allocation2 + $0xe8] sm:$0xff]
    %v298 = vld [vmem:[#allocation2 + $0xf0] sm:$0xff]
    %v299 = vld [vmem:[#allocation2 + $0xf8] sm:$0xff]
    %v300 = vld [vmem:[#allocation2 + $0x100] sm:$0xff]
    %v301 = vld [vmem:[#allocation2 + $0x108] sm:$0xff]
    %v302 = vld [vmem:[#allocation2 + $0x110] sm:$0xff]
    %v303 = vld [vmem:[#allocation2 + $0x118] sm:$0xff]
    %v304 = vld [vmem:[#allocation2 + $0x120] sm:$0xff]
    %v305 = vld [vmem:[#allocation2 + $0x128] sm:$0xff]
    %v306 = vld [vmem:[#allocation2 + $0x130] sm:$0xff]
    %v307 = vld [vmem:[#allocation2 + $0x138] sm:$0xff]
    %v308 = vld [vmem:[#allocation2 + $0x140] sm:$0xff]
    %v309 = vld [vmem:[#allocation2 + $0x148] sm:$0xff]
    %v310 = vld [vmem:[#allocation2 + $0x150] sm:$0xff]
    %v311 = vld [vmem:[#allocation2 + $0x158] sm:$0xff]
    %v312 = vld [vmem:[#allocation2 + $0x160] sm:$0xff]
    %v313 = vld [vmem:[#allocation2 + $0x168] sm:$0xff]
    %v314 = vld [vmem:[#allocation2 + $0x170] sm:$0xff]
    %v315 = vld [vmem:[#allocation2 + $0x178] sm:$0xff]
    %v316 = vld [vmem:[#allocation2 + $0x180] sm:$0xff]
    %v317 = vld [vmem:[#allocation2 + $0x188] sm:$0xff]
    %v318 = vld [vmem:[#allocation2 + $0x190] sm:$0xff]
    %v319 = vld [vmem:[#allocation2 + $0x198] sm:$0xff]
    %v320 = vld [vmem:[#allocation2 + $0x1a0] sm:$0xff]
    %v321 = vld [vmem:[#allocation2 + $0x1a8] sm:$0xff]
    %v322 = vld [vmem:[#allocation2 + $0x1b0] sm:$0xff]
    %v323 = vld [vmem:[#allocation2 + $0x1b8] sm:$0xff]
    %v324 = vld [vmem:[#allocation2 + $0x1c0] sm:$0xff]
    %v325 = vld [vmem:[#allocation2 + $0x1c8] sm:$0xff]
    %v326 = vld [vmem:[#allocation2 + $0x1d0] sm:$0xff]
    %v327 = vld [vmem:[#allocation2 + $0x1d8] sm:$0xff]
    %v328 = vld [vmem:[#allocation2 + $0x1e0] sm:$0xff]
    %v329 = vld [vmem:[#allocation2 + $0x1e8] sm:$0xff]
    %v330 = vld [vmem:[#allocation2 + $0x1f0] sm:$0xff]
    %v331 = vld [vmem:[#allocation2 + $0x1f8] sm:$0xff]
    %v332 = vld [vmem:[#allocation2 + $0x200] sm:$0xff]
    %v333 = vld [vmem:[#allocation2 + $0x208] sm:$0xff]
    %v334 = vld [vmem:[#allocation2 + $0x210] sm:$0xff]
    %v335 = vld [vmem:[#allocation2 + $0x218] sm:$0xff]
    %v336 = vld [vmem:[#allocation2 + $0x220] sm:$0xff]
    %v337 = vld [vmem:[#allocation2 + $0x228] sm:$0xff]
    %v338 = vld [vmem:[#allocation2 + $0x230] sm:$0xff]
    %v339 = vld [vmem:[#allocation2 + $0x238] sm:$0xff]
    %v340 = vld [vmem:[#allocation2 + $0x240] sm:$0xff]
    %v341 = vld [vmem:[#allocation2 + $0x248] sm:$0xff]
    %v342 = vld [vmem:[#allocation2 + $0x250] sm:$0xff]
    %v343 = vld [vmem:[#allocation2 + $0x258] sm:$0xff]
    %v344 = vld [vmem:[#allocation2 + $0x260] sm:$0xff]
    %v345 = vld [vmem:[#allocation2 + $0x268] sm:$0xff]
    %v346 = vld [vmem:[#allocation2 + $0x270] sm:$0xff]
    %v347 = vld [vmem:[#allocation2 + $0x278] sm:$0xff]
    %v348 = vld [vmem:[#allocation2 + $0x280] sm:$0xff]
    %v349 = vld [vmem:[#allocation2 + $0x288] sm:$0xff]
    %v350 = vld [vmem:[#allocation2 + $0x290] sm:$0xff]
    %v351 = vld [vmem:[#allocation2 + $0x298] sm:$0xff]
    %v352 = vld [vmem:[#allocation2 + $0x2a0] sm:$0xff]
    %v353 = vld [vmem:[#allocation2 + $0x2a8] sm:$0xff]
    %v354 = vld [vmem:[#allocation2 + $0x2b0] sm:$0xff]
    %v355 = vld [vmem:[#allocation2 + $0x2b8] sm:$0xff]
    %v356 = vld [vmem:[#allocation2 + $0x2c0] sm:$0xff]
    %v357 = vld [vmem:[#allocation2 + $0x2c8] sm:$0xff]
    %v358 = vld [vmem:[#allocation2 + $0x2d0] sm:$0xff]
    %v359 = vld [vmem:[#allocation2 + $0x2d8] sm:$0xff]
    %v360 = vld [vmem:[#allocation2 + $0x2e0] sm:$0xff]
    %v361 = vld [vmem:[#allocation2 + $0x2e8] sm:$0xff]
    %v362 = vld [vmem:[#allocation2 + $0x2f0] sm:$0xff]
    %v363 = vld [vmem:[#allocation2 + $0x2f8] sm:$0xff]
    %v364 = vld [vmem:[#allocation2 + $0x300] sm:$0xff]
    %v365 = vld [vmem:[#allocation2 + $0x308] sm:$0xff]
    %v366 = vld [vmem:[#allocation2 + $0x310] sm:$0xff]
    %v367 = vld [vmem:[#allocation2 + $0x318] sm:$0xff]
    %v368 = vld [vmem:[#allocation2 + $0x320] sm:$0xff]
    %v369 = vld [vmem:[#allocation2 + $0x328] sm:$0xff]
    %v370 = vld [vmem:[#allocation2 + $0x330] sm:$0xff]
    %v371 = vld [vmem:[#allocation2 + $0x338] sm:$0xff]
    %v372 = vld [vmem:[#allocation2 + $0x340] sm:$0xff]
    %v373 = vld [vmem:[#allocation2 + $0x348] sm:$0xff]
    %v374 = vld [vmem:[#allocation2 + $0x350] sm:$0xff]
    %v375 = vld [vmem:[#allocation2 + $0x358] sm:$0xff]
    %v376 = vld [vmem:[#allocation2 + $0x360] sm:$0xff]
    %v377 = vld [vmem:[#allocation2 + $0x368] sm:$0xff]
    %v378 = vld [vmem:[#allocation2 + $0x370] sm:$0xff]
    %v379 = vld [vmem:[#allocation2 + $0x378] sm:$0xff]
    %v380 = vld [vmem:[#allocation2 + $0x380] sm:$0xff]
    %v381 = vld [vmem:[#allocation2 + $0x388] sm:$0xff]
    %v382 = vld [vmem:[#allocation2 + $0x390] sm:$0xff]
    %v383 = vld [vmem:[#allocation2 + $0x398] sm:$0xff]
    %v384 = vld [vmem:[#allocation2 + $0x3a0] sm:$0xff]
    %v385 = vld [vmem:[#allocation2 + $0x3a8] sm:$0xff]
    %v386 = vld [vmem:[#allocation2 + $0x3b0] sm:$0xff]
    %v387 = vld [vmem:[#allocation2 + $0x3b8] sm:$0xff]
    %v388 = vld [vmem:[#allocation2 + $0x3c0] sm:$0xff]
    %v389 = vld [vmem:[#allocation2 + $0x3c8] sm:$0xff]
    %v390 = vld [vmem:[#allocation2 + $0x3d0] sm:$0xff]
    %v391 = vld [vmem:[#allocation2 + $0x3d8] sm:$0xff]
    %v392 = vld [vmem:[#allocation2 + $0x3e0] sm:$0xff]
    %v393 = vld [vmem:[#allocation2 + $0x3e8] sm:$0xff]
    %v394 = vld [vmem:[#allocation2 + $0x3f0] sm:$0xff]
    %v395 = vld [vmem:[#allocation2 + $0x3f8] sm:$0xff]
    %v396 = vld [vmem:[%s4] sm:$0xf]
    %v398 = vlaneseq
    %v399 = vshrl.u32 %v398, 7
    %v400 = vsub.s32 0, %v399
    %v401 = vrot.slane %v396, %v400
    %v402 = vlaneseq
    %v403 = vshrl.u32 %v402, 7
    %v404 = vsub.s32 1, %v403
    %v405 = vrot.slane %v396, %v404
    %v406 = vlaneseq
    %v407 = vshrl.u32 %v406, 7
    %v408 = vsub.s32 2, %v407
    %v409 = vrot.slane %v396, %v408
    %v410 = vlaneseq
    %v411 = vshrl.u32 %v410, 7
    %v412 = vsub.s32 3, %v411
    %v413 = vrot.slane %v396, %v412
    %v418 = vadd.f32 %v157, 0.0
    %v419 = vadd.f32 %v159, 0.0
    %v420 = vadd.f32 %v230, 0.0
    %v421 = vadd.f32 %v232, 0.0
    %v422 = vxor.u32 %v418, 2147483648
    %v423 = vxor.u32 %v419, 2147483648
    %v424 = vmul.f32 %v422, 1.442695
    %v425 = vpow.pop %v424
    %v426 = vmul.f32 %v423, 1.442695
    %v427 = vpow.pop %v426
    %v428 = vadd.f32 %v425, 1.0
    %v429 = vadd.f32 %v427, 1.0
    %v430 = vrcp.pop %v428
    %v431 = vmul.f32 1.0, %v430
    %v432 = vrcp.pop %v429
    %v433 = vmul.f32 1.0, %v432
    %v434 = vtanh.pop %v420
    %v435 = vxor.u32 %v421, 2147483648
    %v436 = vmul.f32 %v435, 1.442695
    %v437 = vpow.pop %v436
    %v438 = vadd.f32 %v437, 1.0
    %v439 = vrcp.pop %v438
    %v440 = vmul.f32 1.0, %v439
    %v441 = vmul.f32 %v433, 0.0
    %v442 = vmul.f32 %v431, %v434
    %v443 = vadd.f32 %v441, %v442
    %v444 = vtanh.pop %v443
    %v445 = vmul.f32 %v440, %v444
    %v446 = vpack.c.bf16 %v445, %v445
    %v575 = vunpack.c.l.b16 %v268
    %v576 = vunpack.c.h.b16 %v268
    %v577 = vunpack.c.l.b16 %v269
    %v578 = vunpack.c.h.b16 %v269
    %v579 = vunpack.c.l.b16 %v270
    %v580 = vunpack.c.h.b16 %v270
    %v581 = vunpack.c.l.b16 %v271
    %v582 = vunpack.c.h.b16 %v271
    %v583 = vunpack.c.l.b16 %v272
    %v584 = vunpack.c.h.b16 %v272
    %v585 = vunpack.c.l.b16 %v273
    %v586 = vunpack.c.h.b16 %v273
    %v587 = vunpack.c.l.b16 %v274
    %v588 = vunpack.c.h.b16 %v274
    %v589 = vunpack.c.l.b16 %v275
    %v590 = vunpack.c.h.b16 %v275
    %v591 = vunpack.c.l.b16 %v276
    %v592 = vunpack.c.h.b16 %v276
    %v593 = vunpack.c.l.b16 %v277
    %v594 = vunpack.c.h.b16 %v277
    %v595 = vunpack.c.l.b16 %v278
    %v596 = vunpack.c.h.b16 %v278
    %v597 = vunpack.c.l.b16 %v279
    %v598 = vunpack.c.h.b16 %v279
    %v599 = vunpack.c.l.b16 %v280
    %v600 = vunpack.c.h.b16 %v280
    %v601 = vunpack.c.l.b16 %v281
    %v602 = vunpack.c.h.b16 %v281
    %v603 = vunpack.c.l.b16 %v282
    %v604 = vunpack.c.h.b16 %v282
    %v605 = vunpack.c.l.b16 %v283
    %v606 = vunpack.c.h.b16 %v283
    %v607 = vunpack.c.l.b16 %v284
    %v608 = vunpack.c.h.b16 %v284
    %v609 = vunpack.c.l.b16 %v285
    %v610 = vunpack.c.h.b16 %v285
    %v611 = vunpack.c.l.b16 %v286
    %v612 = vunpack.c.h.b16 %v286
    %v613 = vunpack.c.l.b16 %v287
    %v614 = vunpack.c.h.b16 %v287
    %v615 = vunpack.c.l.b16 %v288
    %v616 = vunpack.c.h.b16 %v288
    %v617 = vunpack.c.l.b16 %v289
    %v618 = vunpack.c.h.b16 %v289
    %v619 = vunpack.c.l.b16 %v290
    %v620 = vunpack.c.h.b16 %v290
    %v621 = vunpack.c.l.b16 %v291
    %v622 = vunpack.c.h.b16 %v291
    %v623 = vunpack.c.l.b16 %v292
    %v624 = vunpack.c.h.b16 %v292
    %v625 = vunpack.c.l.b16 %v293
    %v626 = vunpack.c.h.b16 %v293
    %v627 = vunpack.c.l.b16 %v294
    %v628 = vunpack.c.h.b16 %v294
    %v629 = vunpack.c.l.b16 %v295
    %v630 = vunpack.c.h.b16 %v295
    %v631 = vunpack.c.l.b16 %v296
    %v632 = vunpack.c.h.b16 %v296
    %v633 = vunpack.c.l.b16 %v297
    %v634 = vunpack.c.h.b16 %v297
    %v635 = vunpack.c.l.b16 %v298
    %v636 = vunpack.c.h.b16 %v298
    %v637 = vunpack.c.l.b16 %v299
    %v638 = vunpack.c.h.b16 %v299
    %v639 = vunpack.c.l.b16 %v300
    %v640 = vunpack.c.h.b16 %v300
    %v641 = vunpack.c.l.b16 %v301
    %v642 = vunpack.c.h.b16 %v301
    %v643 = vunpack.c.l.b16 %v302
    %v644 = vunpack.c.h.b16 %v302
    %v645 = vunpack.c.l.b16 %v303
    %v646 = vunpack.c.h.b16 %v303
    %v647 = vunpack.c.l.b16 %v304
    %v648 = vunpack.c.h.b16 %v304
    %v649 = vunpack.c.l.b16 %v305
    %v650 = vunpack.c.h.b16 %v305
    %v651 = vunpack.c.l.b16 %v306
    %v652 = vunpack.c.h.b16 %v306
    %v653 = vunpack.c.l.b16 %v307
    %v654 = vunpack.c.h.b16 %v307
    %v655 = vunpack.c.l.b16 %v308
    %v656 = vunpack.c.h.b16 %v308
    %v657 = vunpack.c.l.b16 %v309
    %v658 = vunpack.c.h.b16 %v309
    %v659 = vunpack.c.l.b16 %v310
    %v660 = vunpack.c.h.b16 %v310
    %v661 = vunpack.c.l.b16 %v311
    %v662 = vunpack.c.h.b16 %v311
    %v663 = vunpack.c.l.b16 %v312
    %v664 = vunpack.c.h.b16 %v312
    %v665 = vunpack.c.l.b16 %v313
    %v666 = vunpack.c.h.b16 %v313
    %v667 = vunpack.c.l.b16 %v314
    %v668 = vunpack.c.h.b16 %v314
    %v669 = vunpack.c.l.b16 %v315
    %v670 = vunpack.c.h.b16 %v315
    %v671 = vunpack.c.l.b16 %v316
    %v672 = vunpack.c.h.b16 %v316
    %v673 = vunpack.c.l.b16 %v317
    %v674 = vunpack.c.h.b16 %v317
    %v675 = vunpack.c.l.b16 %v318
    %v676 = vunpack.c.h.b16 %v318
    %v677 = vunpack.c.l.b16 %v319
    %v678 = vunpack.c.h.b16 %v319
    %v679 = vunpack.c.l.b16 %v320
    %v680 = vunpack.c.h.b16 %v320
    %v681 = vunpack.c.l.b16 %v321
    %v682 = vunpack.c.h.b16 %v321
    %v683 = vunpack.c.l.b16 %v322
    %v684 = vunpack.c.h.b16 %v322
    %v685 = vunpack.c.l.b16 %v323
    %v686 = vunpack.c.h.b16 %v323
    %v687 = vunpack.c.l.b16 %v324
    %v688 = vunpack.c.h.b16 %v324
    %v689 = vunpack.c.l.b16 %v325
    %v690 = vunpack.c.h.b16 %v325
    %v691 = vunpack.c.l.b16 %v326
    %v692 = vunpack.c.h.b16 %v326
    %v693 = vunpack.c.l.b16 %v327
    %v694 = vunpack.c.h.b16 %v327
    %v695 = vunpack.c.l.b16 %v328
    %v696 = vunpack.c.h.b16 %v328
    %v697 = vunpack.c.l.b16 %v329
    %v698 = vunpack.c.h.b16 %v329
    %v699 = vunpack.c.l.b16 %v330
    %v700 = vunpack.c.h.b16 %v330
    %v701 = vunpack.c.l.b16 %v331
    %v702 = vunpack.c.h.b16 %v331
    %v703 = vunpack.c.l.b16 %v332
    %v704 = vunpack.c.h.b16 %v332
    %v705 = vunpack.c.l.b16 %v333
    %v706 = vunpack.c.h.b16 %v333
    %v707 = vunpack.c.l.b16 %v334
    %v708 = vunpack.c.h.b16 %v334
    %v709 = vunpack.c.l.b16 %v335
    %v710 = vunpack.c.h.b16 %v335
    %v711 = vunpack.c.l.b16 %v336
    %v712 = vunpack.c.h.b16 %v336
    %v713 = vunpack.c.l.b16 %v337
    %v714 = vunpack.c.h.b16 %v337
    %v715 = vunpack.c.l.b16 %v338
    %v716 = vunpack.c.h.b16 %v338
    %v717 = vunpack.c.l.b16 %v339
    %v718 = vunpack.c.h.b16 %v339
    %v719 = vunpack.c.l.b16 %v340
    %v720 = vunpack.c.h.b16 %v340
    %v721 = vunpack.c.l.b16 %v341
    %v722 = vunpack.c.h.b16 %v341
    %v723 = vunpack.c.l.b16 %v342
    %v724 = vunpack.c.h.b16 %v342
    %v725 = vunpack.c.l.b16 %v343
    %v726 = vunpack.c.h.b16 %v343
    %v727 = vunpack.c.l.b16 %v344
    %v728 = vunpack.c.h.b16 %v344
    %v729 = vunpack.c.l.b16 %v345
    %v730 = vunpack.c.h.b16 %v345
    %v731 = vunpack.c.l.b16 %v346
    %v732 = vunpack.c.h.b16 %v346
    %v733 = vunpack.c.l.b16 %v347
    %v734 = vunpack.c.h.b16 %v347
    %v735 = vunpack.c.l.b16 %v348
    %v736 = vunpack.c.h.b16 %v348
    %v737 = vunpack.c.l.b16 %v349
    %v738 = vunpack.c.h.b16 %v349
    %v739 = vunpack.c.l.b16 %v350
    %v740 = vunpack.c.h.b16 %v350
    %v741 = vunpack.c.l.b16 %v351
    %v742 = vunpack.c.h.b16 %v351
    %v743 = vunpack.c.l.b16 %v352
    %v744 = vunpack.c.h.b16 %v352
    %v745 = vunpack.c.l.b16 %v353
    %v746 = vunpack.c.h.b16 %v353
    %v747 = vunpack.c.l.b16 %v354
    %v748 = vunpack.c.h.b16 %v354
    %v749 = vunpack.c.l.b16 %v355
    %v750 = vunpack.c.h.b16 %v355
    %v751 = vunpack.c.l.b16 %v356
    %v752 = vunpack.c.h.b16 %v356
    %v753 = vunpack.c.l.b16 %v357
    %v754 = vunpack.c.h.b16 %v357
    %v755 = vunpack.c.l.b16 %v358
    %v756 = vunpack.c.h.b16 %v358
    %v757 = vunpack.c.l.b16 %v359
    %v758 = vunpack.c.h.b16 %v359
    %v759 = vunpack.c.l.b16 %v360
    %v760 = vunpack.c.h.b16 %v360
    %v761 = vunpack.c.l.b16 %v361
    %v762 = vunpack.c.h.b16 %v361
    %v763 = vunpack.c.l.b16 %v362
    %v764 = vunpack.c.h.b16 %v362
    %v765 = vunpack.c.l.b16 %v363
    %v766 = vunpack.c.h.b16 %v363
    %v767 = vunpack.c.l.b16 %v364
    %v768 = vunpack.c.h.b16 %v364
    %v769 = vunpack.c.l.b16 %v365
    %v770 = vunpack.c.h.b16 %v365
    %v771 = vunpack.c.l.b16 %v366
    %v772 = vunpack.c.h.b16 %v366
    %v773 = vunpack.c.l.b16 %v367
    %v774 = vunpack.c.h.b16 %v367
    %v775 = vunpack.c.l.b16 %v368
    %v776 = vunpack.c.h.b16 %v368
    %v777 = vunpack.c.l.b16 %v369
    %v778 = vunpack.c.h.b16 %v369
    %v779 = vunpack.c.l.b16 %v370
    %v780 = vunpack.c.h.b16 %v370
    %v781 = vunpack.c.l.b16 %v371
    %v782 = vunpack.c.h.b16 %v371
    %v783 = vunpack.c.l.b16 %v372
    %v784 = vunpack.c.h.b16 %v372
    %v785 = vunpack.c.l.b16 %v373
    %v786 = vunpack.c.h.b16 %v373
    %v787 = vunpack.c.l.b16 %v374
    %v788 = vunpack.c.h.b16 %v374
    %v789 = vunpack.c.l.b16 %v375
    %v790 = vunpack.c.h.b16 %v375
    %v791 = vunpack.c.l.b16 %v376
    %v792 = vunpack.c.h.b16 %v376
    %v793 = vunpack.c.l.b16 %v377
    %v794 = vunpack.c.h.b16 %v377
    %v795 = vunpack.c.l.b16 %v378
    %v796 = vunpack.c.h.b16 %v378
    %v797 = vunpack.c.l.b16 %v379
    %v798 = vunpack.c.h.b16 %v379
    %v799 = vunpack.c.l.b16 %v380
    %v800 = vunpack.c.h.b16 %v380
    %v801 = vunpack.c.l.b16 %v381
    %v802 = vunpack.c.h.b16 %v381
    %v803 = vunpack.c.l.b16 %v382
    %v804 = vunpack.c.h.b16 %v382
    %v805 = vunpack.c.l.b16 %v383
    %v806 = vunpack.c.h.b16 %v383
    %v807 = vunpack.c.l.b16 %v384
    %v808 = vunpack.c.h.b16 %v384
    %v809 = vunpack.c.l.b16 %v385
    %v810 = vunpack.c.h.b16 %v385
    %v811 = vunpack.c.l.b16 %v386
    %v812 = vunpack.c.h.b16 %v386
    %v813 = vunpack.c.l.b16 %v387
    %v814 = vunpack.c.h.b16 %v387
    %v815 = vunpack.c.l.b16 %v388
    %v816 = vunpack.c.h.b16 %v388
    %v817 = vunpack.c.l.b16 %v389
    %v818 = vunpack.c.h.b16 %v389
    %v819 = vunpack.c.l.b16 %v390
    %v820 = vunpack.c.h.b16 %v390
    %v821 = vunpack.c.l.b16 %v391
    %v822 = vunpack.c.h.b16 %v391
    %v823 = vunpack.c.l.b16 %v392
    %v824 = vunpack.c.h.b16 %v392
    %v825 = vunpack.c.l.b16 %v393
    %v826 = vunpack.c.h.b16 %v393
    %v827 = vunpack.c.l.b16 %v394
    %v828 = vunpack.c.h.b16 %v394
    %v829 = vunpack.c.l.b16 %v395
    %v830 = vunpack.c.h.b16 %v395
    %v831 = vpack.c.b16 %v583, %v575
    %v832 = vpack.c.b16 %v584, %v576
    %v833 = vpack.c.b16 %v585, %v577
    %v834 = vpack.c.b16 %v586, %v578
    %v835 = vpack.c.b16 %v587, %v579
    %v836 = vpack.c.b16 %v588, %v580
    %v837 = vpack.c.b16 %v589, %v581
    %v838 = vpack.c.b16 %v590, %v582
    %v839 = vpack.c.b16 %v599, %v591
    %v840 = vpack.c.b16 %v600, %v592
    %v841 = vpack.c.b16 %v601, %v593
    %v842 = vpack.c.b16 %v602, %v594
    %v843 = vpack.c.b16 %v603, %v595
    %v844 = vpack.c.b16 %v604, %v596
    %v845 = vpack.c.b16 %v605, %v597
    %v846 = vpack.c.b16 %v606, %v598
    %v847 = vpack.c.b16 %v615, %v607
    %v848 = vpack.c.b16 %v616, %v608
    %v849 = vpack.c.b16 %v617, %v609
    %v850 = vpack.c.b16 %v618, %v610
    %v851 = vpack.c.b16 %v619, %v611
    %v852 = vpack.c.b16 %v620, %v612
    %v853 = vpack.c.b16 %v621, %v613
    %v854 = vpack.c.b16 %v622, %v614
    %v855 = vpack.c.b16 %v631, %v623
    %v856 = vpack.c.b16 %v632, %v624
    %v857 = vpack.c.b16 %v633, %v625
    %v858 = vpack.c.b16 %v634, %v626
    %v859 = vpack.c.b16 %v635, %v627
    %v860 = vpack.c.b16 %v636, %v628
    %v861 = vpack.c.b16 %v637, %v629
    %v862 = vpack.c.b16 %v638, %v630
    %v863 = vpack.c.b16 %v647, %v639
    %v864 = vpack.c.b16 %v648, %v640
    %v865 = vpack.c.b16 %v649, %v641
    %v866 = vpack.c.b16 %v650, %v642
    %v867 = vpack.c.b16 %v651, %v643
    %v868 = vpack.c.b16 %v652, %v644
    %v869 = vpack.c.b16 %v653, %v645
    %v870 = vpack.c.b16 %v654, %v646
    %v871 = vpack.c.b16 %v663, %v655
    %v872 = vpack.c.b16 %v664, %v656
    %v873 = vpack.c.b16 %v665, %v657
    %v874 = vpack.c.b16 %v666, %v658
    %v875 = vpack.c.b16 %v667, %v659
    %v876 = vpack.c.b16 %v668, %v660
    %v877 = vpack.c.b16 %v669, %v661
    %v878 = vpack.c.b16 %v670, %v662
    %v879 = vpack.c.b16 %v679, %v671
    %v880 = vpack.c.b16 %v680, %v672
    %v881 = vpack.c.b16 %v681, %v673
    %v882 = vpack.c.b16 %v682, %v674
    %v883 = vpack.c.b16 %v683, %v675
    %v884 = vpack.c.b16 %v684, %v676
    %v885 = vpack.c.b16 %v685, %v677
    %v886 = vpack.c.b16 %v686, %v678
    %v887 = vpack.c.b16 %v695, %v687
    %v888 = vpack.c.b16 %v696, %v688
    %v889 = vpack.c.b16 %v697, %v689
    %v890 = vpack.c.b16 %v698, %v690
    %v891 = vpack.c.b16 %v699, %v691
    %v892 = vpack.c.b16 %v700, %v692
    %v893 = vpack.c.b16 %v701, %v693
    %v894 = vpack.c.b16 %v702, %v694
    %v895 = vpack.c.b16 %v711, %v703
    %v896 = vpack.c.b16 %v712, %v704
    %v897 = vpack.c.b16 %v713, %v705
    %v898 = vpack.c.b16 %v714, %v706
    %v899 = vpack.c.b16 %v715, %v707
    %v900 = vpack.c.b16 %v716, %v708
    %v901 = vpack.c.b16 %v717, %v709
    %v902 = vpack.c.b16 %v718, %v710
    %v903 = vpack.c.b16 %v727, %v719
    %v904 = vpack.c.b16 %v728, %v720
    %v905 = vpack.c.b16 %v729, %v721
    %v906 = vpack.c.b16 %v730, %v722
    %v907 = vpack.c.b16 %v731, %v723
    %v908 = vpack.c.b16 %v732, %v724
    %v909 = vpack.c.b16 %v733, %v725
    %v910 = vpack.c.b16 %v734, %v726
    %v911 = vpack.c.b16 %v743, %v735
    %v912 = vpack.c.b16 %v744, %v736
    %v913 = vpack.c.b16 %v745, %v737
    %v914 = vpack.c.b16 %v746, %v738
    %v915 = vpack.c.b16 %v747, %v739
    %v916 = vpack.c.b16 %v748, %v740
    %v917 = vpack.c.b16 %v749, %v741
    %v918 = vpack.c.b16 %v750, %v742
    %v919 = vpack.c.b16 %v759, %v751
    %v920 = vpack.c.b16 %v760, %v752
    %v921 = vpack.c.b16 %v761, %v753
    %v922 = vpack.c.b16 %v762, %v754
    %v923 = vpack.c.b16 %v763, %v755
    %v924 = vpack.c.b16 %v764, %v756
    %v925 = vpack.c.b16 %v765, %v757
    %v926 = vpack.c.b16 %v766, %v758
    %v927 = vpack.c.b16 %v775, %v767
    %v928 = vpack.c.b16 %v776, %v768
    %v929 = vpack.c.b16 %v777, %v769
    %v930 = vpack.c.b16 %v778, %v770
    %v931 = vpack.c.b16 %v779, %v771
    %v932 = vpack.c.b16 %v780, %v772
    %v933 = vpack.c.b16 %v781, %v773
    %v934 = vpack.c.b16 %v782, %v774
    %v935 = vpack.c.b16 %v791, %v783
    %v936 = vpack.c.b16 %v792, %v784
    %v937 = vpack.c.b16 %v793, %v785
    %v938 = vpack.c.b16 %v794, %v786
    %v939 = vpack.c.b16 %v795, %v787
    %v940 = vpack.c.b16 %v796, %v788
    %v941 = vpack.c.b16 %v797, %v789
    %v942 = vpack.c.b16 %v798, %v790
    %v943 = vpack.c.b16 %v807, %v799
    %v944 = vpack.c.b16 %v808, %v800
    %v945 = vpack.c.b16 %v809, %v801
    %v946 = vpack.c.b16 %v810, %v802
    %v947 = vpack.c.b16 %v811, %v803
    %v948 = vpack.c.b16 %v812, %v804
    %v949 = vpack.c.b16 %v813, %v805
    %v950 = vpack.c.b16 %v814, %v806
    %v951 = vpack.c.b16 %v823, %v815
    %v952 = vpack.c.b16 %v824, %v816
    %v953 = vpack.c.b16 %v825, %v817
    %v954 = vpack.c.b16 %v826, %v818
    %v955 = vpack.c.b16 %v827, %v819
    %v956 = vpack.c.b16 %v828, %v820
    %v957 = vpack.c.b16 %v829, %v821
    %v958 = vpack.c.b16 %v830, %v822
    %1087 = vmatprep.subr.bf16.mxu0 %v888
    %1088 = vmatpush1.bf16.msra.mxu0 %v887
    %1089 = vmatprep.subr.bf16.mxu0 %v880
    %1090 = vmatpush1.bf16.msra.mxu0 %v879
    %1091 = vmatprep.subr.bf16.mxu0 %v872
    %1092 = vmatpush1.bf16.msra.mxu0 %v871
    %1093 = vmatprep.subr.bf16.mxu0 %v864
    %1094 = vmatpush1.bf16.msra.mxu0 %v863
    %1095 = vmatprep.subr.bf16.mxu0 %v856
    %1096 = vmatpush1.bf16.msra.mxu0 %v855
    %1097 = vmatprep.subr.bf16.mxu0 %v848
    %1098 = vmatpush1.bf16.msra.mxu0 %v847
    %1099 = vmatprep.subr.bf16.mxu0 %v840
    %1100 = vmatpush1.bf16.msra.mxu0 %v839
    %1101 = vmatprep.subr.bf16.mxu0 %v832
    %1102 = vmatpush1.bf16.msra.mxu0 %v831
    %1103 = vmatprep.subr.bf16.mxu0 %v952
    %1104 = vmatpush2.bf16.msra.mxu0 %v951
    %1105 = vmatprep.subr.bf16.mxu0 %v944
    %1106 = vmatpush2.bf16.msra.mxu0 %v943
    %1107 = vmatprep.subr.bf16.mxu0 %v936
    %1108 = vmatpush2.bf16.msra.mxu0 %v935
    %1109 = vmatprep.subr.bf16.mxu0 %v928
    %1110 = vmatpush2.bf16.msra.mxu0 %v927
    %1111 = vmatprep.subr.bf16.mxu0 %v920
    %1112 = vmatpush2.bf16.msra.mxu0 %v919
    %1113 = vmatprep.subr.bf16.mxu0 %v912
    %1114 = vmatpush2.bf16.msra.mxu0 %v911
    %1115 = vmatprep.subr.bf16.mxu0 %v904
    %1116 = vmatpush2.bf16.msra.mxu0 %v903
    %1117 = vmatprep.subr.bf16.mxu0 %v896
    %1118 = vmatpush2.bf16.msra.mxu0 %v895
    %1119 = vmatprep.mubr.bf16.mxu0 0
    %1120 = vmatmul.mubr.bf16.gmra.mxu0 %v446
    %v1121 = vpop.f32.mrf.mxu0
    %v1122 = vadd.f32 0.0, %v1121
    %v1123 = vpop.f32.mrf.mxu0
    %v1124 = vadd.f32 0.0, %v1123
    %v1125 = vpop.f32.mrf.mxu0
    %v1126 = vpop.f32.mrf.mxu0
    %1127 = vdwg.mxu0
    %1128 = vmatprep.subr.bf16.mxu0 %v890
    %1129 = vmatpush1.bf16.msra.mxu0 %v889
    %1130 = vmatprep.subr.bf16.mxu0 %v882
    %1131 = vmatpush1.bf16.msra.mxu0 %v881
    %1132 = vmatprep.subr.bf16.mxu0 %v874
    %1133 = vmatpush1.bf16.msra.mxu0 %v873
    %1134 = vmatprep.subr.bf16.mxu0 %v866
    %1135 = vmatpush1.bf16.msra.mxu0 %v865
    %1136 = vmatprep.subr.bf16.mxu0 %v858
    %1137 = vmatpush1.bf16.msra.mxu0 %v857
    %1138 = vmatprep.subr.bf16.mxu0 %v850
    %1139 = vmatpush1.bf16.msra.mxu0 %v849
    %1140 = vmatprep.subr.bf16.mxu0 %v842
    %1141 = vmatpush1.bf16.msra.mxu0 %v841
    %1142 = vmatprep.subr.bf16.mxu0 %v834
    %1143 = vmatpush1.bf16.msra.mxu0 %v833
    %1144 = vmatprep.subr.bf16.mxu0 %v954
    %1145 = vmatpush2.bf16.msra.mxu0 %v953
    %1146 = vmatprep.subr.bf16.mxu0 %v946
    %1147 = vmatpush2.bf16.msra.mxu0 %v945
    %1148 = vmatprep.subr.bf16.mxu0 %v938
    %1149 = vmatpush2.bf16.msra.mxu0 %v937
    %1150 = vmatprep.subr.bf16.mxu0 %v930
    %1151 = vmatpush2.bf16.msra.mxu0 %v929
    %1152 = vmatprep.subr.bf16.mxu0 %v922
    %1153 = vmatpush2.bf16.msra.mxu0 %v921
    %1154 = vmatprep.subr.bf16.mxu0 %v914
    %1155 = vmatpush2.bf16.msra.mxu0 %v913
    %1156 = vmatprep.subr.bf16.mxu0 %v906
    %1157 = vmatpush2.bf16.msra.mxu0 %v905
    %1158 = vmatprep.subr.bf16.mxu0 %v898
    %1159 = vmatpush2.bf16.msra.mxu0 %v897
    %1160 = vmatprep.mubr.bf16.mxu0 0
    %1161 = vmatmul.mubr.bf16.gmra.mxu0 %v446
    %v1162 = vpop.f32.mrf.mxu0
    %v1163 = vadd.f32 0.0, %v1162
    %v1164 = vpop.f32.mrf.mxu0
    %v1165 = vadd.f32 0.0, %v1164
    %v1166 = vpop.f32.mrf.mxu0
    %v1167 = vpop.f32.mrf.mxu0
    %1168 = vdwg.mxu0
    %1169 = vmatprep.subr.bf16.mxu0 %v892
    %1170 = vmatpush1.bf16.msra.mxu0 %v891
    %1171 = vmatprep.subr.bf16.mxu0 %v884
    %1172 = vmatpush1.bf16.msra.mxu0 %v883
    %1173 = vmatprep.subr.bf16.mxu0 %v876
    %1174 = vmatpush1.bf16.msra.mxu0 %v875
    %1175 = vmatprep.subr.bf16.mxu0 %v868
    %1176 = vmatpush1.bf16.msra.mxu0 %v867
    %1177 = vmatprep.subr.bf16.mxu0 %v860
    %1178 = vmatpush1.bf16.msra.mxu0 %v859
    %1179 = vmatprep.subr.bf16.mxu0 %v852
    %1180 = vmatpush1.bf16.msra.mxu0 %v851
    %1181 = vmatprep.subr.bf16.mxu0 %v844
    %1182 = vmatpush1.bf16.msra.mxu0 %v843
    %1183 = vmatprep.subr.bf16.mxu0 %v836
    %1184 = vmatpush1.bf16.msra.mxu0 %v835
    %1185 = vmatprep.subr.bf16.mxu0 %v956
    %1186 = vmatpush2.bf16.msra.mxu0 %v955
    %1187 = vmatprep.subr.bf16.mxu0 %v948
    %1188 = vmatpush2.bf16.msra.mxu0 %v947
    %1189 = vmatprep.subr.bf16.mxu0 %v940
    %1190 = vmatpush2.bf16.msra.mxu0 %v939
    %1191 = vmatprep.subr.bf16.mxu0 %v932
    %1192 = vmatpush2.bf16.msra.mxu0 %v931
    %1193 = vmatprep.subr.bf16.mxu0 %v924
    %1194 = vmatpush2.bf16.msra.mxu0 %v923
    %1195 = vmatprep.subr.bf16.mxu0 %v916
    %1196 = vmatpush2.bf16.msra.mxu0 %v915
    %1197 = vmatprep.subr.bf16.mxu0 %v908
    %1198 = vmatpush2.bf16.msra.mxu0 %v907
    %1199 = vmatprep.subr.bf16.mxu0 %v900
    %1200 = vmatpush2.bf16.msra.mxu0 %v899
    %1201 = vmatprep.mubr.bf16.mxu0 0
    %1202 = vmatmul.mubr.bf16.gmra.mxu0 %v446
    %v1203 = vpop.f32.mrf.mxu0
    %v1204 = vadd.f32 0.0, %v1203
    %v1205 = vpop.f32.mrf.mxu0
    %v1206 = vadd.f32 0.0, %v1205
    %v1207 = vpop.f32.mrf.mxu0
    %v1208 = vpop.f32.mrf.mxu0
    %1209 = vdwg.mxu0
    %1210 = vmatprep.subr.bf16.mxu0 %v894
    %1211 = vmatpush1.bf16.msra.mxu0 %v893
    %1212 = vmatprep.subr.bf16.mxu0 %v886
    %1213 = vmatpush1.bf16.msra.mxu0 %v885
    %1214 = vmatprep.subr.bf16.mxu0 %v878
    %1215 = vmatpush1.bf16.msra.mxu0 %v877
    %1216 = vmatprep.subr.bf16.mxu0 %v870
    %1217 = vmatpush1.bf16.msra.mxu0 %v869
    %1218 = vmatprep.subr.bf16.mxu0 %v862
    %1219 = vmatpush1.bf16.msra.mxu0 %v861
    %1220 = vmatprep.subr.bf16.mxu0 %v854
    %1221 = vmatpush1.bf16.msra.mxu0 %v853
    %1222 = vmatprep.subr.bf16.mxu0 %v846
    %1223 = vmatpush1.bf16.msra.mxu0 %v845
    %1224 = vmatprep.subr.bf16.mxu0 %v838
    %1225 = vmatpush1.bf16.msra.mxu0 %v837
    %1226 = vmatprep.subr.bf16.mxu0 %v958
    %1227 = vmatpush2.bf16.msra.mxu0 %v957
    %1228 = vmatprep.subr.bf16.mxu0 %v950
    %1229 = vmatpush2.bf16.msra.mxu0 %v949
    %1230 = vmatprep.subr.bf16.mxu0 %v942
    %1231 = vmatpush2.bf16.msra.mxu0 %v941
    %1232 = vmatprep.subr.bf16.mxu0 %v934
    %1233 = vmatpush2.bf16.msra.mxu0 %v933
    %1234 = vmatprep.subr.bf16.mxu0 %v926
    %1235 = vmatpush2.bf16.msra.mxu0 %v925
    %1236 = vmatprep.subr.bf16.mxu0 %v918
    %1237 = vmatpush2.bf16.msra.mxu0 %v917
    %1238 = vmatprep.subr.bf16.mxu0 %v910
    %1239 = vmatpush2.bf16.msra.mxu0 %v909
    %1240 = vmatprep.subr.bf16.mxu0 %v902
    %1241 = vmatpush2.bf16.msra.mxu0 %v901
    %1242 = vmatprep.mubr.bf16.mxu0 0
    %1243 = vmatmul.mubr.bf16.gmra.mxu0 %v446
    %v1244 = vpop.f32.mrf.mxu0
    %v1245 = vadd.f32 0.0, %v1244
    %v1246 = vpop.f32.mrf.mxu0
    %v1247 = vadd.f32 0.0, %v1246
    %v1248 = vpop.f32.mrf.mxu0
    %v1249 = vpop.f32.mrf.mxu0
    %1250 = vdwg.mxu0
    %v1251 = vadd.f32 %v1204, %v401
    %v1252 = vadd.f32 %v1206, %v405
    %v1253 = vadd.f32 %v1245, %v409
    %v1254 = vadd.f32 %v1247, %v413
    %v1255 = vxor.u32 %v1251, 2147483648
    %v1256 = vxor.u32 %v1252, 2147483648
    %v1257 = vmul.f32 %v1255, 1.442695
    %v1258 = vpow.pop %v1257
    %v1259 = vmul.f32 %v1256, 1.442695
    %v1260 = vpow.pop %v1259
    %v1261 = vadd.f32 %v1258, 1.0
    %v1262 = vadd.f32 %v1260, 1.0
    %v1263 = vrcp.pop %v1261
    %v1264 = vmul.f32 1.0, %v1263
    %v1265 = vrcp.pop %v1262
    %v1266 = vmul.f32 1.0, %v1265
    %v1267 = vtanh.pop %v1253
    %v1268 = vxor.u32 %v1254, 2147483648
    %v1269 = vmul.f32 %v1268, 1.442695
    %v1270 = vpow.pop %v1269
    %v1271 = vadd.f32 %v1270, 1.0
    %v1272 = vrcp.pop %v1271
    %v1273 = vmul.f32 1.0, %v1272
    %v1274 = vmul.f32 %v1266, 0.0
    %v1275 = vmul.f32 %v1264, %v1267
    %v1276 = vadd.f32 %v1274, %v1275
    %v1277 = vtanh.pop %v1276
    %v1278 = vmul.f32 %v1273, %v1277
    %v1279 = vadd.f32 %v161, %v1122
    %v1280 = vadd.f32 %v163, %v1124
    %v1281 = vadd.f32 %v234, %v1163
    %v1282 = vadd.f32 %v236, %v1165
    %v1283 = vxor.u32 %v1279, 2147483648
    %v1284 = vxor.u32 %v1280, 2147483648
    %v1285 = vmul.f32 %v1283, 1.442695
    %v1286 = vpow.pop %v1285
    %v1287 = vmul.f32 %v1284, 1.442695
    %v1288 = vpow.pop %v1287
    %v1289 = vadd.f32 %v1286, 1.0
    %v1290 = vadd.f32 %v1288, 1.0
    %v1291 = vrcp.pop %v1289
    %v1292 = vmul.f32 1.0, %v1291
    %v1293 = vrcp.pop %v1290
    %v1294 = vmul.f32 1.0, %v1293
    %v1295 = vtanh.pop %v1281
    %v1296 = vxor.u32 %v1282, 2147483648
    %v1297 = vmul.f32 %v1296, 1.442695
    %v1298 = vpow.pop %v1297
    %v1299 = vadd.f32 %v1298, 1.0
    %v1300 = vrcp.pop %v1299
    %v1301 = vmul.f32 1.0, %v1300
    %v1302 = vmul.f32 %v1294, %v443
    %v1303 = vmul.f32 %v1292, %v1295
    %v1304 = vadd.f32 %v1302, %v1303
    %v1305 = vtanh.pop %v1304
    %v1306 = vmul.f32 %v1301, %v1305
    %v1307 = vpack.c.bf16 %v1306, %v1306
    %v1308 = vpack.c.bf16 %v1278, %v1278
    %1309 = vmatprep.subr.bf16.mxu0 %v888
    %1310 = vmatpush1.bf16.msra.mxu0 %v887
    %1311 = vmatprep.subr.bf16.mxu0 %v880
    %1312 = vmatpush1.bf16.msra.mxu0 %v879
    %1313 = vmatprep.subr.bf16.mxu0 %v872
    %1314 = vmatpush1.bf16.msra.mxu0 %v871
    %1315 = vmatprep.subr.bf16.mxu0 %v864
    %1316 = vmatpush1.bf16.msra.mxu0 %v863
    %1317 = vmatprep.subr.bf16.mxu0 %v856
    %1318 = vmatpush1.bf16.msra.mxu0 %v855
    %1319 = vmatprep.subr.bf16.mxu0 %v848
    %1320 = vmatpush1.bf16.msra.mxu0 %v847
    %1321 = vmatprep.subr.bf16.mxu0 %v840
    %1322 = vmatpush1.bf16.msra.mxu0 %v839
    %1323 = vmatprep.subr.bf16.mxu0 %v832
    %1324 = vmatpush1.bf16.msra.mxu0 %v831
    %1325 = vmatprep.subr.bf16.mxu0 %v952
    %1326 = vmatpush2.bf16.msra.mxu0 %v951
    %1327 = vmatprep.subr.bf16.mxu0 %v944
    %1328 = vmatpush2.bf16.msra.mxu0 %v943
    %1329 = vmatprep.subr.bf16.mxu0 %v936
    %1330 = vmatpush2.bf16.msra.mxu0 %v935
    %1331 = vmatprep.subr.bf16.mxu0 %v928
    %1332 = vmatpush2.bf16.msra.mxu0 %v927
    %1333 = vmatprep.subr.bf16.mxu0 %v920
    %1334 = vmatpush2.bf16.msra.mxu0 %v919
    %1335 = vmatprep.subr.bf16.mxu0 %v912
    %1336 = vmatpush2.bf16.msra.mxu0 %v911
    %1337 = vmatprep.subr.bf16.mxu0 %v904
    %1338 = vmatpush2.bf16.msra.mxu0 %v903
    %1339 = vmatprep.subr.bf16.mxu0 %v896
    %1340 = vmatpush2.bf16.msra.mxu0 %v895
    %1341 = vmatprep.mubr.bf16.mxu0 %v1308
    %1342 = vmatmul.mubr.bf16.gmra.mxu0 %v1307
    %v1343 = vpop.f32.mrf.mxu0
    %v1344 = vadd.f32 0.0, %v1343
    %v1345 = vpop.f32.mrf.mxu0
    %v1346 = vadd.f32 0.0, %v1345
    %v1347 = vpop.f32.mrf.mxu0
    %v1348 = vpop.f32.mrf.mxu0
    %1349 = vdwg.mxu0
    %1350 = vmatprep.subr.bf16.mxu0 %v890
    %1351 = vmatpush1.bf16.msra.mxu0 %v889
    %1352 = vmatprep.subr.bf16.mxu0 %v882
    %1353 = vmatpush1.bf16.msra.mxu0 %v881
    %1354 = vmatprep.subr.bf16.mxu0 %v874
    %1355 = vmatpush1.bf16.msra.mxu0 %v873
    %1356 = vmatprep.subr.bf16.mxu0 %v866
    %1357 = vmatpush1.bf16.msra.mxu0 %v865
    %1358 = vmatprep.subr.bf16.mxu0 %v858
    %1359 = vmatpush1.bf16.msra.mxu0 %v857
    %1360 = vmatprep.subr.bf16.mxu0 %v850
    %1361 = vmatpush1.bf16.msra.mxu0 %v849
    %1362 = vmatprep.subr.bf16.mxu0 %v842
    %1363 = vmatpush1.bf16.msra.mxu0 %v841
    %1364 = vmatprep.subr.bf16.mxu0 %v834
    %1365 = vmatpush1.bf16.msra.mxu0 %v833
    %1366 = vmatprep.subr.bf16.mxu0 %v954
    %1367 = vmatpush2.bf16.msra.mxu0 %v953
    %1368 = vmatprep.subr.bf16.mxu0 %v946
    %1369 = vmatpush2.bf16.msra.mxu0 %v945
    %1370 = vmatprep.subr.bf16.mxu0 %v938
    %1371 = vmatpush2.bf16.msra.mxu0 %v937
    %1372 = vmatprep.subr.bf16.mxu0 %v930
    %1373 = vmatpush2.bf16.msra.mxu0 %v929
    %1374 = vmatprep.subr.bf16.mxu0 %v922
    %1375 = vmatpush2.bf16.msra.mxu0 %v921
    %1376 = vmatprep.subr.bf16.mxu0 %v914
    %1377 = vmatpush2.bf16.msra.mxu0 %v913
    %1378 = vmatprep.subr.bf16.mxu0 %v906
    %1379 = vmatpush2.bf16.msra.mxu0 %v905
    %1380 = vmatprep.subr.bf16.mxu0 %v898
    %1381 = vmatpush2.bf16.msra.mxu0 %v897
    %1382 = vmatprep.mubr.bf16.mxu0 %v1308
    %1383 = vmatmul.mubr.bf16.gmra.mxu0 %v1307
    %v1384 = vpop.f32.mrf.mxu0
    %v1385 = vadd.f32 0.0, %v1384
    %v1386 = vpop.f32.mrf.mxu0
    %v1387 = vadd.f32 0.0, %v1386
    %v1388 = vpop.f32.mrf.mxu0
    %v1389 = vpop.f32.mrf.mxu0
    %1390 = vdwg.mxu0
    %1391 = vmatprep.subr.bf16.mxu0 %v892
    %1392 = vmatpush1.bf16.msra.mxu0 %v891
    %1393 = vmatprep.subr.bf16.mxu0 %v884
    %1394 = vmatpush1.bf16.msra.mxu0 %v883
    %1395 = vmatprep.subr.bf16.mxu0 %v876
    %1396 = vmatpush1.bf16.msra.mxu0 %v875
    %1397 = vmatprep.subr.bf16.mxu0 %v868
    %1398 = vmatpush1.bf16.msra.mxu0 %v867
    %1399 = vmatprep.subr.bf16.mxu0 %v860
    %1400 = vmatpush1.bf16.msra.mxu0 %v859
    %1401 = vmatprep.subr.bf16.mxu0 %v852
    %1402 = vmatpush1.bf16.msra.mxu0 %v851
    %1403 = vmatprep.subr.bf16.mxu0 %v844
    %1404 = vmatpush1.bf16.msra.mxu0 %v843
    %1405 = vmatprep.subr.bf16.mxu0 %v836
    %1406 = vmatpush1.bf16.msra.mxu0 %v835
    %1407 = vmatprep.subr.bf16.mxu0 %v956
    %1408 = vmatpush2.bf16.msra.mxu0 %v955
    %1409 = vmatprep.subr.bf16.mxu0 %v948
    %1410 = vmatpush2.bf16.msra.mxu0 %v947
    %1411 = vmatprep.subr.bf16.mxu0 %v940
    %1412 = vmatpush2.bf16.msra.mxu0 %v939
    %1413 = vmatprep.subr.bf16.mxu0 %v932
    %1414 = vmatpush2.bf16.msra.mxu0 %v931
    %1415 = vmatprep.subr.bf16.mxu0 %v924
    %1416 = vmatpush2.bf16.msra.mxu0 %v923
    %1417 = vmatprep.subr.bf16.mxu0 %v916
    %1418 = vmatpush2.bf16.msra.mxu0 %v915
    %1419 = vmatprep.subr.bf16.mxu0 %v908
    %1420 = vmatpush2.bf16.msra.mxu0 %v907
    %1421 = vmatprep.subr.bf16.mxu0 %v900
    %1422 = vmatpush2.bf16.msra.mxu0 %v899
    %1423 = vmatprep.mubr.bf16.mxu0 %v1308
    %1424 = vmatmul.mubr.bf16.gmra.mxu0 %v1307
    %v1425 = vpop.f32.mrf.mxu0
    %v1426 = vadd.f32 0.0, %v1425
    %v1427 = vpop.f32.mrf.mxu0
    %v1428 = vadd.f32 0.0, %v1427
    %v1429 = vpop.f32.mrf.mxu0
    %v1430 = vpop.f32.mrf.mxu0
    %1431 = vdwg.mxu0
    %1432 = vmatprep.subr.bf16.mxu0 %v894
    %1433 = vmatpush1.bf16.msra.mxu0 %v893
    %1434 = vmatprep.subr.bf16.mxu0 %v886
    %1435 = vmatpush1.bf16.msra.mxu0 %v885
    %1436 = vmatprep.subr.bf16.mxu0 %v878
    %1437 = vmatpush1.bf16.msra.mxu0 %v877
    %1438 = vmatprep.subr.bf16.mxu0 %v870
    %1439 = vmatpush1.bf16.msra.mxu0 %v869
    %1440 = vmatprep.subr.bf16.mxu0 %v862
    %1441 = vmatpush1.bf16.msra.mxu0 %v861
    %1442 = vmatprep.subr.bf16.mxu0 %v854
    %1443 = vmatpush1.bf16.msra.mxu0 %v853
    %1444 = vmatprep.subr.bf16.mxu0 %v846
    %1445 = vmatpush1.bf16.msra.mxu0 %v845
    %1446 = vmatprep.subr.bf16.mxu0 %v838
    %1447 = vmatpush1.bf16.msra.mxu0 %v837
    %1448 = vmatprep.subr.bf16.mxu0 %v958
    %1449 = vmatpush2.bf16.msra.mxu0 %v957
    %1450 = vmatprep.subr.bf16.mxu0 %v950
    %1451 = vmatpush2.bf16.msra.mxu0 %v949
    %1452 = vmatprep.subr.bf16.mxu0 %v942
    %1453 = vmatpush2.bf16.msra.mxu0 %v941
    %1454 = vmatprep.subr.bf16.mxu0 %v934
    %1455 = vmatpush2.bf16.msra.mxu0 %v933
    %1456 = vmatprep.subr.bf16.mxu0 %v926
    %1457 = vmatpush2.bf16.msra.mxu0 %v925
    %1458 = vmatprep.subr.bf16.mxu0 %v918
    %1459 = vmatpush2.bf16.msra.mxu0 %v917
    %1460 = vmatprep.subr.bf16.mxu0 %v910
    %1461 = vmatpush2.bf16.msra.mxu0 %v909
    %1462 = vmatprep.subr.bf16.mxu0 %v902
    %1463 = vmatpush2.bf16.msra.mxu0 %v901
    %1464 = vmatprep.mubr.bf16.mxu0 %v1308
    %1465 = vmatmul.mubr.bf16.gmra.mxu0 %v1307
    %v1466 = vpop.f32.mrf.mxu0
    %v1467 = vadd.f32 0.0, %v1466
    %v1468 = vpop.f32.mrf.mxu0
    %v1469 = vadd.f32 0.0, %v1468
    %v1470 = vpop.f32.mrf.mxu0
    %v1471 = vpop.f32.mrf.mxu0
    %1472 = vdwg.mxu0
    %v1473 = vadd.f32 %v1426, %v401
    %v1474 = vadd.f32 %v1428, %v405
    %v1475 = vadd.f32 %v1467, %v409
    %v1476 = vadd.f32 %v1469, %v413
    %v1477 = vxor.u32 %v1473, 2147483648
    %v1478 = vxor.u32 %v1474, 2147483648
    %v1479 = vmul.f32 %v1477, 1.442695
    %v1480 = vpow.pop %v1479
    %v1481 = vmul.f32 %v1478, 1.442695
    %v1482 = vpow.pop %v1481
    %v1483 = vadd.f32 %v1480, 1.0
    %v1484 = vadd.f32 %v1482, 1.0
    %v1485 = vrcp.pop %v1483
    %v1486 = vmul.f32 1.0, %v1485
    %v1487 = vrcp.pop %v1484
    %v1488 = vmul.f32 1.0, %v1487
    %v1489 = vtanh.pop %v1475
    %v1490 = vxor.u32 %v1476, 2147483648
    %v1491 = vmul.f32 %v1490, 1.442695
    %v1492 = vpow.pop %v1491
    %v1493 = vadd.f32 %v1492, 1.0
    %v1494 = vrcp.pop %v1493
    %v1495 = vmul.f32 1.0, %v1494
    %v1496 = vmul.f32 %v1488, %v1276
    %v1497 = vmul.f32 %v1486, %v1489
    %v1498 = vadd.f32 %v1496, %v1497
    %v1499 = vtanh.pop %v1498
    %v1500 = vmul.f32 %v1495, %v1499
    %v1501 = vadd.f32 %v167, %v1344
    %v1502 = vadd.f32 %v169, %v1346
    %v1503 = vadd.f32 %v240, %v1385
    %v1504 = vadd.f32 %v242, %v1387
    %v1505 = vxor.u32 %v1501, 2147483648
    %v1506 = vxor.u32 %v1502, 2147483648
    %v1507 = vmul.f32 %v1505, 1.442695
    %v1508 = vpow.pop %v1507
    %v1509 = vmul.f32 %v1506, 1.442695
    %v1510 = vpow.pop %v1509
    %v1511 = vadd.f32 %v1508, 1.0
    %v1512 = vadd.f32 %v1510, 1.0
    %v1513 = vrcp.pop %v1511
    %v1514 = vmul.f32 1.0, %v1513
    %v1515 = vrcp.pop %v1512
    %v1516 = vmul.f32 1.0, %v1515
    %v1517 = vtanh.pop %v1503
    %v1518 = vxor.u32 %v1504, 2147483648
    %v1519 = vmul.f32 %v1518, 1.442695
    %v1520 = vpow.pop %v1519
    %v1521 = vadd.f32 %v1520, 1.0
    %v1522 = vrcp.pop %v1521
    %v1523 = vmul.f32 1.0, %v1522
    %v1524 = vmul.f32 %v1516, %v1304
    %v1525 = vmul.f32 %v1514, %v1517
    %v1526 = vadd.f32 %v1524, %v1525
    %v1527 = vtanh.pop %v1526
    %v1528 = vmul.f32 %v1523, %v1527
    %v1529 = vpack.c.bf16 %v1528, %v1528
    %v1530 = vpack.c.bf16 %v1500, %v1500
    %1531 = vmatprep.subr.bf16.mxu0 %v888
    %1532 = vmatpush1.bf16.msra.mxu0 %v887
    %1533 = vmatprep.subr.bf16.mxu0 %v880
    %1534 = vmatpush1.bf16.msra.mxu0 %v879
    %1535 = vmatprep.subr.bf16.mxu0 %v872
    %1536 = vmatpush1.bf16.msra.mxu0 %v871
    %1537 = vmatprep.subr.bf16.mxu0 %v864
    %1538 = vmatpush1.bf16.msra.mxu0 %v863
    %1539 = vmatprep.subr.bf16.mxu0 %v856
    %1540 = vmatpush1.bf16.msra.mxu0 %v855
    %1541 = vmatprep.subr.bf16.mxu0 %v848
    %1542 = vmatpush1.bf16.msra.mxu0 %v847
    %1543 = vmatprep.subr.bf16.mxu0 %v840
    %1544 = vmatpush1.bf16.msra.mxu0 %v839
    %1545 = vmatprep.subr.bf16.mxu0 %v832
    %1546 = vmatpush1.bf16.msra.mxu0 %v831
    %1547 = vmatprep.subr.bf16.mxu0 %v952
    %1548 = vmatpush2.bf16.msra.mxu0 %v951
    %1549 = vmatprep.subr.bf16.mxu0 %v944
    %1550 = vmatpush2.bf16.msra.mxu0 %v943
    %1551 = vmatprep.subr.bf16.mxu0 %v936
    %1552 = vmatpush2.bf16.msra.mxu0 %v935
    %1553 = vmatprep.subr.bf16.mxu0 %v928
    %1554 = vmatpush2.bf16.msra.mxu0 %v927
    %1555 = vmatprep.subr.bf16.mxu0 %v920
    %1556 = vmatpush2.bf16.msra.mxu0 %v919
    %1557 = vmatprep.subr.bf16.mxu0 %v912
    %1558 = vmatpush2.bf16.msra.mxu0 %v911
    %1559 = vmatprep.subr.bf16.mxu0 %v904
    %1560 = vmatpush2.bf16.msra.mxu0 %v903
    %1561 = vmatprep.subr.bf16.mxu0 %v896
    %1562 = vmatpush2.bf16.msra.mxu0 %v895
    %1563 = vmatprep.mubr.bf16.mxu0 %v1530
    %1564 = vmatmul.mubr.bf16.gmra.mxu0 %v1529
    %v1565 = vpop.f32.mrf.mxu0
    %v1566 = vadd.f32 0.0, %v1565
    %v1567 = vpop.f32.mrf.mxu0
    %v1568 = vadd.f32 0.0, %v1567
    %v1569 = vpop.f32.mrf.mxu0
    %v1570 = vpop.f32.mrf.mxu0
    %1571 = vdwg.mxu0
    %1572 = vmatprep.subr.bf16.mxu0 %v890
    %1573 = vmatpush1.bf16.msra.mxu0 %v889
    %1574 = vmatprep.subr.bf16.mxu0 %v882
    %1575 = vmatpush1.bf16.msra.mxu0 %v881
    %1576 = vmatprep.subr.bf16.mxu0 %v874
    %1577 = vmatpush1.bf16.msra.mxu0 %v873
    %1578 = vmatprep.subr.bf16.mxu0 %v866
    %1579 = vmatpush1.bf16.msra.mxu0 %v865
    %1580 = vmatprep.subr.bf16.mxu0 %v858
    %1581 = vmatpush1.bf16.msra.mxu0 %v857
    %1582 = vmatprep.subr.bf16.mxu0 %v850
    %1583 = vmatpush1.bf16.msra.mxu0 %v849
    %1584 = vmatprep.subr.bf16.mxu0 %v842
    %1585 = vmatpush1.bf16.msra.mxu0 %v841
    %1586 = vmatprep.subr.bf16.mxu0 %v834
    %1587 = vmatpush1.bf16.msra.mxu0 %v833
    %1588 = vmatprep.subr.bf16.mxu0 %v954
    %1589 = vmatpush2.bf16.msra.mxu0 %v953
    %1590 = vmatprep.subr.bf16.mxu0 %v946
    %1591 = vmatpush2.bf16.msra.mxu0 %v945
    %1592 = vmatprep.subr.bf16.mxu0 %v938
    %1593 = vmatpush2.bf16.msra.mxu0 %v937
    %1594 = vmatprep.subr.bf16.mxu0 %v930
    %1595 = vmatpush2.bf16.msra.mxu0 %v929
    %1596 = vmatprep.subr.bf16.mxu0 %v922
    %1597 = vmatpush2.bf16.msra.mxu0 %v921
    %1598 = vmatprep.subr.bf16.mxu0 %v914
    %1599 = vmatpush2.bf16.msra.mxu0 %v913
    %1600 = vmatprep.subr.bf16.mxu0 %v906
    %1601 = vmatpush2.bf16.msra.mxu0 %v905
    %1602 = vmatprep.subr.bf16.mxu0 %v898
    %1603 = vmatpush2.bf16.msra.mxu0 %v897
    %1604 = vmatprep.mubr.bf16.mxu0 %v1530
    %1605 = vmatmul.mubr.bf16.gmra.mxu0 %v1529
    %v1606 = vpop.f32.mrf.mxu0
    %v1607 = vadd.f32 0.0, %v1606
    %v1608 = vpop.f32.mrf.mxu0
    %v1609 = vadd.f32 0.0, %v1608
    %v1610 = vpop.f32.mrf.mxu0
    %v1611 = vpop.f32.mrf.mxu0
    %1612 = vdwg.mxu0
    %1613 = vmatprep.subr.bf16.mxu0 %v892
    %1614 = vmatpush1.bf16.msra.mxu0 %v891
    %1615 = vmatprep.subr.bf16.mxu0 %v884
    %1616 = vmatpush1.bf16.msra.mxu0 %v883
    %1617 = vmatprep.subr.bf16.mxu0 %v876
    %1618 = vmatpush1.bf16.msra.mxu0 %v875
    %1619 = vmatprep.subr.bf16.mxu0 %v868
    %1620 = vmatpush1.bf16.msra.mxu0 %v867
    %1621 = vmatprep.subr.bf16.mxu0 %v860
    %1622 = vmatpush1.bf16.msra.mxu0 %v859
    %1623 = vmatprep.subr.bf16.mxu0 %v852
    %1624 = vmatpush1.bf16.msra.mxu0 %v851
    %1625 = vmatprep.subr.bf16.mxu0 %v844
    %1626 = vmatpush1.bf16.msra.mxu0 %v843
    %1627 = vmatprep.subr.bf16.mxu0 %v836
    %1628 = vmatpush1.bf16.msra.mxu0 %v835
    %1629 = vmatprep.subr.bf16.mxu0 %v956
    %1630 = vmatpush2.bf16.msra.mxu0 %v955
    %1631 = vmatprep.subr.bf16.mxu0 %v948
    %1632 = vmatpush2.bf16.msra.mxu0 %v947
    %1633 = vmatprep.subr.bf16.mxu0 %v940
    %1634 = vmatpush2.bf16.msra.mxu0 %v939
    %1635 = vmatprep.subr.bf16.mxu0 %v932
    %1636 = vmatpush2.bf16.msra.mxu0 %v931
    %1637 = vmatprep.subr.bf16.mxu0 %v924
    %1638 = vmatpush2.bf16.msra.mxu0 %v923
    %1639 = vmatprep.subr.bf16.mxu0 %v916
    %1640 = vmatpush2.bf16.msra.mxu0 %v915
    %1641 = vmatprep.subr.bf16.mxu0 %v908
    %1642 = vmatpush2.bf16.msra.mxu0 %v907
    %1643 = vmatprep.subr.bf16.mxu0 %v900
    %1644 = vmatpush2.bf16.msra.mxu0 %v899
    %1645 = vmatprep.mubr.bf16.mxu0 %v1530
    %1646 = vmatmul.mubr.bf16.gmra.mxu0 %v1529
    %v1647 = vpop.f32.mrf.mxu0
    %v1648 = vadd.f32 0.0, %v1647
    %v1649 = vpop.f32.mrf.mxu0
    %v1650 = vadd.f32 0.0, %v1649
    %v1651 = vpop.f32.mrf.mxu0
    %v1652 = vpop.f32.mrf.mxu0
    %1653 = vdwg.mxu0
    %1654 = vmatprep.subr.bf16.mxu0 %v894
    %1655 = vmatpush1.bf16.msra.mxu0 %v893
    %1656 = vmatprep.subr.bf16.mxu0 %v886
    %1657 = vmatpush1.bf16.msra.mxu0 %v885
    %1658 = vmatprep.subr.bf16.mxu0 %v878
    %1659 = vmatpush1.bf16.msra.mxu0 %v877
    %1660 = vmatprep.subr.bf16.mxu0 %v870
    %1661 = vmatpush1.bf16.msra.mxu0 %v869
    %1662 = vmatprep.subr.bf16.mxu0 %v862
    %1663 = vmatpush1.bf16.msra.mxu0 %v861
    %1664 = vmatprep.subr.bf16.mxu0 %v854
    %1665 = vmatpush1.bf16.msra.mxu0 %v853
    %1666 = vmatprep.subr.bf16.mxu0 %v846
    %1667 = vmatpush1.bf16.msra.mxu0 %v845
    %1668 = vmatprep.subr.bf16.mxu0 %v838
    %1669 = vmatpush1.bf16.msra.mxu0 %v837
    %1670 = vmatprep.subr.bf16.mxu0 %v958
    %1671 = vmatpush2.bf16.msra.mxu0 %v957
    %1672 = vmatprep.subr.bf16.mxu0 %v950
    %1673 = vmatpush2.bf16.msra.mxu0 %v949
    %1674 = vmatprep.subr.bf16.mxu0 %v942
    %1675 = vmatpush2.bf16.msra.mxu0 %v941
    %1676 = vmatprep.subr.bf16.mxu0 %v934
    %1677 = vmatpush2.bf16.msra.mxu0 %v933
    %1678 = vmatprep.subr.bf16.mxu0 %v926
    %1679 = vmatpush2.bf16.msra.mxu0 %v925
    %1680 = vmatprep.subr.bf16.mxu0 %v918
    %1681 = vmatpush2.bf16.msra.mxu0 %v917
    %1682 = vmatprep.subr.bf16.mxu0 %v910
    %1683 = vmatpush2.bf16.msra.mxu0 %v909
    %1684 = vmatprep.subr.bf16.mxu0 %v902
    %1685 = vmatpush2.bf16.msra.mxu0 %v901
    %1686 = vmatprep.mubr.bf16.mxu0 %v1530
    %1687 = vmatmul.mubr.bf16.gmra.mxu0 %v1529
    %v1688 = vpop.f32.mrf.mxu0
    %v1689 = vadd.f32 0.0, %v1688
    %v1690 = vpop.f32.mrf.mxu0
    %v1691 = vadd.f32 0.0, %v1690
    %v1692 = vpop.f32.mrf.mxu0
    %v1693 = vpop.f32.mrf.mxu0
    %1694 = vdwg.mxu0
    %v1695 = vadd.f32 %v1648, %v401
    %v1696 = vadd.f32 %v1650, %v405
    %v1697 = vadd.f32 %v1689, %v409
    %v1698 = vadd.f32 %v1691, %v413
    %v1699 = vxor.u32 %v1695, 2147483648
    %v1700 = vxor.u32 %v1696, 2147483648
    %v1701 = vmul.f32 %v1699, 1.442695
    %v1702 = vpow.pop %v1701
    %v1703 = vmul.f32 %v1700, 1.442695
    %v1704 = vpow.pop %v1703
    %v1705 = vadd.f32 %v1702, 1.0
    %v1706 = vadd.f32 %v1704, 1.0
    %v1707 = vrcp.pop %v1705
    %v1708 = vmul.f32 1.0, %v1707
    %v1709 = vrcp.pop %v1706
    %v1710 = vmul.f32 1.0, %v1709
    %v1711 = vtanh.pop %v1697
    %v1712 = vxor.u32 %v1698, 2147483648
    %v1713 = vmul.f32 %v1712, 1.442695
    %v1714 = vpow.pop %v1713
    %v1715 = vadd.f32 %v1714, 1.0
    %v1716 = vrcp.pop %v1715
    %v1717 = vmul.f32 1.0, %v1716
    %v1718 = vmul.f32 %v1710, %v1498
    %v1719 = vmul.f32 %v1708, %v1711
    %v1720 = vadd.f32 %v1718, %v1719
    %v1721 = vtanh.pop %v1720
    %v1722 = vmul.f32 %v1717, %v1721
    %v1723 = vadd.f32 %v171, %v1566
    %v1724 = vadd.f32 %v173, %v1568
    %v1725 = vadd.f32 %v244, %v1607
    %v1726 = vadd.f32 %v246, %v1609
    %v1727 = vxor.u32 %v1723, 2147483648
    %v1728 = vxor.u32 %v1724, 2147483648
    %v1729 = vmul.f32 %v1727, 1.442695
    %v1730 = vpow.pop %v1729
    %v1731 = vmul.f32 %v1728, 1.442695
    %v1732 = vpow.pop %v1731
    %v1733 = vadd.f32 %v1730, 1.0
    %v1734 = vadd.f32 %v1732, 1.0
    %v1735 = vrcp.pop %v1733
    %v1736 = vmul.f32 1.0, %v1735
    %v1737 = vrcp.pop %v1734
    %v1738 = vmul.f32 1.0, %v1737
    %v1739 = vtanh.pop %v1725
    %v1740 = vxor.u32 %v1726, 2147483648
    %v1741 = vmul.f32 %v1740, 1.442695
    %v1742 = vpow.pop %v1741
    %v1743 = vadd.f32 %v1742, 1.0
    %v1744 = vrcp.pop %v1743
    %v1745 = vmul.f32 1.0, %v1744
    %v1746 = vmul.f32 %v1738, %v1526
    %v1747 = vmul.f32 %v1736, %v1739
    %v1748 = vadd.f32 %v1746, %v1747
    %v1749 = vtanh.pop %v1748
    %v1750 = vmul.f32 %v1745, %v1749
    %v1751 = vpack.c.bf16 %v1750, %v1750
    %v1752 = vpack.c.bf16 %v1722, %v1722
    %1753 = vmatprep.subr.bf16.mxu0 %v888
    %1754 = vmatpush1.bf16.msra.mxu0 %v887
    %1755 = vmatprep.subr.bf16.mxu0 %v880
    %1756 = vmatpush1.bf16.msra.mxu0 %v879
    %1757 = vmatprep.subr.bf16.mxu0 %v872
    %1758 = vmatpush1.bf16.msra.mxu0 %v871
    %1759 = vmatprep.subr.bf16.mxu0 %v864
    %1760 = vmatpush1.bf16.msra.mxu0 %v863
    %1761 = vmatprep.subr.bf16.mxu0 %v856
    %1762 = vmatpush1.bf16.msra.mxu0 %v855
    %1763 = vmatprep.subr.bf16.mxu0 %v848
    %1764 = vmatpush1.bf16.msra.mxu0 %v847
    %1765 = vmatprep.subr.bf16.mxu0 %v840
    %1766 = vmatpush1.bf16.msra.mxu0 %v839
    %1767 = vmatprep.subr.bf16.mxu0 %v832
    %1768 = vmatpush1.bf16.msra.mxu0 %v831
    %1769 = vmatprep.subr.bf16.mxu0 %v952
    %1770 = vmatpush2.bf16.msra.mxu0 %v951
    %1771 = vmatprep.subr.bf16.mxu0 %v944
    %1772 = vmatpush2.bf16.msra.mxu0 %v943
    %1773 = vmatprep.subr.bf16.mxu0 %v936
    %1774 = vmatpush2.bf16.msra.mxu0 %v935
    %1775 = vmatprep.subr.bf16.mxu0 %v928
    %1776 = vmatpush2.bf16.msra.mxu0 %v927
    %1777 = vmatprep.subr.bf16.mxu0 %v920
    %1778 = vmatpush2.bf16.msra.mxu0 %v919
    %1779 = vmatprep.subr.bf16.mxu0 %v912
    %1780 = vmatpush2.bf16.msra.mxu0 %v911
    %1781 = vmatprep.subr.bf16.mxu0 %v904
    %1782 = vmatpush2.bf16.msra.mxu0 %v903
    %1783 = vmatprep.subr.bf16.mxu0 %v896
    %1784 = vmatpush2.bf16.msra.mxu0 %v895
    %1785 = vmatprep.mubr.bf16.mxu0 %v1752
    %1786 = vmatmul.mubr.bf16.gmra.mxu0 %v1751
    %v1787 = vpop.f32.mrf.mxu0
    %v1788 = vadd.f32 0.0, %v1787
    %v1789 = vpop.f32.mrf.mxu0
    %v1790 = vadd.f32 0.0, %v1789
    %v1791 = vpop.f32.mrf.mxu0
    %v1792 = vpop.f32.mrf.mxu0
    %1793 = vdwg.mxu0
    %1794 = vmatprep.subr.bf16.mxu0 %v890
    %1795 = vmatpush1.bf16.msra.mxu0 %v889
    %1796 = vmatprep.subr.bf16.mxu0 %v882
    %1797 = vmatpush1.bf16.msra.mxu0 %v881
    %1798 = vmatprep.subr.bf16.mxu0 %v874
    %1799 = vmatpush1.bf16.msra.mxu0 %v873
    %1800 = vmatprep.subr.bf16.mxu0 %v866
    %1801 = vmatpush1.bf16.msra.mxu0 %v865
    %1802 = vmatprep.subr.bf16.mxu0 %v858
    %1803 = vmatpush1.bf16.msra.mxu0 %v857
    %1804 = vmatprep.subr.bf16.mxu0 %v850
    %1805 = vmatpush1.bf16.msra.mxu0 %v849
    %1806 = vmatprep.subr.bf16.mxu0 %v842
    %1807 = vmatpush1.bf16.msra.mxu0 %v841
    %1808 = vmatprep.subr.bf16.mxu0 %v834
    %1809 = vmatpush1.bf16.msra.mxu0 %v833
    %1810 = vmatprep.subr.bf16.mxu0 %v954
    %1811 = vmatpush2.bf16.msra.mxu0 %v953
    %1812 = vmatprep.subr.bf16.mxu0 %v946
    %1813 = vmatpush2.bf16.msra.mxu0 %v945
    %1814 = vmatprep.subr.bf16.mxu0 %v938
    %1815 = vmatpush2.bf16.msra.mxu0 %v937
    %1816 = vmatprep.subr.bf16.mxu0 %v930
    %1817 = vmatpush2.bf16.msra.mxu0 %v929
    %1818 = vmatprep.subr.bf16.mxu0 %v922
    %1819 = vmatpush2.bf16.msra.mxu0 %v921
    %1820 = vmatprep.subr.bf16.mxu0 %v914
    %1821 = vmatpush2.bf16.msra.mxu0 %v913
    %1822 = vmatprep.subr.bf16.mxu0 %v906
    %1823 = vmatpush2.bf16.msra.mxu0 %v905
    %1824 = vmatprep.subr.bf16.mxu0 %v898
    %1825 = vmatpush2.bf16.msra.mxu0 %v897
    %1826 = vmatprep.mubr.bf16.mxu0 %v1752
    %1827 = vmatmul.mubr.bf16.gmra.mxu0 %v1751
    %v1828 = vpop.f32.mrf.mxu0
    %v1829 = vadd.f32 0.0, %v1828
    %v1830 = vpop.f32.mrf.mxu0
    %v1831 = vadd.f32 0.0, %v1830
    %v1832 = vpop.f32.mrf.mxu0
    %v1833 = vpop.f32.mrf.mxu0
    %1834 = vdwg.mxu0
    %1835 = vmatprep.subr.bf16.mxu0 %v892
    %1836 = vmatpush1.bf16.msra.mxu0 %v891
    %1837 = vmatprep.subr.bf16.mxu0 %v884
    %1838 = vmatpush1.bf16.msra.mxu0 %v883
    %1839 = vmatprep.subr.bf16.mxu0 %v876
    %1840 = vmatpush1.bf16.msra.mxu0 %v875
    %1841 = vmatprep.subr.bf16.mxu0 %v868
    %1842 = vmatpush1.bf16.msra.mxu0 %v867
    %1843 = vmatprep.subr.bf16.mxu0 %v860
    %1844 = vmatpush1.bf16.msra.mxu0 %v859
    %1845 = vmatprep.subr.bf16.mxu0 %v852
    %1846 = vmatpush1.bf16.msra.mxu0 %v851
    %1847 = vmatprep.subr.bf16.mxu0 %v844
    %1848 = vmatpush1.bf16.msra.mxu0 %v843
    %1849 = vmatprep.subr.bf16.mxu0 %v836
    %1850 = vmatpush1.bf16.msra.mxu0 %v835
    %1851 = vmatprep.subr.bf16.mxu0 %v956
    %1852 = vmatpush2.bf16.msra.mxu0 %v955
    %1853 = vmatprep.subr.bf16.mxu0 %v948
    %1854 = vmatpush2.bf16.msra.mxu0 %v947
    %1855 = vmatprep.subr.bf16.mxu0 %v940
    %1856 = vmatpush2.bf16.msra.mxu0 %v939
    %1857 = vmatprep.subr.bf16.mxu0 %v932
    %1858 = vmatpush2.bf16.msra.mxu0 %v931
    %1859 = vmatprep.subr.bf16.mxu0 %v924
    %1860 = vmatpush2.bf16.msra.mxu0 %v923
    %1861 = vmatprep.subr.bf16.mxu0 %v916
    %1862 = vmatpush2.bf16.msra.mxu0 %v915
    %1863 = vmatprep.subr.bf16.mxu0 %v908
    %1864 = vmatpush2.bf16.msra.mxu0 %v907
    %1865 = vmatprep.subr.bf16.mxu0 %v900
    %1866 = vmatpush2.bf16.msra.mxu0 %v899
    %1867 = vmatprep.mubr.bf16.mxu0 %v1752
    %1868 = vmatmul.mubr.bf16.gmra.mxu0 %v1751
    %v1869 = vpop.f32.mrf.mxu0
    %v1870 = vadd.f32 0.0, %v1869
    %v1871 = vpop.f32.mrf.mxu0
    %v1872 = vadd.f32 0.0, %v1871
    %v1873 = vpop.f32.mrf.mxu0
    %v1874 = vpop.f32.mrf.mxu0
    %1875 = vdwg.mxu0
    %1876 = vmatprep.subr.bf16.mxu0 %v894
    %1877 = vmatpush1.bf16.msra.mxu0 %v893
    %1878 = vmatprep.subr.bf16.mxu0 %v886
    %1879 = vmatpush1.bf16.msra.mxu0 %v885
    %1880 = vmatprep.subr.bf16.mxu0 %v878
    %1881 = vmatpush1.bf16.msra.mxu0 %v877
    %1882 = vmatprep.subr.bf16.mxu0 %v870
    %1883 = vmatpush1.bf16.msra.mxu0 %v869
    %1884 = vmatprep.subr.bf16.mxu0 %v862
    %1885 = vmatpush1.bf16.msra.mxu0 %v861
    %1886 = vmatprep.subr.bf16.mxu0 %v854
    %1887 = vmatpush1.bf16.msra.mxu0 %v853
    %1888 = vmatprep.subr.bf16.mxu0 %v846
    %1889 = vmatpush1.bf16.msra.mxu0 %v845
    %1890 = vmatprep.subr.bf16.mxu0 %v838
    %1891 = vmatpush1.bf16.msra.mxu0 %v837
    %1892 = vmatprep.subr.bf16.mxu0 %v958
    %1893 = vmatpush2.bf16.msra.mxu0 %v957
    %1894 = vmatprep.subr.bf16.mxu0 %v950
    %1895 = vmatpush2.bf16.msra.mxu0 %v949
    %1896 = vmatprep.subr.bf16.mxu0 %v942
    %1897 = vmatpush2.bf16.msra.mxu0 %v941
    %1898 = vmatprep.subr.bf16.mxu0 %v934
    %1899 = vmatpush2.bf16.msra.mxu0 %v933
    %1900 = vmatprep.subr.bf16.mxu0 %v926
    %1901 = vmatpush2.bf16.msra.mxu0 %v925
    %1902 = vmatprep.subr.bf16.mxu0 %v918
    %1903 = vmatpush2.bf16.msra.mxu0 %v917
    %1904 = vmatprep.subr.bf16.mxu0 %v910
    %1905 = vmatpush2.bf16.msra.mxu0 %v909
    %1906 = vmatprep.subr.bf16.mxu0 %v902
    %1907 = vmatpush2.bf16.msra.mxu0 %v901
    %1908 = vmatprep.mubr.bf16.mxu0 %v1752
    %1909 = vmatmul.mubr.bf16.gmra.mxu0 %v1751
    %v1910 = vpop.f32.mrf.mxu0
    %v1911 = vadd.f32 0.0, %v1910
    %v1912 = vpop.f32.mrf.mxu0
    %v1913 = vadd.f32 0.0, %v1912
    %v1914 = vpop.f32.mrf.mxu0
    %v1915 = vpop.f32.mrf.mxu0
    %1916 = vdwg.mxu0
    %v1917 = vadd.f32 %v1870, %v401
    %v1918 = vadd.f32 %v1872, %v405
    %v1919 = vadd.f32 %v1911, %v409
    %v1920 = vadd.f32 %v1913, %v413
    %v1921 = vxor.u32 %v1917, 2147483648
    %v1922 = vxor.u32 %v1918, 2147483648
    %v1923 = vmul.f32 %v1921, 1.442695
    %v1924 = vpow.pop %v1923
    %v1925 = vmul.f32 %v1922, 1.442695
    %v1926 = vpow.pop %v1925
    %v1927 = vadd.f32 %v1924, 1.0
    %v1928 = vadd.f32 %v1926, 1.0
    %v1929 = vrcp.pop %v1927
    %v1930 = vmul.f32 1.0, %v1929
    %v1931 = vrcp.pop %v1928
    %v1932 = vmul.f32 1.0, %v1931
    %v1933 = vtanh.pop %v1919
    %v1934 = vxor.u32 %v1920, 2147483648
    %v1935 = vmul.f32 %v1934, 1.442695
    %v1936 = vpow.pop %v1935
    %v1937 = vadd.f32 %v1936, 1.0
    %v1938 = vrcp.pop %v1937
    %v1939 = vmul.f32 1.0, %v1938
    %v1940 = vmul.f32 %v1932, %v1720
    %v1941 = vmul.f32 %v1930, %v1933
    %v1942 = vadd.f32 %v1940, %v1941
    %v1943 = vtanh.pop %v1942
    %v1944 = vmul.f32 %v1939, %v1943
    %v1945 = vadd.f32 %v177, %v1788
    %v1946 = vadd.f32 %v179, %v1790
    %v1947 = vadd.f32 %v250, %v1829
    %v1948 = vadd.f32 %v252, %v1831
    %v1949 = vxor.u32 %v1945, 2147483648
    %v1950 = vxor.u32 %v1946, 2147483648
    %v1951 = vmul.f32 %v1949, 1.442695
    %v1952 = vpow.pop %v1951
    %v1953 = vmul.f32 %v1950, 1.442695
    %v1954 = vpow.pop %v1953
    %v1955 = vadd.f32 %v1952, 1.0
    %v1956 = vadd.f32 %v1954, 1.0
    %v1957 = vrcp.pop %v1955
    %v1958 = vmul.f32 1.0, %v1957
    %v1959 = vrcp.pop %v1956
    %v1960 = vmul.f32 1.0, %v1959
    %v1961 = vtanh.pop %v1947
    %v1962 = vxor.u32 %v1948, 2147483648
    %v1963 = vmul.f32 %v1962, 1.442695
    %v1964 = vpow.pop %v1963
    %v1965 = vadd.f32 %v1964, 1.0
    %v1966 = vrcp.pop %v1965
    %v1967 = vmul.f32 1.0, %v1966
    %v1968 = vmul.f32 %v1960, %v1748
    %v1969 = vmul.f32 %v1958, %v1961
    %v1970 = vadd.f32 %v1968, %v1969
    %v1971 = vtanh.pop %v1970
    %v1972 = vmul.f32 %v1967, %v1971
    %v1973 = vpack.c.bf16 %v1972, %v1972
    %v1974 = vpack.c.bf16 %v1944, %v1944
    %1975 = vmatprep.subr.bf16.mxu0 %v888
    %1976 = vmatpush1.bf16.msra.mxu0 %v887
    %1977 = vmatprep.subr.bf16.mxu0 %v880
    %1978 = vmatpush1.bf16.msra.mxu0 %v879
    %1979 = vmatprep.subr.bf16.mxu0 %v872
    %1980 = vmatpush1.bf16.msra.mxu0 %v871
    %1981 = vmatprep.subr.bf16.mxu0 %v864
    %1982 = vmatpush1.bf16.msra.mxu0 %v863
    %1983 = vmatprep.subr.bf16.mxu0 %v856
    %1984 = vmatpush1.bf16.msra.mxu0 %v855
    %1985 = vmatprep.subr.bf16.mxu0 %v848
    %1986 = vmatpush1.bf16.msra.mxu0 %v847
    %1987 = vmatprep.subr.bf16.mxu0 %v840
    %1988 = vmatpush1.bf16.msra.mxu0 %v839
    %1989 = vmatprep.subr.bf16.mxu0 %v832
    %1990 = vmatpush1.bf16.msra.mxu0 %v831
    %1991 = vmatprep.subr.bf16.mxu0 %v952
    %1992 = vmatpush2.bf16.msra.mxu0 %v951
    %1993 = vmatprep.subr.bf16.mxu0 %v944
    %1994 = vmatpush2.bf16.msra.mxu0 %v943
    %1995 = vmatprep.subr.bf16.mxu0 %v936
    %1996 = vmatpush2.bf16.msra.mxu0 %v935
    %1997 = vmatprep.subr.bf16.mxu0 %v928
    %1998 = vmatpush2.bf16.msra.mxu0 %v927
    %1999 = vmatprep.subr.bf16.mxu0 %v920
    %2000 = vmatpush2.bf16.msra.mxu0 %v919
    %2001 = vmatprep.subr.bf16.mxu0 %v912
    %2002 = vmatpush2.bf16.msra.mxu0 %v911
    %2003 = vmatprep.subr.bf16.mxu0 %v904
    %2004 = vmatpush2.bf16.msra.mxu0 %v903
    %2005 = vmatprep.subr.bf16.mxu0 %v896
    %2006 = vmatpush2.bf16.msra.mxu0 %v895
    %2007 = vmatprep.mubr.bf16.mxu0 %v1974
    %2008 = vmatmul.mubr.bf16.gmra.mxu0 %v1973
    %v2009 = vpop.f32.mrf.mxu0
    %v2010 = vadd.f32 0.0, %v2009
    %v2011 = vpop.f32.mrf.mxu0
    %v2012 = vadd.f32 0.0, %v2011
    %v2013 = vpop.f32.mrf.mxu0
    %v2014 = vpop.f32.mrf.mxu0
    %2015 = vdwg.mxu0
    %2016 = vmatprep.subr.bf16.mxu0 %v890
    %2017 = vmatpush1.bf16.msra.mxu0 %v889
    %2018 = vmatprep.subr.bf16.mxu0 %v882
    %2019 = vmatpush1.bf16.msra.mxu0 %v881
    %2020 = vmatprep.subr.bf16.mxu0 %v874
    %2021 = vmatpush1.bf16.msra.mxu0 %v873
    %2022 = vmatprep.subr.bf16.mxu0 %v866
    %2023 = vmatpush1.bf16.msra.mxu0 %v865
    %2024 = vmatprep.subr.bf16.mxu0 %v858
    %2025 = vmatpush1.bf16.msra.mxu0 %v857
    %2026 = vmatprep.subr.bf16.mxu0 %v850
    %2027 = vmatpush1.bf16.msra.mxu0 %v849
    %2028 = vmatprep.subr.bf16.mxu0 %v842
    %2029 = vmatpush1.bf16.msra.mxu0 %v841
    %2030 = vmatprep.subr.bf16.mxu0 %v834
    %2031 = vmatpush1.bf16.msra.mxu0 %v833
    %2032 = vmatprep.subr.bf16.mxu0 %v954
    %2033 = vmatpush2.bf16.msra.mxu0 %v953
    %2034 = vmatprep.subr.bf16.mxu0 %v946
    %2035 = vmatpush2.bf16.msra.mxu0 %v945
    %2036 = vmatprep.subr.bf16.mxu0 %v938
    %2037 = vmatpush2.bf16.msra.mxu0 %v937
    %2038 = vmatprep.subr.bf16.mxu0 %v930
    %2039 = vmatpush2.bf16.msra.mxu0 %v929
    %2040 = vmatprep.subr.bf16.mxu0 %v922
    %2041 = vmatpush2.bf16.msra.mxu0 %v921
    %2042 = vmatprep.subr.bf16.mxu0 %v914
    %2043 = vmatpush2.bf16.msra.mxu0 %v913
    %2044 = vmatprep.subr.bf16.mxu0 %v906
    %2045 = vmatpush2.bf16.msra.mxu0 %v905
    %2046 = vmatprep.subr.bf16.mxu0 %v898
    %2047 = vmatpush2.bf16.msra.mxu0 %v897
    %2048 = vmatprep.mubr.bf16.mxu0 %v1974
    %2049 = vmatmul.mubr.bf16.gmra.mxu0 %v1973
    %v2050 = vpop.f32.mrf.mxu0
    %v2051 = vadd.f32 0.0, %v2050
    %v2052 = vpop.f32.mrf.mxu0
    %v2053 = vadd.f32 0.0, %v2052
    %v2054 = vpop.f32.mrf.mxu0
    %v2055 = vpop.f32.mrf.mxu0
    %2056 = vdwg.mxu0
    %2057 = vmatprep.subr.bf16.mxu0 %v892
    %2058 = vmatpush1.bf16.msra.mxu0 %v891
    %2059 = vmatprep.subr.bf16.mxu0 %v884
    %2060 = vmatpush1.bf16.msra.mxu0 %v883
    %2061 = vmatprep.subr.bf16.mxu0 %v876
    %2062 = vmatpush1.bf16.msra.mxu0 %v875
    %2063 = vmatprep.subr.bf16.mxu0 %v868
    %2064 = vmatpush1.bf16.msra.mxu0 %v867
    %2065 = vmatprep.subr.bf16.mxu0 %v860
    %2066 = vmatpush1.bf16.msra.mxu0 %v859
    %2067 = vmatprep.subr.bf16.mxu0 %v852
    %2068 = vmatpush1.bf16.msra.mxu0 %v851
    %2069 = vmatprep.subr.bf16.mxu0 %v844
    %2070 = vmatpush1.bf16.msra.mxu0 %v843
    %2071 = vmatprep.subr.bf16.mxu0 %v836
    %2072 = vmatpush1.bf16.msra.mxu0 %v835
    %2073 = vmatprep.subr.bf16.mxu0 %v956
    %2074 = vmatpush2.bf16.msra.mxu0 %v955
    %2075 = vmatprep.subr.bf16.mxu0 %v948
    %2076 = vmatpush2.bf16.msra.mxu0 %v947
    %2077 = vmatprep.subr.bf16.mxu0 %v940
    %2078 = vmatpush2.bf16.msra.mxu0 %v939
    %2079 = vmatprep.subr.bf16.mxu0 %v932
    %2080 = vmatpush2.bf16.msra.mxu0 %v931
    %2081 = vmatprep.subr.bf16.mxu0 %v924
    %2082 = vmatpush2.bf16.msra.mxu0 %v923
    %2083 = vmatprep.subr.bf16.mxu0 %v916
    %2084 = vmatpush2.bf16.msra.mxu0 %v915
    %2085 = vmatprep.subr.bf16.mxu0 %v908
    %2086 = vmatpush2.bf16.msra.mxu0 %v907
    %2087 = vmatprep.subr.bf16.mxu0 %v900
    %2088 = vmatpush2.bf16.msra.mxu0 %v899
    %2089 = vmatprep.mubr.bf16.mxu0 %v1974
    %2090 = vmatmul.mubr.bf16.gmra.mxu0 %v1973
    %v2091 = vpop.f32.mrf.mxu0
    %v2092 = vadd.f32 0.0, %v2091
    %v2093 = vpop.f32.mrf.mxu0
    %v2094 = vadd.f32 0.0, %v2093
    %v2095 = vpop.f32.mrf.mxu0
    %v2096 = vpop.f32.mrf.mxu0
    %2097 = vdwg.mxu0
    %2098 = vmatprep.subr.bf16.mxu0 %v894
    %2099 = vmatpush1.bf16.msra.mxu0 %v893
    %2100 = vmatprep.subr.bf16.mxu0 %v886
    %2101 = vmatpush1.bf16.msra.mxu0 %v885
    %2102 = vmatprep.subr.bf16.mxu0 %v878
    %2103 = vmatpush1.bf16.msra.mxu0 %v877
    %2104 = vmatprep.subr.bf16.mxu0 %v870
    %2105 = vmatpush1.bf16.msra.mxu0 %v869
    %2106 = vmatprep.subr.bf16.mxu0 %v862
    %2107 = vmatpush1.bf16.msra.mxu0 %v861
    %2108 = vmatprep.subr.bf16.mxu0 %v854
    %2109 = vmatpush1.bf16.msra.mxu0 %v853
    %2110 = vmatprep.subr.bf16.mxu0 %v846
    %2111 = vmatpush1.bf16.msra.mxu0 %v845
    %2112 = vmatprep.subr.bf16.mxu0 %v838
    %2113 = vmatpush1.bf16.msra.mxu0 %v837
    %2114 = vmatprep.subr.bf16.mxu0 %v958
    %2115 = vmatpush2.bf16.msra.mxu0 %v957
    %2116 = vmatprep.subr.bf16.mxu0 %v950
    %2117 = vmatpush2.bf16.msra.mxu0 %v949
    %2118 = vmatprep.subr.bf16.mxu0 %v942
    %2119 = vmatpush2.bf16.msra.mxu0 %v941
    %2120 = vmatprep.subr.bf16.mxu0 %v934
    %2121 = vmatpush2.bf16.msra.mxu0 %v933
    %2122 = vmatprep.subr.bf16.mxu0 %v926
    %2123 = vmatpush2.bf16.msra.mxu0 %v925
    %2124 = vmatprep.subr.bf16.mxu0 %v918
    %2125 = vmatpush2.bf16.msra.mxu0 %v917
    %2126 = vmatprep.subr.bf16.mxu0 %v910
    %2127 = vmatpush2.bf16.msra.mxu0 %v909
    %2128 = vmatprep.subr.bf16.mxu0 %v902
    %2129 = vmatpush2.bf16.msra.mxu0 %v901
    %2130 = vmatprep.mubr.bf16.mxu0 %v1974
    %2131 = vmatmul.mubr.bf16.gmra.mxu0 %v1973
    %v2132 = vpop.f32.mrf.mxu0
    %v2133 = vadd.f32 0.0, %v2132
    %v2134 = vpop.f32.mrf.mxu0
    %v2135 = vadd.f32 0.0, %v2134
    %v2136 = vpop.f32.mrf.mxu0
    %v2137 = vpop.f32.mrf.mxu0
    %2138 = vdwg.mxu0
    %v2139 = vadd.f32 %v2092, %v401
    %v2140 = vadd.f32 %v2094, %v405
    %v2141 = vadd.f32 %v2133, %v409
    %v2142 = vadd.f32 %v2135, %v413
    %v2143 = vxor.u32 %v2139, 2147483648
    %v2144 = vxor.u32 %v2140, 2147483648
    %v2145 = vmul.f32 %v2143, 1.442695
    %v2146 = vpow.pop %v2145
    %v2147 = vmul.f32 %v2144, 1.442695
    %v2148 = vpow.pop %v2147
    %v2149 = vadd.f32 %v2146, 1.0
    %v2150 = vadd.f32 %v2148, 1.0
    %v2151 = vrcp.pop %v2149
    %v2152 = vmul.f32 1.0, %v2151
    %v2153 = vrcp.pop %v2150
    %v2154 = vmul.f32 1.0, %v2153
    %v2155 = vtanh.pop %v2141
    %v2156 = vxor.u32 %v2142, 2147483648
    %v2157 = vmul.f32 %v2156, 1.442695
    %v2158 = vpow.pop %v2157
    %v2159 = vadd.f32 %v2158, 1.0
    %v2160 = vrcp.pop %v2159
    %v2161 = vmul.f32 1.0, %v2160
    %v2162 = vmul.f32 %v2154, %v1942
    %v2163 = vmul.f32 %v2152, %v2155
    %v2164 = vadd.f32 %v2162, %v2163
    %v2165 = vtanh.pop %v2164
    %v2166 = vmul.f32 %v2161, %v2165
    %v2167 = vadd.f32 %v181, %v2010
    %v2168 = vadd.f32 %v183, %v2012
    %v2169 = vadd.f32 %v254, %v2051
    %v2170 = vadd.f32 %v256, %v2053
    %v2171 = vxor.u32 %v2167, 2147483648
    %v2172 = vxor.u32 %v2168, 2147483648
    %v2173 = vmul.f32 %v2171, 1.442695
    %v2174 = vpow.pop %v2173
    %v2175 = vmul.f32 %v2172, 1.442695
    %v2176 = vpow.pop %v2175
    %v2177 = vadd.f32 %v2174, 1.0
    %v2178 = vadd.f32 %v2176, 1.0
    %v2179 = vrcp.pop %v2177
    %v2180 = vmul.f32 1.0, %v2179
    %v2181 = vrcp.pop %v2178
    %v2182 = vmul.f32 1.0, %v2181
    %v2183 = vtanh.pop %v2169
    %v2184 = vxor.u32 %v2170, 2147483648
    %v2185 = vmul.f32 %v2184, 1.442695
    %v2186 = vpow.pop %v2185
    %v2187 = vadd.f32 %v2186, 1.0
    %v2188 = vrcp.pop %v2187
    %v2189 = vmul.f32 1.0, %v2188
    %v2190 = vmul.f32 %v2182, %v1970
    %v2191 = vmul.f32 %v2180, %v2183
    %v2192 = vadd.f32 %v2190, %v2191
    %v2193 = vtanh.pop %v2192
    %v2194 = vmul.f32 %v2189, %v2193
    %v2195 = vpack.c.bf16 %v2194, %v2194
    %v2196 = vpack.c.bf16 %v2166, %v2166
    %2197 = vmatprep.subr.bf16.mxu0 %v888
    %2198 = vmatpush1.bf16.msra.mxu0 %v887
    %2199 = vmatprep.subr.bf16.mxu0 %v880
    %2200 = vmatpush1.bf16.msra.mxu0 %v879
    %2201 = vmatprep.subr.bf16.mxu0 %v872
    %2202 = vmatpush1.bf16.msra.mxu0 %v871
    %2203 = vmatprep.subr.bf16.mxu0 %v864
    %2204 = vmatpush1.bf16.msra.mxu0 %v863
    %2205 = vmatprep.subr.bf16.mxu0 %v856
    %2206 = vmatpush1.bf16.msra.mxu0 %v855
    %2207 = vmatprep.subr.bf16.mxu0 %v848
    %2208 = vmatpush1.bf16.msra.mxu0 %v847
    %2209 = vmatprep.subr.bf16.mxu0 %v840
    %2210 = vmatpush1.bf16.msra.mxu0 %v839
    %2211 = vmatprep.subr.bf16.mxu0 %v832
    %2212 = vmatpush1.bf16.msra.mxu0 %v831
    %2213 = vmatprep.subr.bf16.mxu0 %v952
    %2214 = vmatpush2.bf16.msra.mxu0 %v951
    %2215 = vmatprep.subr.bf16.mxu0 %v944
    %2216 = vmatpush2.bf16.msra.mxu0 %v943
    %2217 = vmatprep.subr.bf16.mxu0 %v936
    %2218 = vmatpush2.bf16.msra.mxu0 %v935
    %2219 = vmatprep.subr.bf16.mxu0 %v928
    %2220 = vmatpush2.bf16.msra.mxu0 %v927
    %2221 = vmatprep.subr.bf16.mxu0 %v920
    %2222 = vmatpush2.bf16.msra.mxu0 %v919
    %2223 = vmatprep.subr.bf16.mxu0 %v912
    %2224 = vmatpush2.bf16.msra.mxu0 %v911
    %2225 = vmatprep.subr.bf16.mxu0 %v904
    %2226 = vmatpush2.bf16.msra.mxu0 %v903
    %2227 = vmatprep.subr.bf16.mxu0 %v896
    %2228 = vmatpush2.bf16.msra.mxu0 %v895
    %2229 = vmatprep.mubr.bf16.mxu0 %v2196
    %2230 = vmatmul.mubr.bf16.gmra.mxu0 %v2195
    %v2231 = vpop.f32.mrf.mxu0
    %v2232 = vadd.f32 0.0, %v2231
    %v2233 = vpop.f32.mrf.mxu0
    %v2234 = vadd.f32 0.0, %v2233
    %v2235 = vpop.f32.mrf.mxu0
    %v2236 = vpop.f32.mrf.mxu0
    %2237 = vdwg.mxu0
    %2238 = vmatprep.subr.bf16.mxu0 %v890
    %2239 = vmatpush1.bf16.msra.mxu0 %v889
    %2240 = vmatprep.subr.bf16.mxu0 %v882
    %2241 = vmatpush1.bf16.msra.mxu0 %v881
    %2242 = vmatprep.subr.bf16.mxu0 %v874
    %2243 = vmatpush1.bf16.msra.mxu0 %v873
    %2244 = vmatprep.subr.bf16.mxu0 %v866
    %2245 = vmatpush1.bf16.msra.mxu0 %v865
    %2246 = vmatprep.subr.bf16.mxu0 %v858
    %2247 = vmatpush1.bf16.msra.mxu0 %v857
    %2248 = vmatprep.subr.bf16.mxu0 %v850
    %2249 = vmatpush1.bf16.msra.mxu0 %v849
    %2250 = vmatprep.subr.bf16.mxu0 %v842
    %2251 = vmatpush1.bf16.msra.mxu0 %v841
    %2252 = vmatprep.subr.bf16.mxu0 %v834
    %2253 = vmatpush1.bf16.msra.mxu0 %v833
    %2254 = vmatprep.subr.bf16.mxu0 %v954
    %2255 = vmatpush2.bf16.msra.mxu0 %v953
    %2256 = vmatprep.subr.bf16.mxu0 %v946
    %2257 = vmatpush2.bf16.msra.mxu0 %v945
    %2258 = vmatprep.subr.bf16.mxu0 %v938
    %2259 = vmatpush2.bf16.msra.mxu0 %v937
    %2260 = vmatprep.subr.bf16.mxu0 %v930
    %2261 = vmatpush2.bf16.msra.mxu0 %v929
    %2262 = vmatprep.subr.bf16.mxu0 %v922
    %2263 = vmatpush2.bf16.msra.mxu0 %v921
    %2264 = vmatprep.subr.bf16.mxu0 %v914
    %2265 = vmatpush2.bf16.msra.mxu0 %v913
    %2266 = vmatprep.subr.bf16.mxu0 %v906
    %2267 = vmatpush2.bf16.msra.mxu0 %v905
    %2268 = vmatprep.subr.bf16.mxu0 %v898
    %2269 = vmatpush2.bf16.msra.mxu0 %v897
    %2270 = vmatprep.mubr.bf16.mxu0 %v2196
    %2271 = vmatmul.mubr.bf16.gmra.mxu0 %v2195
    %v2272 = vpop.f32.mrf.mxu0
    %v2273 = vadd.f32 0.0, %v2272
    %v2274 = vpop.f32.mrf.mxu0
    %v2275 = vadd.f32 0.0, %v2274
    %v2276 = vpop.f32.mrf.mxu0
    %v2277 = vpop.f32.mrf.mxu0
    %2278 = vdwg.mxu0
    %2279 = vmatprep.subr.bf16.mxu0 %v892
    %2280 = vmatpush1.bf16.msra.mxu0 %v891
    %2281 = vmatprep.subr.bf16.mxu0 %v884
    %2282 = vmatpush1.bf16.msra.mxu0 %v883
    %2283 = vmatprep.subr.bf16.mxu0 %v876
    %2284 = vmatpush1.bf16.msra.mxu0 %v875
    %2285 = vmatprep.subr.bf16.mxu0 %v868
    %2286 = vmatpush1.bf16.msra.mxu0 %v867
    %2287 = vmatprep.subr.bf16.mxu0 %v860
    %2288 = vmatpush1.bf16.msra.mxu0 %v859
    %2289 = vmatprep.subr.bf16.mxu0 %v852
    %2290 = vmatpush1.bf16.msra.mxu0 %v851
    %2291 = vmatprep.subr.bf16.mxu0 %v844
    %2292 = vmatpush1.bf16.msra.mxu0 %v843
    %2293 = vmatprep.subr.bf16.mxu0 %v836
    %2294 = vmatpush1.bf16.msra.mxu0 %v835
    %2295 = vmatprep.subr.bf16.mxu0 %v956
    %2296 = vmatpush2.bf16.msra.mxu0 %v955
    %2297 = vmatprep.subr.bf16.mxu0 %v948
    %2298 = vmatpush2.bf16.msra.mxu0 %v947
    %2299 = vmatprep.subr.bf16.mxu0 %v940
    %2300 = vmatpush2.bf16.msra.mxu0 %v939
    %2301 = vmatprep.subr.bf16.mxu0 %v932
    %2302 = vmatpush2.bf16.msra.mxu0 %v931
    %2303 = vmatprep.subr.bf16.mxu0 %v924
    %2304 = vmatpush2.bf16.msra.mxu0 %v923
    %2305 = vmatprep.subr.bf16.mxu0 %v916
    %2306 = vmatpush2.bf16.msra.mxu0 %v915
    %2307 = vmatprep.subr.bf16.mxu0 %v908
    %2308 = vmatpush2.bf16.msra.mxu0 %v907
    %2309 = vmatprep.subr.bf16.mxu0 %v900
    %2310 = vmatpush2.bf16.msra.mxu0 %v899
    %2311 = vmatprep.mubr.bf16.mxu0 %v2196
    %2312 = vmatmul.mubr.bf16.gmra.mxu0 %v2195
    %v2313 = vpop.f32.mrf.mxu0
    %v2314 = vadd.f32 0.0, %v2313
    %v2315 = vpop.f32.mrf.mxu0
    %v2316 = vadd.f32 0.0, %v2315
    %v2317 = vpop.f32.mrf.mxu0
    %v2318 = vpop.f32.mrf.mxu0
    %2319 = vdwg.mxu0
    %2320 = vmatprep.subr.bf16.mxu0 %v894
    %2321 = vmatpush1.bf16.msra.mxu0 %v893
    %2322 = vmatprep.subr.bf16.mxu0 %v886
    %2323 = vmatpush1.bf16.msra.mxu0 %v885
    %2324 = vmatprep.subr.bf16.mxu0 %v878
    %2325 = vmatpush1.bf16.msra.mxu0 %v877
    %2326 = vmatprep.subr.bf16.mxu0 %v870
    %2327 = vmatpush1.bf16.msra.mxu0 %v869
    %2328 = vmatprep.subr.bf16.mxu0 %v862
    %2329 = vmatpush1.bf16.msra.mxu0 %v861
    %2330 = vmatprep.subr.bf16.mxu0 %v854
    %2331 = vmatpush1.bf16.msra.mxu0 %v853
    %2332 = vmatprep.subr.bf16.mxu0 %v846
    %2333 = vmatpush1.bf16.msra.mxu0 %v845
    %2334 = vmatprep.subr.bf16.mxu0 %v838
    %2335 = vmatpush1.bf16.msra.mxu0 %v837
    %2336 = vmatprep.subr.bf16.mxu0 %v958
    %2337 = vmatpush2.bf16.msra.mxu0 %v957
    %2338 = vmatprep.subr.bf16.mxu0 %v950
    %2339 = vmatpush2.bf16.msra.mxu0 %v949
    %2340 = vmatprep.subr.bf16.mxu0 %v942
    %2341 = vmatpush2.bf16.msra.mxu0 %v941
    %2342 = vmatprep.subr.bf16.mxu0 %v934
    %2343 = vmatpush2.bf16.msra.mxu0 %v933
    %2344 = vmatprep.subr.bf16.mxu0 %v926
    %2345 = vmatpush2.bf16.msra.mxu0 %v925
    %2346 = vmatprep.subr.bf16.mxu0 %v918
    %2347 = vmatpush2.bf16.msra.mxu0 %v917
    %2348 = vmatprep.subr.bf16.mxu0 %v910
    %2349 = vmatpush2.bf16.msra.mxu0 %v909
    %2350 = vmatprep.subr.bf16.mxu0 %v902
    %2351 = vmatpush2.bf16.msra.mxu0 %v901
    %2352 = vmatprep.mubr.bf16.mxu0 %v2196
    %2353 = vmatmul.mubr.bf16.gmra.mxu0 %v2195
    %v2354 = vpop.f32.mrf.mxu0
    %v2355 = vadd.f32 0.0, %v2354
    %v2356 = vpop.f32.mrf.mxu0
    %v2357 = vadd.f32 0.0, %v2356
    %v2358 = vpop.f32.mrf.mxu0
    %v2359 = vpop.f32.mrf.mxu0
    %2360 = vdwg.mxu0
    %v2361 = vadd.f32 %v2314, %v401
    %v2362 = vadd.f32 %v2316, %v405
    %v2363 = vadd.f32 %v2355, %v409
    %v2364 = vadd.f32 %v2357, %v413
    %v2365 = vxor.u32 %v2361, 2147483648
    %v2366 = vxor.u32 %v2362, 2147483648
    %v2367 = vmul.f32 %v2365, 1.442695
    %v2368 = vpow.pop %v2367
    %v2369 = vmul.f32 %v2366, 1.442695
    %v2370 = vpow.pop %v2369
    %v2371 = vadd.f32 %v2368, 1.0
    %v2372 = vadd.f32 %v2370, 1.0
    %v2373 = vrcp.pop %v2371
    %v2374 = vmul.f32 1.0, %v2373
    %v2375 = vrcp.pop %v2372
    %v2376 = vmul.f32 1.0, %v2375
    %v2377 = vtanh.pop %v2363
    %v2378 = vxor.u32 %v2364, 2147483648
    %v2379 = vmul.f32 %v2378, 1.442695
    %v2380 = vpow.pop %v2379
    %v2381 = vadd.f32 %v2380, 1.0
    %v2382 = vrcp.pop %v2381
    %v2383 = vmul.f32 1.0, %v2382
    %v2384 = vmul.f32 %v2376, %v2164
    %v2385 = vmul.f32 %v2374, %v2377
    %v2386 = vadd.f32 %v2384, %v2385
    %v2387 = vtanh.pop %v2386
    %v2388 = vmul.f32 %v2383, %v2387
    %v2389 = vadd.f32 %v187, %v2232
    %v2390 = vadd.f32 %v189, %v2234
    %v2391 = vadd.f32 %v260, %v2273
    %v2392 = vadd.f32 %v262, %v2275
    %v2393 = vxor.u32 %v2389, 2147483648
    %v2394 = vxor.u32 %v2390, 2147483648
    %v2395 = vmul.f32 %v2393, 1.442695
    %v2396 = vpow.pop %v2395
    %v2397 = vmul.f32 %v2394, 1.442695
    %v2398 = vpow.pop %v2397
    %v2399 = vadd.f32 %v2396, 1.0
    %v2400 = vadd.f32 %v2398, 1.0
    %v2401 = vrcp.pop %v2399
    %v2402 = vmul.f32 1.0, %v2401
    %v2403 = vrcp.pop %v2400
    %v2404 = vmul.f32 1.0, %v2403
    %v2405 = vtanh.pop %v2391
    %v2406 = vxor.u32 %v2392, 2147483648
    %v2407 = vmul.f32 %v2406, 1.442695
    %v2408 = vpow.pop %v2407
    %v2409 = vadd.f32 %v2408, 1.0
    %v2410 = vrcp.pop %v2409
    %v2411 = vmul.f32 1.0, %v2410
    %v2412 = vmul.f32 %v2404, %v2192
    %v2413 = vmul.f32 %v2402, %v2405
    %v2414 = vadd.f32 %v2412, %v2413
    %v2415 = vtanh.pop %v2414
    %v2416 = vmul.f32 %v2411, %v2415
    %v2417 = vpack.c.bf16 %v2416, %v2416
    %v2418 = vpack.c.bf16 %v2388, %v2388
    %2419 = vmatprep.subr.bf16.mxu0 %v888
    %2420 = vmatpush1.bf16.msra.mxu0 %v887
    %2421 = vmatprep.subr.bf16.mxu0 %v880
    %2422 = vmatpush1.bf16.msra.mxu0 %v879
    %2423 = vmatprep.subr.bf16.mxu0 %v872
    %2424 = vmatpush1.bf16.msra.mxu0 %v871
    %2425 = vmatprep.subr.bf16.mxu0 %v864
    %2426 = vmatpush1.bf16.msra.mxu0 %v863
    %2427 = vmatprep.subr.bf16.mxu0 %v856
    %2428 = vmatpush1.bf16.msra.mxu0 %v855
    %2429 = vmatprep.subr.bf16.mxu0 %v848
    %2430 = vmatpush1.bf16.msra.mxu0 %v847
    %2431 = vmatprep.subr.bf16.mxu0 %v840
    %2432 = vmatpush1.bf16.msra.mxu0 %v839
    %2433 = vmatprep.subr.bf16.mxu0 %v832
    %2434 = vmatpush1.bf16.msra.mxu0 %v831
    %2435 = vmatprep.subr.bf16.mxu0 %v952
    %2436 = vmatpush2.bf16.msra.mxu0 %v951
    %2437 = vmatprep.subr.bf16.mxu0 %v944
    %2438 = vmatpush2.bf16.msra.mxu0 %v943
    %2439 = vmatprep.subr.bf16.mxu0 %v936
    %2440 = vmatpush2.bf16.msra.mxu0 %v935
    %2441 = vmatprep.subr.bf16.mxu0 %v928
    %2442 = vmatpush2.bf16.msra.mxu0 %v927
    %2443 = vmatprep.subr.bf16.mxu0 %v920
    %2444 = vmatpush2.bf16.msra.mxu0 %v919
    %2445 = vmatprep.subr.bf16.mxu0 %v912
    %2446 = vmatpush2.bf16.msra.mxu0 %v911
    %2447 = vmatprep.subr.bf16.mxu0 %v904
    %2448 = vmatpush2.bf16.msra.mxu0 %v903
    %2449 = vmatprep.subr.bf16.mxu0 %v896
    %2450 = vmatpush2.bf16.msra.mxu0 %v895
    %2451 = vmatprep.mubr.bf16.mxu0 %v2418
    %2452 = vmatmul.mubr.bf16.gmra.mxu0 %v2417
    %v2453 = vpop.f32.mrf.mxu0
    %v2454 = vadd.f32 0.0, %v2453
    %v2455 = vpop.f32.mrf.mxu0
    %v2456 = vadd.f32 0.0, %v2455
    %v2457 = vpop.f32.mrf.mxu0
    %v2458 = vpop.f32.mrf.mxu0
    %2459 = vdwg.mxu0
    %2460 = vmatprep.subr.bf16.mxu0 %v890
    %2461 = vmatpush1.bf16.msra.mxu0 %v889
    %2462 = vmatprep.subr.bf16.mxu0 %v882
    %2463 = vmatpush1.bf16.msra.mxu0 %v881
    %2464 = vmatprep.subr.bf16.mxu0 %v874
    %2465 = vmatpush1.bf16.msra.mxu0 %v873
    %2466 = vmatprep.subr.bf16.mxu0 %v866
    %2467 = vmatpush1.bf16.msra.mxu0 %v865
    %2468 = vmatprep.subr.bf16.mxu0 %v858
    %2469 = vmatpush1.bf16.msra.mxu0 %v857
    %2470 = vmatprep.subr.bf16.mxu0 %v850
    %2471 = vmatpush1.bf16.msra.mxu0 %v849
    %2472 = vmatprep.subr.bf16.mxu0 %v842
    %2473 = vmatpush1.bf16.msra.mxu0 %v841
    %2474 = vmatprep.subr.bf16.mxu0 %v834
    %2475 = vmatpush1.bf16.msra.mxu0 %v833
    %2476 = vmatprep.subr.bf16.mxu0 %v954
    %2477 = vmatpush2.bf16.msra.mxu0 %v953
    %2478 = vmatprep.subr.bf16.mxu0 %v946
    %2479 = vmatpush2.bf16.msra.mxu0 %v945
    %2480 = vmatprep.subr.bf16.mxu0 %v938
    %2481 = vmatpush2.bf16.msra.mxu0 %v937
    %2482 = vmatprep.subr.bf16.mxu0 %v930
    %2483 = vmatpush2.bf16.msra.mxu0 %v929
    %2484 = vmatprep.subr.bf16.mxu0 %v922
    %2485 = vmatpush2.bf16.msra.mxu0 %v921
    %2486 = vmatprep.subr.bf16.mxu0 %v914
    %2487 = vmatpush2.bf16.msra.mxu0 %v913
    %2488 = vmatprep.subr.bf16.mxu0 %v906
    %2489 = vmatpush2.bf16.msra.mxu0 %v905
    %2490 = vmatprep.subr.bf16.mxu0 %v898
    %2491 = vmatpush2.bf16.msra.mxu0 %v897
    %2492 = vmatprep.mubr.bf16.mxu0 %v2418
    %2493 = vmatmul.mubr.bf16.gmra.mxu0 %v2417
    %v2494 = vpop.f32.mrf.mxu0
    %v2495 = vadd.f32 0.0, %v2494
    %v2496 = vpop.f32.mrf.mxu0
    %v2497 = vadd.f32 0.0, %v2496
    %v2498 = vpop.f32.mrf.mxu0
    %v2499 = vpop.f32.mrf.mxu0
    %2500 = vdwg.mxu0
    %2501 = vmatprep.subr.bf16.mxu0 %v892
    %2502 = vmatpush1.bf16.msra.mxu0 %v891
    %2503 = vmatprep.subr.bf16.mxu0 %v884
    %2504 = vmatpush1.bf16.msra.mxu0 %v883
    %2505 = vmatprep.subr.bf16.mxu0 %v876
    %2506 = vmatpush1.bf16.msra.mxu0 %v875
    %2507 = vmatprep.subr.bf16.mxu0 %v868
    %2508 = vmatpush1.bf16.msra.mxu0 %v867
    %2509 = vmatprep.subr.bf16.mxu0 %v860
    %2510 = vmatpush1.bf16.msra.mxu0 %v859
    %2511 = vmatprep.subr.bf16.mxu0 %v852
    %2512 = vmatpush1.bf16.msra.mxu0 %v851
    %2513 = vmatprep.subr.bf16.mxu0 %v844
    %2514 = vmatpush1.bf16.msra.mxu0 %v843
    %2515 = vmatprep.subr.bf16.mxu0 %v836
    %2516 = vmatpush1.bf16.msra.mxu0 %v835
    %2517 = vmatprep.subr.bf16.mxu0 %v956
    %2518 = vmatpush2.bf16.msra.mxu0 %v955
    %2519 = vmatprep.subr.bf16.mxu0 %v948
    %2520 = vmatpush2.bf16.msra.mxu0 %v947
    %2521 = vmatprep.subr.bf16.mxu0 %v940
    %2522 = vmatpush2.bf16.msra.mxu0 %v939
    %2523 = vmatprep.subr.bf16.mxu0 %v932
    %2524 = vmatpush2.bf16.msra.mxu0 %v931
    %2525 = vmatprep.subr.bf16.mxu0 %v924
    %2526 = vmatpush2.bf16.msra.mxu0 %v923
    %2527 = vmatprep.subr.bf16.mxu0 %v916
    %2528 = vmatpush2.bf16.msra.mxu0 %v915
    %2529 = vmatprep.subr.bf16.mxu0 %v908
    %2530 = vmatpush2.bf16.msra.mxu0 %v907
    %2531 = vmatprep.subr.bf16.mxu0 %v900
    %2532 = vmatpush2.bf16.msra.mxu0 %v899
    %2533 = vmatprep.mubr.bf16.mxu0 %v2418
    %2534 = vmatmul.mubr.bf16.gmra.mxu0 %v2417
    %v2535 = vpop.f32.mrf.mxu0
    %v2536 = vadd.f32 0.0, %v2535
    %v2537 = vpop.f32.mrf.mxu0
    %v2538 = vadd.f32 0.0, %v2537
    %v2539 = vpop.f32.mrf.mxu0
    %v2540 = vpop.f32.mrf.mxu0
    %2541 = vdwg.mxu0
    %2542 = vmatprep.subr.bf16.mxu0 %v894
    %2543 = vmatpush1.bf16.msra.mxu0 %v893
    %2544 = vmatprep.subr.bf16.mxu0 %v886
    %2545 = vmatpush1.bf16.msra.mxu0 %v885
    %2546 = vmatprep.subr.bf16.mxu0 %v878
    %2547 = vmatpush1.bf16.msra.mxu0 %v877
    %2548 = vmatprep.subr.bf16.mxu0 %v870
    %2549 = vmatpush1.bf16.msra.mxu0 %v869
    %2550 = vmatprep.subr.bf16.mxu0 %v862
    %2551 = vmatpush1.bf16.msra.mxu0 %v861
    %2552 = vmatprep.subr.bf16.mxu0 %v854
    %2553 = vmatpush1.bf16.msra.mxu0 %v853
    %2554 = vmatprep.subr.bf16.mxu0 %v846
    %2555 = vmatpush1.bf16.msra.mxu0 %v845
    %2556 = vmatprep.subr.bf16.mxu0 %v838
    %2557 = vmatpush1.bf16.msra.mxu0 %v837
    %2558 = vmatprep.subr.bf16.mxu0 %v958
    %2559 = vmatpush2.bf16.msra.mxu0 %v957
    %2560 = vmatprep.subr.bf16.mxu0 %v950
    %2561 = vmatpush2.bf16.msra.mxu0 %v949
    %2562 = vmatprep.subr.bf16.mxu0 %v942
    %2563 = vmatpush2.bf16.msra.mxu0 %v941
    %2564 = vmatprep.subr.bf16.mxu0 %v934
    %2565 = vmatpush2.bf16.msra.mxu0 %v933
    %2566 = vmatprep.subr.bf16.mxu0 %v926
    %2567 = vmatpush2.bf16.msra.mxu0 %v925
    %2568 = vmatprep.subr.bf16.mxu0 %v918
    %2569 = vmatpush2.bf16.msra.mxu0 %v917
    %2570 = vmatprep.subr.bf16.mxu0 %v910
    %2571 = vmatpush2.bf16.msra.mxu0 %v909
    %2572 = vmatprep.subr.bf16.mxu0 %v902
    %2573 = vmatpush2.bf16.msra.mxu0 %v901
    %2574 = vmatprep.mubr.bf16.mxu0 %v2418
    %2575 = vmatmul.mubr.bf16.gmra.mxu0 %v2417
    %v2576 = vpop.f32.mrf.mxu0
    %v2577 = vadd.f32 0.0, %v2576
    %v2578 = vpop.f32.mrf.mxu0
    %v2579 = vadd.f32 0.0, %v2578
    %v2580 = vpop.f32.mrf.mxu0
    %v2581 = vpop.f32.mrf.mxu0
    %2582 = vdwg.mxu0
    %v2583 = vadd.f32 %v2536, %v401
    %v2584 = vadd.f32 %v2538, %v405
    %v2585 = vadd.f32 %v2577, %v409
    %v2586 = vadd.f32 %v2579, %v413
    %v2587 = vxor.u32 %v2583, 2147483648
    %v2588 = vxor.u32 %v2584, 2147483648
    %v2589 = vmul.f32 %v2587, 1.442695
    %v2590 = vpow.pop %v2589
    %v2591 = vmul.f32 %v2588, 1.442695
    %v2592 = vpow.pop %v2591
    %v2593 = vadd.f32 %v2590, 1.0
    %v2594 = vadd.f32 %v2592, 1.0
    %v2595 = vrcp.pop %v2593
    %v2596 = vmul.f32 1.0, %v2595
    %v2597 = vrcp.pop %v2594
    %v2598 = vmul.f32 1.0, %v2597
    %v2599 = vtanh.pop %v2585
    %v2600 = vxor.u32 %v2586, 2147483648
    %v2601 = vmul.f32 %v2600, 1.442695
    %v2602 = vpow.pop %v2601
    %v2603 = vadd.f32 %v2602, 1.0
    %v2604 = vrcp.pop %v2603
    %v2605 = vmul.f32 1.0, %v2604
    %v2606 = vmul.f32 %v2598, %v2386
    %v2607 = vmul.f32 %v2596, %v2599
    %v2608 = vadd.f32 %v2606, %v2607
    %v2609 = vtanh.pop %v2608
    %v2610 = vmul.f32 %v2605, %v2609
    %v2611 = vadd.f32 %v191, %v2454
    %v2612 = vadd.f32 %v193, %v2456
    %v2613 = vadd.f32 %v264, %v2495
    %v2614 = vadd.f32 %v266, %v2497
    %v2615 = vxor.u32 %v2611, 2147483648
    %v2616 = vxor.u32 %v2612, 2147483648
    %v2617 = vmul.f32 %v2615, 1.442695
    %v2618 = vpow.pop %v2617
    %v2619 = vmul.f32 %v2616, 1.442695
    %v2620 = vpow.pop %v2619
    %v2621 = vadd.f32 %v2618, 1.0
    %v2622 = vadd.f32 %v2620, 1.0
    %v2623 = vrcp.pop %v2621
    %v2624 = vmul.f32 1.0, %v2623
    %v2625 = vrcp.pop %v2622
    %v2626 = vmul.f32 1.0, %v2625
    %v2627 = vtanh.pop %v2613
    %v2628 = vxor.u32 %v2614, 2147483648
    %v2629 = vmul.f32 %v2628, 1.442695
    %v2630 = vpow.pop %v2629
    %v2631 = vadd.f32 %v2630, 1.0
    %v2632 = vrcp.pop %v2631
    %v2633 = vmul.f32 1.0, %v2632
    %v2634 = vmul.f32 %v2626, %v2414
    %v2635 = vmul.f32 %v2624, %v2627
    %v2636 = vadd.f32 %v2634, %v2635
    %v2637 = vtanh.pop %v2636
    %v2638 = vmul.f32 %v2633, %v2637
    %v2639 = vpack.c.bf16 %v2638, %v2638
    %v2640 = vpack.c.bf16 %v2610, %v2610
    %2641 = vmatprep.subr.bf16.mxu0 %v892
    %2642 = vmatpush1.bf16.msra.mxu0 %v891
    %2643 = vmatprep.subr.bf16.mxu0 %v884
    %2644 = vmatpush1.bf16.msra.mxu0 %v883
    %2645 = vmatprep.subr.bf16.mxu0 %v876
    %2646 = vmatpush1.bf16.msra.mxu0 %v875
    %2647 = vmatprep.subr.bf16.mxu0 %v868
    %2648 = vmatpush1.bf16.msra.mxu0 %v867
    %2649 = vmatprep.subr.bf16.mxu0 %v860
    %2650 = vmatpush1.bf16.msra.mxu0 %v859
    %2651 = vmatprep.subr.bf16.mxu0 %v852
    %2652 = vmatpush1.bf16.msra.mxu0 %v851
    %2653 = vmatprep.subr.bf16.mxu0 %v844
    %2654 = vmatpush1.bf16.msra.mxu0 %v843
    %2655 = vmatprep.subr.bf16.mxu0 %v836
    %2656 = vmatpush1.bf16.msra.mxu0 %v835
    %2657 = vmatprep.subr.bf16.mxu0 %v956
    %2658 = vmatpush2.bf16.msra.mxu0 %v955
    %2659 = vmatprep.subr.bf16.mxu0 %v948
    %2660 = vmatpush2.bf16.msra.mxu0 %v947
    %2661 = vmatprep.subr.bf16.mxu0 %v940
    %2662 = vmatpush2.bf16.msra.mxu0 %v939
    %2663 = vmatprep.subr.bf16.mxu0 %v932
    %2664 = vmatpush2.bf16.msra.mxu0 %v931
    %2665 = vmatprep.subr.bf16.mxu0 %v924
    %2666 = vmatpush2.bf16.msra.mxu0 %v923
    %2667 = vmatprep.subr.bf16.mxu0 %v916
    %2668 = vmatpush2.bf16.msra.mxu0 %v915
    %2669 = vmatprep.subr.bf16.mxu0 %v908
    %2670 = vmatpush2.bf16.msra.mxu0 %v907
    %2671 = vmatprep.subr.bf16.mxu0 %v900
    %2672 = vmatpush2.bf16.msra.mxu0 %v899
    %2673 = vmatprep.mubr.bf16.mxu0 %v2640
    %2674 = vmatmul.mubr.bf16.gmra.mxu0 %v2639
    %v2675 = vpop.f32.mrf.mxu0
    %v2676 = vadd.f32 0.0, %v2675
    %v2677 = vpop.f32.mrf.mxu0
    %v2678 = vadd.f32 0.0, %v2677
    %v2679 = vpop.f32.mrf.mxu0
    %v2680 = vpop.f32.mrf.mxu0
    %2681 = vdwg.mxu0
    %2682 = vmatprep.subr.bf16.mxu0 %v894
    %2683 = vmatpush1.bf16.msra.mxu0 %v893
    %2684 = vmatprep.subr.bf16.mxu0 %v886
    %2685 = vmatpush1.bf16.msra.mxu0 %v885
    %2686 = vmatprep.subr.bf16.mxu0 %v878
    %2687 = vmatpush1.bf16.msra.mxu0 %v877
    %2688 = vmatprep.subr.bf16.mxu0 %v870
    %2689 = vmatpush1.bf16.msra.mxu0 %v869
    %2690 = vmatprep.subr.bf16.mxu0 %v862
    %2691 = vmatpush1.bf16.msra.mxu0 %v861
    %2692 = vmatprep.subr.bf16.mxu0 %v854
    %2693 = vmatpush1.bf16.msra.mxu0 %v853
    %2694 = vmatprep.subr.bf16.mxu0 %v846
    %2695 = vmatpush1.bf16.msra.mxu0 %v845
    %2696 = vmatprep.subr.bf16.mxu0 %v838
    %2697 = vmatpush1.bf16.msra.mxu0 %v837
    %2698 = vmatprep.subr.bf16.mxu0 %v958
    %2699 = vmatpush2.bf16.msra.mxu0 %v957
    %2700 = vmatprep.subr.bf16.mxu0 %v950
    %2701 = vmatpush2.bf16.msra.mxu0 %v949
    %2702 = vmatprep.subr.bf16.mxu0 %v942
    %2703 = vmatpush2.bf16.msra.mxu0 %v941
    %2704 = vmatprep.subr.bf16.mxu0 %v934
    %2705 = vmatpush2.bf16.msra.mxu0 %v933
    %2706 = vmatprep.subr.bf16.mxu0 %v926
    %2707 = vmatpush2.bf16.msra.mxu0 %v925
    %2708 = vmatprep.subr.bf16.mxu0 %v918
    %2709 = vmatpush2.bf16.msra.mxu0 %v917
    %2710 = vmatprep.subr.bf16.mxu0 %v910
    %2711 = vmatpush2.bf16.msra.mxu0 %v909
    %2712 = vmatprep.subr.bf16.mxu0 %v902
    %2713 = vmatpush2.bf16.msra.mxu0 %v901
    %2714 = vmatprep.mubr.bf16.mxu0 %v2640
    %2715 = vmatmul.mubr.bf16.gmra.mxu0 %v2639
    %v2716 = vpop.f32.mrf.mxu0
    %v2717 = vadd.f32 0.0, %v2716
    %v2718 = vpop.f32.mrf.mxu0
    %v2719 = vadd.f32 0.0, %v2718
    %v2720 = vpop.f32.mrf.mxu0
    %v2721 = vpop.f32.mrf.mxu0
    %2722 = vdwg.mxu0
    %v2723 = vadd.f32 %v2676, %v401
    %v2724 = vadd.f32 %v2678, %v405
    %v2725 = vadd.f32 %v2717, %v409
    %v2726 = vadd.f32 %v2719, %v413
    %v2727 = vxor.u32 %v2723, 2147483648
    %v2728 = vxor.u32 %v2724, 2147483648
    %v2729 = vmul.f32 %v2727, 1.442695
    %v2730 = vpow.pop %v2729
    %v2731 = vmul.f32 %v2728, 1.442695
    %v2732 = vpow.pop %v2731
    %v2733 = vadd.f32 %v2730, 1.0
    %v2734 = vadd.f32 %v2732, 1.0
    %v2735 = vrcp.pop %v2733
    %v2736 = vmul.f32 1.0, %v2735
    %v2737 = vrcp.pop %v2734
    %v2738 = vmul.f32 1.0, %v2737
    %v2739 = vtanh.pop %v2725
    %v2740 = vxor.u32 %v2726, 2147483648
    %v2741 = vmul.f32 %v2740, 1.442695
    %v2742 = vpow.pop %v2741
    %v2743 = vadd.f32 %v2742, 1.0
    %v2744 = vrcp.pop %v2743
    %v2745 = vmul.f32 1.0, %v2744
    %v2746 = vmul.f32 %v2738, %v2608
    %v2747 = vmul.f32 %v2736, %v2739
    %v2748 = vadd.f32 %v2746, %v2747
    %v2749 = vtanh.pop %v2748
    %v2750 = vmul.f32 %v2745, %v2749
    %v2751 = vpack.c.bf16 %v2750, %v2750
    %v2752 = vld [vmem:[%s5] sm:$0xf]
    %v2753 = vld [vmem:[%s5 + $0x4] sm:$0xf]
    %v2754 = vld [vmem:[%s5 + $0x8] sm:$0xf]
    %v2755 = vld [vmem:[%s5 + $0xc] sm:$0xf]
    %v2756 = vld [vmem:[%s5 + $0x10] sm:$0xf]
    %v2757 = vld [vmem:[%s5 + $0x14] sm:$0xf]
    %v2758 = vld [vmem:[%s5 + $0x18] sm:$0xf]
    %v2759 = vld [vmem:[%s5 + $0x1c] sm:$0xf]
    %v2760 = vld [vmem:[%s5 + $0x20] sm:$0xf]
    %v2761 = vld [vmem:[%s5 + $0x24] sm:$0xf]
    %v2762 = vld [vmem:[%s5 + $0x28] sm:$0xf]
    %v2763 = vld [vmem:[%s5 + $0x2c] sm:$0xf]
    %v2764 = vld [vmem:[%s5 + $0x30] sm:$0xf]
    %v2765 = vld [vmem:[%s5 + $0x34] sm:$0xf]
    %v2766 = vld [vmem:[%s5 + $0x38] sm:$0xf]
    %v2767 = vld [vmem:[%s5 + $0x3c] sm:$0xf]
    %v2768 = vld [vmem:[%s6] sm:$0x1]
    %v2770 = vlaneseq
    %v2771 = vshrl.u32 %v2770, 7
    %v2772 = vsub.s32 0, %v2771
    %v2773 = vrot.slane %v2768, %v2772
    %v2791 = vunpack.c.l.b16 %v2752
    %v2792 = vunpack.c.l.b16 %v2753
    %v2793 = vunpack.c.l.b16 %v2754
    %v2794 = vunpack.c.l.b16 %v2755
    %v2795 = vunpack.c.l.b16 %v2756
    %v2796 = vunpack.c.l.b16 %v2757
    %v2797 = vunpack.c.l.b16 %v2758
    %v2798 = vunpack.c.l.b16 %v2759
    %v2799 = vunpack.c.l.b16 %v2760
    %v2800 = vunpack.c.l.b16 %v2761
    %v2801 = vunpack.c.l.b16 %v2762
    %v2802 = vunpack.c.l.b16 %v2763
    %v2803 = vunpack.c.l.b16 %v2764
    %v2804 = vunpack.c.l.b16 %v2765
    %v2805 = vunpack.c.l.b16 %v2766
    %v2806 = vunpack.c.l.b16 %v2767
    %v2807 = vpack.c.b16 %v2792, %v2791
    %v2808 = vpack.c.b16 %v2794, %v2793
    %v2809 = vpack.c.b16 %v2796, %v2795
    %v2810 = vpack.c.b16 %v2798, %v2797
    %v2811 = vpack.c.b16 %v2800, %v2799
    %v2812 = vpack.c.b16 %v2802, %v2801
    %v2813 = vpack.c.b16 %v2804, %v2803
    %v2814 = vpack.c.b16 %v2806, %v2805
    %2823 = vmatprep.subr.bf16.mxu0 0
    %2824 = vmatpush1.bf16.msra.mxu0 %v2814
    %2825 = vmatprep.subr.bf16.mxu0 0
    %2826 = vmatpush1.bf16.msra.mxu0 %v2813
    %2827 = vmatprep.subr.bf16.mxu0 0
    %2828 = vmatpush1.bf16.msra.mxu0 %v2812
    %2829 = vmatprep.subr.bf16.mxu0 0
    %2830 = vmatpush1.bf16.msra.mxu0 %v2811
    %2831 = vmatprep.subr.bf16.mxu0 0
    %2832 = vmatpush1.bf16.msra.mxu0 %v2810
    %2833 = vmatprep.subr.bf16.mxu0 0
    %2834 = vmatpush1.bf16.msra.mxu0 %v2809
    %2835 = vmatprep.subr.bf16.mxu0 0
    %2836 = vmatpush1.bf16.msra.mxu0 %v2808
    %2837 = vmatprep.subr.bf16.mxu0 0
    %2838 = vmatpush1.bf16.msra.mxu0 %v2807
    %2839 = vmatprep.subr.bf16.mxu0 0
    %2840 = vmatpush2.bf16.msra.mxu0 0
    %2841 = vmatprep.subr.bf16.mxu0 0
    %2842 = vmatpush2.bf16.msra.mxu0 0
    %2843 = vmatprep.subr.bf16.mxu0 0
    %2844 = vmatpush2.bf16.msra.mxu0 0
    %2845 = vmatprep.subr.bf16.mxu0 0
    %2846 = vmatpush2.bf16.msra.mxu0 0
    %2847 = vmatprep.subr.bf16.mxu0 0
    %2848 = vmatpush2.bf16.msra.mxu0 0
    %2849 = vmatprep.subr.bf16.mxu0 0
    %2850 = vmatpush2.bf16.msra.mxu0 0
    %2851 = vmatprep.subr.bf16.mxu0 0
    %2852 = vmatpush2.bf16.msra.mxu0 0
    %2853 = vmatprep.subr.bf16.mxu0 0
    %2854 = vmatpush2.bf16.msra.mxu0 0
    %2855 = vmatprep.mubr.bf16.mxu0 0
    %2856 = vmatmul.mubr.bf16.gmra.mxu0 %v2751
    %v2857 = vpop.f32.mrf.mxu0
    %v2858 = vadd.f32 %v2773, %v2857
    %v2859 = vpop.f32.mrf.mxu0
    %v2860 = vpop.f32.mrf.mxu0
    %v2861 = vpop.f32.mrf.mxu0
    %2862 = vdwg.mxu0
    %2863 = vst.msk [vmem:[#allocation5] sm:$0xff] %vm96, %v2858
    // Predicated region
    $region34: #{tpu_custom_call.1} parent=1 // pred_check
      _
    $region35: #{tpu_custom_call.1} parent=1 // pred_check_branch
      %2865 = sbr.rel (0) target = $region37
    $region36: #{tpu_custom_call.1} parent=1 // pred_region
      %s2867 = ssub.s32 128, 128
      %2868 = vsyncadd [#allocation4], %s2867
      %s2870 = sshll.u32 [#allocation5], 4
      %s2871 = int_to_ptr.vmem [resolvable:$true] %s2870
      %2873 = dma.vmem_to_hbm [thread:$0]  %s2871, 128, %s7, [#allocation4]
    $region37: #{tpu_custom_call.1} parent=1 // pred_fallthru
      _
    // Predicated region
    $region38: #{tpu_custom_call.1} parent=1 // pred_check
      _
    $region39: #{tpu_custom_call.1} parent=1 // pred_check_branch
      %2875 = sbr.rel (0) target = $region41
    $region40: #{tpu_custom_call.1} parent=1 // pred_region
      %2876 = dma.done [#allocation4], 128
    $region41: #{tpu_custom_call.1} parent=1 // pred_fallthru
      _
    %2877 = vsyncpa [#allocation3], 1
    %2878 = vsyncpa [#allocation4], 1

</llo_original>
